<compile_context>
chip_gen: v6e
topology: v6e:2x2x1
jax: 0.10.0
libtpu: 0.0.40
codegen_flags: <defaults>
</compile_context>

<pallas_src>
import jax
import jax.numpy as jnp
from jax.experimental import pallas as pl
from jax.experimental.pallas import tpu as pltpu


def _leaky_relu(x, slope=0.2):
    return jnp.where(x > 0, x, slope * x)


def _round_up(n, m):
    return (n + m - 1) // m * m


# --------------------------------------------------------------------------- #
# Kernel
# --------------------------------------------------------------------------- #
def discriminator_kernel(labels_ref, x_ref,
                         w1x_ref, w1e_ref, b1_ref,
                         w2_ref, b2_ref,
                         w3_ref, b3_ref,
                         w4_ref, b4_ref,
                         o_ref):
    tb = x_ref.shape[0]
    c_pad = w1e_ref.shape[0]            # 16 (zero-padded class dim)

    # Embedding is pre-folded into w1e (= emb @ W1[784:], done in f32 offline).
    # Here we only build the one-hot selector on the VPU.
    lab = labels_ref[...]                                            # (tb, 1) i32
    classes = jax.lax.broadcasted_iota(jnp.int32, (tb, c_pad), 1)    # (tb, 16)
    onehot = (lab == classes).astype(jnp.bfloat16)                   # (tb, 16)

    # --- layer 1: x @ W1[:784] + onehot @ (emb @ W1[784:]) + b1 -------------
    xb = x_ref[...].astype(jnp.bfloat16)     # in-kernel cast; VPU filler work
    h = jnp.dot(xb, w1x_ref[...], preferred_element_type=jnp.float32)
    h += jnp.dot(onehot, w1e_ref[...], preferred_element_type=jnp.float32)
    h += b1_ref[...]
    h = _leaky_relu(h)

    # --- layer 2 -------------------------------------------------------------
    h = jnp.dot(h.astype(jnp.bfloat16), w2_ref[...],
                preferred_element_type=jnp.float32) + b2_ref[...]
    h = _leaky_relu(h)

    # --- layer 3 -------------------------------------------------------------
    h = jnp.dot(h.astype(jnp.bfloat16), w3_ref[...],
                preferred_element_type=jnp.float32) + b3_ref[...]
    h = _leaky_relu(h)

    # --- layer 4 (256 -> 1): lane reduction, not a 1-column MXU matmul -------
    logits = jnp.sum(h * w4_ref[...].astype(jnp.float32),
                     axis=-1, keepdims=True) + b4_ref[...]
    # (tb, 1) output: last-dim-1 stores are masked but the writeback is tiny;
    # lane-dense transposed output judged not worth the extra XLU/reshape.
    o_ref[...] = jax.nn.sigmoid(logits)


# --------------------------------------------------------------------------- #
# Wrapper
# --------------------------------------------------------------------------- #
def _choose_batch_tile(B, block_b):
    """Pick a sublane-aligned batch tile: big enough to amortize per-step
    overhead, small enough not to waste > half a tile on padding, and giving
    >= 2 grid steps when possible (v7x megacore)."""
    b8 = _round_up(B, 8)
    tb = min(_round_up(block_b, 8), b8)
    # shrink while the zero-padded tail wastes more than half a tile
    while tb > 8 and (_round_up(b8, tb) - b8) * 2 > tb:
        tb = _round_up(tb // 2, 8)
    # ensure >= 2 grid steps when the batch allows it (both TCs get work)
    if b8 >= 16 and _round_up(b8, tb) // tb < 2:
        tb = _round_up((b8 + 1) // 2, 8)
    return tb, _round_up(b8, tb)


def discriminator_forward(x, labels, params, *, block_b=512):
    """x: (B, d_input_dim) f32, labels: (B,) int. Returns (B, 1) f32."""
    B, D = x.shape
    tb, b_pad = _choose_batch_tile(B, block_b)
    grid = (b_pad // tb,)

    lab2d = labels.astype(jnp.int32).reshape(B, 1)
    if b_pad != B:
        # ragged tail only: pad (no full zero-slab rebuild in the common case)
        x_in = jnp.pad(x, ((0, b_pad - B), (0, 0)))
        lab_in = jnp.pad(lab2d, ((0, b_pad - B), (0, 0)))
    else:
        x_in, lab_in = x, lab2d

    batch = lambda i: (i, 0)      # batch-tiled operands
    const = lambda i: (0, 0)      # weights: same block every step -> VMEM-resident

    args = (lab_in, x_in,
            params["w1x"], params["w1e"], params["b1"],
            params["w2"], params["b2"],
            params["w3"], params["b3"],
            params["w4"], params["b4"])

    in_specs = [pl.BlockSpec((tb, 1), batch),       # labels
                pl.BlockSpec((tb, D), batch)]       # x (original dtype)
    in_specs += [pl.BlockSpec(a.shape, const) for a in args[2:]]

    out = pl.pallas_call(
        discriminator_kernel,
        out_shape=jax.ShapeDtypeStruct((b_pad, 1), jnp.float32),
        grid=grid,
        in_specs=in_specs,
        out_specs=pl.BlockSpec((tb, 1), batch),
        compiler_params=pltpu.CompilerParams(
            dimension_semantics=("parallel",),
            vmem_limit_bytes=48 << 20),
    )(*args)
    return out[:B]


# --------------------------------------------------------------------------- #
# Parameters (PyTorch-style init) + pure-JAX reference
# --------------------------------------------------------------------------- #
def init_params(key, d_input_dim, num_classes, c_pad=16):
    """Returns (master_f32_params, kernel_params).

    master: exact PyTorch-semantics f32 weights (for the reference).
    kernel: bf16 weights with the embedding folded into layer 1 (fold in f32,
            then cast), zero-padded class dim for tile alignment.
    """
    ks = jax.random.split(key, 9)
    fan1 = d_input_dim + num_classes   # 794: fan-in of the first Linear

    def u(k, shape, fan_in):
        b = fan_in ** -0.5
        return jax.random.uniform(k, shape, jnp.float32, -b, b)

    emb = jax.random.normal(ks[0], (num_classes, num_classes), jnp.float32)
    w1 = u(ks[1], (fan1, 1024), fan1)
    b1 = u(ks[2], (1, 1024), fan1)
    w2 = u(ks[3], (1024, 512), 1024)
    b2 = u(ks[4], (1, 512), 1024)
    w3 = u(ks[5], (512, 256), 512)
    b3 = u(ks[6], (1, 256), 512)
    w4 = u(ks[7], (1, 256), 256)       # row form for the lane reduction
    b4 = u(ks[8], (1, 1), 256)

    master = dict(emb=emb, w1=w1, b1=b1, w2=w2, b2=b2,
                  w3=w3, b3=b3, w4=w4, b4=b4)

    # Fold embedding into the layer-1 weight in f32, pad classes to 16, -> bf16.
    w1e_eff = emb @ w1[d_input_dim:]                              # (C, 1024) f32
    w1e_pad = jnp.zeros((c_pad, 1024), jnp.float32).at[:num_classes].set(w1e_eff)

    kernel_params = dict(
        w1x=w1[:d_input_dim].astype(jnp.bfloat16),                # (784, 1024)
        w1e=w1e_pad.astype(jnp.bfloat16),                         # (16, 1024)
        b1=b1,
        w2=w2.astype(jnp.bfloat16), b2=b2,
        w3=w3.astype(jnp.bfloat16), b3=b3,
        w4=w4.astype(jnp.bfloat16), b4=b4,
    )
    return master, kernel_params


def reference_forward(x, labels, master):
    """Pure-JAX f32 replica of the PyTorch module."""
    labels_emb = jnp.take(master["emb"], labels, axis=0)
    h = jnp.concatenate([x, labels_emb], axis=1)
    h = _leaky_relu(h @ master["w1"] + master["b1"])
    h = _leaky_relu(h @ master["w2"] + master["b2"])
    h = _leaky_relu(h @ master["w3"] + master["b3"])
    logits = h @ master["w4"].T + master["b4"]
    return jax.nn.sigmoid(logits)


# --------------------------------------------------------------------------- #
if __name__ == "__main__":
    key = jax.random.PRNGKey(0)
    k_param, k_x, k_lab = jax.random.split(key, 3)

    B = 8                  # small demo batch
    d_input_dim = 784      # MNIST 28*28 flattened
    num_classes = 10

    master, params = init_params(k_param, d_input_dim, num_classes)
    x = jax.random.normal(k_x, (B, d_input_dim), jnp.float32)
    labels = jax.random.randint(k_lab, (B,), 0, num_classes, jnp.int32)

    out = discriminator_forward(x, labels, params)
    out = jax.block_until_ready(out)

    ref = reference_forward(x, labels, master)
    assert out.shape == (B, 1)
    assert jnp.allclose(out, ref, atol=2e-2, rtol=2e-2), "mismatch vs reference"
    print("KERNEL_OK")
</pallas_src>

<mosaic_0001>
module attributes {stable_mosaic.version = 11 : i64} {
  func.func @discriminator_kernel(%arg0: i32, %arg1: memref<8x1xi32, #tpu.memory_space<vmem>>, %arg2: memref<8x784xf32, #tpu.memory_space<vmem>>, %arg3: memref<784x1024xbf16, #tpu.memory_space<vmem>>, %arg4: memref<16x1024xbf16, #tpu.memory_space<vmem>>, %arg5: memref<1x1024xf32, #tpu.memory_space<vmem>>, %arg6: memref<1024x512xbf16, #tpu.memory_space<vmem>>, %arg7: memref<1x512xf32, #tpu.memory_space<vmem>>, %arg8: memref<512x256xbf16, #tpu.memory_space<vmem>>, %arg9: memref<1x256xf32, #tpu.memory_space<vmem>>, %arg10: memref<1x256xbf16, #tpu.memory_space<vmem>>, %arg11: memref<1x1xf32, #tpu.memory_space<vmem>>, %arg12: memref<8x1xf32, #tpu.memory_space<vmem>>) attributes {dimension_semantics = [#tpu.dimension_semantics<parallel>], iteration_bounds = array<i64: 1>, scalar_prefetch = 0 : i64, scratch_operands = 0 : i64, tpu.core_type = #tpu.core_type<tc>, window_params = [{transform_indices = @transform_0, window_bounds = array<i64: 8, 1>}, {transform_indices = @transform_1, window_bounds = array<i64: 8, 784>}, {pipeline_mode = #tpu.pipeline_mode<synchronous>, transform_indices = @transform_2, window_bounds = array<i64: 784, 1024>}, {pipeline_mode = #tpu.pipeline_mode<synchronous>, transform_indices = @transform_3, window_bounds = array<i64: 16, 1024>}, {pipeline_mode = #tpu.pipeline_mode<synchronous>, transform_indices = @transform_4, window_bounds = array<i64: 1, 1024>}, {pipeline_mode = #tpu.pipeline_mode<synchronous>, transform_indices = @transform_5, window_bounds = array<i64: 1024, 512>}, {pipeline_mode = #tpu.pipeline_mode<synchronous>, transform_indices = @transform_6, window_bounds = array<i64: 1, 512>}, {pipeline_mode = #tpu.pipeline_mode<synchronous>, transform_indices = @transform_7, window_bounds = array<i64: 512, 256>}, {pipeline_mode = #tpu.pipeline_mode<synchronous>, transform_indices = @transform_8, window_bounds = array<i64: 1, 256>}, {pipeline_mode = #tpu.pipeline_mode<synchronous>, transform_indices = @transform_9, window_bounds = array<i64: 1, 256>}, {pipeline_mode = #tpu.pipeline_mode<synchronous>, transform_indices = @transform_10, window_bounds = array<i64: 1, 1>}, {transform_indices = @transform_11, window_bounds = array<i64: 8, 1>}]} {
    %c0 = arith.constant 0 : index
    %c0_0 = arith.constant 0 : index
    %0 = vector.load %arg1[%c0, %c0_0] : memref<8x1xi32, #tpu.memory_space<vmem>>, vector<8x1xi32>
    %1 = tpu.iota {dimensions = array<i32: 1>} : vector<8x16xi32>
    %2 = vector.broadcast %0 : vector<8x1xi32> to vector<8x16xi32>
    %3 = arith.cmpi eq, %2, %1 : vector<8x16xi32>
    %4 = arith.extui %3 : vector<8x16xi1> to vector<8x16xi32>
    %5 = arith.sitofp %4 : vector<8x16xi32> to vector<8x16xf32>
    %6 = arith.truncf %5 : vector<8x16xf32> to vector<8x16xbf16>
    %c0_1 = arith.constant 0 : index
    %c0_2 = arith.constant 0 : index
    %7 = vector.load %arg2[%c0_1, %c0_2] : memref<8x784xf32, #tpu.memory_space<vmem>>, vector<8x784xf32>
    %8 = arith.truncf %7 : vector<8x784xf32> to vector<8x784xbf16>
    %c0_3 = arith.constant 0 : index
    %c0_4 = arith.constant 0 : index
    %9 = vector.load %arg3[%c0_3, %c0_4] : memref<784x1024xbf16, #tpu.memory_space<vmem>>, vector<784x1024xbf16>
    %cst = arith.constant dense<0.000000e+00> : vector<8x1024xf32>
    %10 = tpu.matmul %8, %9, %cst {dimension_numbers = #tpu.dot_dimension_numbers<[1], [0], [0], [1], [0, 0, 1, 1], [], []>} : vector<8x784xbf16>, vector<784x1024xbf16>, vector<8x1024xf32> -> vector<8x1024xf32>
    %c0_5 = arith.constant 0 : index
    %c0_6 = arith.constant 0 : index
    %11 = vector.load %arg4[%c0_5, %c0_6] : memref<16x1024xbf16, #tpu.memory_space<vmem>>, vector<16x1024xbf16>
    %cst_7 = arith.constant dense<0.000000e+00> : vector<8x1024xf32>
    %12 = tpu.matmul %6, %11, %cst_7 {dimension_numbers = #tpu.dot_dimension_numbers<[1], [0], [0], [1], [0, 0, 1, 1], [], []>} : vector<8x16xbf16>, vector<16x1024xbf16>, vector<8x1024xf32> -> vector<8x1024xf32>
    %13 = arith.addf %10, %12 : vector<8x1024xf32>
    %c0_8 = arith.constant 0 : index
    %c0_9 = arith.constant 0 : index
    %14 = vector.load %arg5[%c0_8, %c0_9] : memref<1x1024xf32, #tpu.memory_space<vmem>>, vector<1x1024xf32>
    %15 = vector.broadcast %14 : vector<1x1024xf32> to vector<8x1024xf32>
    %16 = arith.addf %13, %15 : vector<8x1024xf32>
    %cst_10 = arith.constant 0.000000e+00 : f32
    %17 = vector.broadcast %cst_10 : f32 to vector<8x1024xf32>
    %18 = arith.cmpf ogt, %16, %17 : vector<8x1024xf32>
    %cst_11 = arith.constant 2.000000e-01 : f32
    %19 = vector.broadcast %cst_11 : f32 to vector<8x1024xf32>
    %20 = arith.mulf %19, %16 : vector<8x1024xf32>
    %21 = arith.select %18, %16, %20 : vector<8x1024xi1>, vector<8x1024xf32>
    %22 = arith.truncf %21 : vector<8x1024xf32> to vector<8x1024xbf16>
    %c0_12 = arith.constant 0 : index
    %c0_13 = arith.constant 0 : index
    %23 = vector.load %arg6[%c0_12, %c0_13] : memref<1024x512xbf16, #tpu.memory_space<vmem>>, vector<1024x512xbf16>
    %cst_14 = arith.constant dense<0.000000e+00> : vector<8x512xf32>
    %24 = tpu.matmul %22, %23, %cst_14 {dimension_numbers = #tpu.dot_dimension_numbers<[1], [0], [0], [1], [0, 0, 1, 1], [], []>} : vector<8x1024xbf16>, vector<1024x512xbf16>, vector<8x512xf32> -> vector<8x512xf32>
    %c0_15 = arith.constant 0 : index
    %c0_16 = arith.constant 0 : index
    %25 = vector.load %arg7[%c0_15, %c0_16] : memref<1x512xf32, #tpu.memory_space<vmem>>, vector<1x512xf32>
    %26 = vector.broadcast %25 : vector<1x512xf32> to vector<8x512xf32>
    %27 = arith.addf %24, %26 : vector<8x512xf32>
    %cst_17 = arith.constant 0.000000e+00 : f32
    %28 = vector.broadcast %cst_17 : f32 to vector<8x512xf32>
    %29 = arith.cmpf ogt, %27, %28 : vector<8x512xf32>
    %cst_18 = arith.constant 2.000000e-01 : f32
    %30 = vector.broadcast %cst_18 : f32 to vector<8x512xf32>
    %31 = arith.mulf %30, %27 : vector<8x512xf32>
    %32 = arith.select %29, %27, %31 : vector<8x512xi1>, vector<8x512xf32>
    %33 = arith.truncf %32 : vector<8x512xf32> to vector<8x512xbf16>
    %c0_19 = arith.constant 0 : index
    %c0_20 = arith.constant 0 : index
    %34 = vector.load %arg8[%c0_19, %c0_20] : memref<512x256xbf16, #tpu.memory_space<vmem>>, vector<512x256xbf16>
    %cst_21 = arith.constant dense<0.000000e+00> : vector<8x256xf32>
    %35 = tpu.matmul %33, %34, %cst_21 {dimension_numbers = #tpu.dot_dimension_numbers<[1], [0], [0], [1], [0, 0, 1, 1], [], []>} : vector<8x512xbf16>, vector<512x256xbf16>, vector<8x256xf32> -> vector<8x256xf32>
    %c0_22 = arith.constant 0 : index
    %c0_23 = arith.constant 0 : index
    %36 = vector.load %arg9[%c0_22, %c0_23] : memref<1x256xf32, #tpu.memory_space<vmem>>, vector<1x256xf32>
    %37 = vector.broadcast %36 : vector<1x256xf32> to vector<8x256xf32>
    %38 = arith.addf %35, %37 : vector<8x256xf32>
    %cst_24 = arith.constant 0.000000e+00 : f32
    %39 = vector.broadcast %cst_24 : f32 to vector<8x256xf32>
    %40 = arith.cmpf ogt, %38, %39 : vector<8x256xf32>
    %cst_25 = arith.constant 2.000000e-01 : f32
    %41 = vector.broadcast %cst_25 : f32 to vector<8x256xf32>
    %42 = arith.mulf %41, %38 : vector<8x256xf32>
    %43 = arith.select %40, %38, %42 : vector<8x256xi1>, vector<8x256xf32>
    %c0_26 = arith.constant 0 : index
    %c0_27 = arith.constant 0 : index
    %44 = vector.load %arg10[%c0_26, %c0_27] : memref<1x256xbf16, #tpu.memory_space<vmem>>, vector<1x256xbf16>
    %45 = arith.extf %44 : vector<1x256xbf16> to vector<1x256xf32>
    %46 = vector.broadcast %45 : vector<1x256xf32> to vector<8x256xf32>
    %47 = arith.mulf %43, %46 : vector<8x256xf32>
    %cst_28 = arith.constant dense<0.000000e+00> : vector<8xf32>
    %48 = vector.multi_reduction <add>, %47, %cst_28 [1] : vector<8x256xf32> to vector<8xf32>
    %49 = vector.shape_cast %48 : vector<8xf32> to vector<8x1xf32>
    %c0_29 = arith.constant 0 : index
    %c0_30 = arith.constant 0 : index
    %50 = vector.load %arg11[%c0_29, %c0_30] : memref<1x1xf32, #tpu.memory_space<vmem>>, vector<1x1xf32>
    %51 = vector.broadcast %50 : vector<1x1xf32> to vector<8x1xf32>
    %52 = arith.addf %49, %51 : vector<8x1xf32>
    %53 = arith.negf %52 : vector<8x1xf32>
    %54 = math.exp %53 : vector<8x1xf32>
    %cst_31 = arith.constant 1.000000e+00 : f32
    %55 = vector.broadcast %cst_31 : f32 to vector<8x1xf32>
    %56 = arith.addf %55, %54 : vector<8x1xf32>
    %57 = arith.divf %55, %56 : vector<8x1xf32>
    %c0_32 = arith.constant 0 : index
    %c0_33 = arith.constant 0 : index
    %58 = vector.load %arg12[%c0_32, %c0_33] : memref<8x1xf32, #tpu.memory_space<vmem>>, vector<8x1xf32>
    tpu.vector_store %arg12[%c0_32, %c0_33], %57 {strides = array<i32>} : memref<8x1xf32, #tpu.memory_space<vmem>>, vector<8x1xf32>,
    return
  }
  func.func @transform_0(%arg0: i32) -> (i32, i32) {
    %c0_i32 = arith.constant 0 : i32
    %c0_i32_0 = arith.constant 0 : i32
    return %arg0, %c0_i32 : i32, i32
  }
  func.func @transform_1(%arg0: i32) -> (i32, i32) {
    %c0_i32 = arith.constant 0 : i32
    %c0_i32_0 = arith.constant 0 : i32
    return %arg0, %c0_i32 : i32, i32
  }
  func.func @transform_2(%arg0: i32) -> (i32, i32) {
    %c0_i32 = arith.constant 0 : i32
    %c0_i32_0 = arith.constant 0 : i32
    %c0_i32_1 = arith.constant 0 : i32
    return %c0_i32, %c0_i32_0 : i32, i32
  }
  func.func @transform_3(%arg0: i32) -> (i32, i32) {
    %c0_i32 = arith.constant 0 : i32
    %c0_i32_0 = arith.constant 0 : i32
    %c0_i32_1 = arith.constant 0 : i32
    return %c0_i32, %c0_i32_0 : i32, i32
  }
  func.func @transform_4(%arg0: i32) -> (i32, i32) {
    %c0_i32 = arith.constant 0 : i32
    %c0_i32_0 = arith.constant 0 : i32
    %c0_i32_1 = arith.constant 0 : i32
    return %c0_i32, %c0_i32_0 : i32, i32
  }
  func.func @transform_5(%arg0: i32) -> (i32, i32) {
    %c0_i32 = arith.constant 0 : i32
    %c0_i32_0 = arith.constant 0 : i32
    %c0_i32_1 = arith.constant 0 : i32
    return %c0_i32, %c0_i32_0 : i32, i32
  }
  func.func @transform_6(%arg0: i32) -> (i32, i32) {
    %c0_i32 = arith.constant 0 : i32
    %c0_i32_0 = arith.constant 0 : i32
    %c0_i32_1 = arith.constant 0 : i32
    return %c0_i32, %c0_i32_0 : i32, i32
  }
  func.func @transform_7(%arg0: i32) -> (i32, i32) {
    %c0_i32 = arith.constant 0 : i32
    %c0_i32_0 = arith.constant 0 : i32
    %c0_i32_1 = arith.constant 0 : i32
    return %c0_i32, %c0_i32_0 : i32, i32
  }
  func.func @transform_8(%arg0: i32) -> (i32, i32) {
    %c0_i32 = arith.constant 0 : i32
    %c0_i32_0 = arith.constant 0 : i32
    %c0_i32_1 = arith.constant 0 : i32
    return %c0_i32, %c0_i32_0 : i32, i32
  }
  func.func @transform_9(%arg0: i32) -> (i32, i32) {
    %c0_i32 = arith.constant 0 : i32
    %c0_i32_0 = arith.constant 0 : i32
    %c0_i32_1 = arith.constant 0 : i32
    return %c0_i32, %c0_i32_0 : i32, i32
  }
  func.func @transform_10(%arg0: i32) -> (i32, i32) {
    %c0_i32 = arith.constant 0 : i32
    %c0_i32_0 = arith.constant 0 : i32
    %c0_i32_1 = arith.constant 0 : i32
    return %c0_i32, %c0_i32_0 : i32, i32
  }
  func.func @transform_11(%arg0: i32) -> (i32, i32) {
    %c0_i32 = arith.constant 0 : i32
    %c0_i32_0 = arith.constant 0 : i32
    return %arg0, %c0_i32 : i32, i32
  }
}

</mosaic_0001>

<llo_original>
// kernel: tpu_custom_call.1
$region0: #{tpu_custom_call.1}
  #allocation0 [shape = 'u32[]', space=smem, size = 0x4, offset = 0x4, fixed_abs, tag = 'smem constant byte address 0x4 - core index']
  #allocation1 [shape = 'u32[144,128]{1,0:T(1,128)}', space=vmem, size = 0x12000, scoped, tag = 'internal scratch']
  #allocation2 [shape = 'f32[1,1]{1,0:T(1,128)S(1)}', space=vmem, size = 0x200, scoped, tag = 'scoped memory for tpu_custom_call.1']
  %s0 = inlined_call_operand.vmem [shape: s32[8,1], index: 0, kind: input, shape index: {}]
  %s1 = inlined_call_operand.hbm [shape: f32[8,784], index: 1, kind: input, shape index: {}]
  %s2 = inlined_call_operand.hbm [shape: bf16[784,1024], index: 2, kind: input, shape index: {}]
  %s3 = inlined_call_operand.hbm [shape: bf16[16,1024], index: 3, kind: input, shape index: {}]
  %s4 = inlined_call_operand.hbm [shape: f32[1,1024], index: 4, kind: input, shape index: {}]
  %s5 = inlined_call_operand.hbm [shape: bf16[1024,512], index: 5, kind: input, shape index: {}]
  %s6 = inlined_call_operand.hbm [shape: f32[1,512], index: 6, kind: input, shape index: {}]
  %s7 = inlined_call_operand.hbm [shape: bf16[512,256], index: 7, kind: input, shape index: {}]
  %s8 = inlined_call_operand.hbm [shape: f32[1,256], index: 8, kind: input, shape index: {}]
  %s9 = inlined_call_operand.hbm [shape: bf16[1,256], index: 9, kind: input, shape index: {}]
  %s10 = inlined_call_operand.<no memory space> [shape: f32[1,1], index: 10, kind: input, shape index: {}]
  %s11 = inlined_call_operand.vmem [shape: f32[8,1], index: 11, kind: output, shape index: {}]
  %s12 = sld [smem:[#allocation0]]
  $region90: #{tpu_custom_call.1} parent=0
    _
  %s14 = ssub.s32 1, %s12
  %s15 = scalar_select 0, %s14, %s12
  %v16 = vstv %s10
  %17 = vst [vmem:[#allocation2] sm:$0x1] %v16
  $region1: #{tpu_custom_call.1} parent=0
    #allocation3 [shape = 'u8[28672]{0}', space=vmem, size = 0x7000, scoped, tag = 'input window, operand 1, single buffered']
    #allocation4 [shape = 's32[1]{0}', space=sflag, size = 0x4, scoped, tag = 'scoped memory for tpu_custom_call.1']
    #allocation5 [shape = 'u8[1605632]{0}', space=vmem, size = 0x188000, scoped, tag = 'input window, operand 2, single buffered']
    #allocation6 [shape = 's32[1]{0}', space=sflag, size = 0x4, scoped, tag = 'scoped memory for tpu_custom_call.1']
    #allocation7 [shape = 'u8[32768]{0}', space=vmem, size = 0x8000, scoped, tag = 'input window, operand 3, single buffered']
    #allocation8 [shape = 'u8[4096]{0}', space=vmem, size = 0x1000, scoped, tag = 'input window, operand 4, single buffered']
    #allocation9 [shape = 's32[1]{0}', space=sflag, size = 0x4, scoped, tag = 'scoped memory for tpu_custom_call.1']
    #allocation10 [shape = 'u8[1048576]{0}', space=vmem, size = 0x100000, scoped, tag = 'input window, operand 5, single buffered']
    #allocation11 [shape = 'u8[2048]{0}', space=vmem, size = 0x800, scoped, tag = 'input window, operand 6, single buffered']
    #allocation12 [shape = 's32[1]{0}', space=sflag, size = 0x4, scoped, tag = 'scoped memory for tpu_custom_call.1']
    #allocation13 [shape = 'u8[262144]{0}', space=vmem, size = 0x40000, scoped, tag = 'input window, operand 7, single buffered']
    #allocation14 [shape = 'u8[1024]{0}', space=vmem, size = 0x400, scoped, tag = 'input window, operand 8, single buffered']
    #allocation15 [shape = 's32[1]{0}', space=sflag, size = 0x4, scoped, tag = 'scoped memory for tpu_custom_call.1']
    #allocation16 [shape = 'u8[1024]{0}', space=vmem, size = 0x400, scoped, tag = 'input window, operand 9, single buffered']
    %18 = vsyncpa [#allocation4], 0
    %19 = vsyncpa [#allocation6], 0
    %20 = vsyncpa [#allocation9], 0
    %21 = vsyncpa [#allocation12], 0
    %22 = vsyncpa [#allocation15], 0
    // Predicated region
    $region2: #{tpu_custom_call.1} parent=1 // pred_check
      _
    $region3: #{tpu_custom_call.1} parent=1 // pred_check_branch
      %24 = sbr.rel (0) target = $region5
    $region4: #{tpu_custom_call.1} parent=1 // pred_region
      _
    $region5: #{tpu_custom_call.1} parent=1 // pred_fallthru
      _
    // Predicated region
    $region6: #{tpu_custom_call.1} parent=1 // pred_check
      _
    $region7: #{tpu_custom_call.1} parent=1 // pred_check_branch
      %26 = sbr.rel (0) target = $region9
    $region8: #{tpu_custom_call.1} parent=1 // pred_region
      %s28 = ssub.s32 896, 896
      %29 = vsyncadd [#allocation4], %s28
      %s31 = sshll.u32 [#allocation3], 4
      %s32 = int_to_ptr.vmem [resolvable:$true] %s31
      %34 = dma.hbm_to_vmem [thread:$0]  %s1, 896, %s32, [#allocation4]
    $region9: #{tpu_custom_call.1} parent=1 // pred_fallthru
      _
    // Predicated region
    $region10: #{tpu_custom_call.1} parent=1 // pred_check
      _
    $region11: #{tpu_custom_call.1} parent=1 // pred_check_branch
      %36 = sbr.rel (0) target = $region13
    $region12: #{tpu_custom_call.1} parent=1 // pred_region
      %s38 = ssub.s32 50176, 50176
      %39 = vsyncadd [#allocation6], %s38
      %s40 = sshll.u32 [#allocation5], 4
      %s41 = int_to_ptr.vmem [resolvable:$true] %s40
      %46 = dma.hbm_to_vmem [thread:$0]  %s2, 50176, %s41, [#allocation6], 512, 512, 32
    $region13: #{tpu_custom_call.1} parent=1 // pred_fallthru
      _
    // Predicated region
    $region14: #{tpu_custom_call.1} parent=1 // pred_check
      _
    $region15: #{tpu_custom_call.1} parent=1 // pred_check_branch
      %48 = sbr.rel (0) target = $region17
    $region16: #{tpu_custom_call.1} parent=1 // pred_region
      %s50 = ssub.s32 1024, 1024
      %51 = vsyncadd [#allocation6], %s50
      %s52 = sshll.u32 [#allocation7], 4
      %s53 = int_to_ptr.vmem [resolvable:$true] %s52
      %58 = dma.hbm_to_vmem [thread:$0]  %s3, 1024, %s53, [#allocation6], 512, 512, 32
    $region17: #{tpu_custom_call.1} parent=1 // pred_fallthru
      _
    // Predicated region
    $region18: #{tpu_custom_call.1} parent=1 // pred_check
      _
    $region19: #{tpu_custom_call.1} parent=1 // pred_check_branch
      %60 = sbr.rel (0) target = $region21
    $region20: #{tpu_custom_call.1} parent=1 // pred_region
      %s62 = ssub.s32 128, 128
      %63 = vsyncadd [#allocation9], %s62
      %s65 = sshll.u32 [#allocation8], 4
      %s66 = int_to_ptr.vmem [resolvable:$true] %s65
      %68 = dma.hbm_to_vmem [thread:$0]  %s4, 128, %s66, [#allocation9]
    $region21: #{tpu_custom_call.1} parent=1 // pred_fallthru
      _
    // Predicated region
    $region22: #{tpu_custom_call.1} parent=1 // pred_check
      _
    $region23: #{tpu_custom_call.1} parent=1 // pred_check_branch
      %70 = sbr.rel (0) target = $region25
    $region24: #{tpu_custom_call.1} parent=1 // pred_region
      %s72 = ssub.s32 32768, 32768
      %73 = vsyncadd [#allocation9], %s72
      %s74 = sshll.u32 [#allocation10], 4
      %s75 = int_to_ptr.vmem [resolvable:$true] %s74
      %80 = dma.hbm_to_vmem [thread:$0]  %s5, 32768, %s75, [#allocation9], 256, 256, 16
    $region25: #{tpu_custom_call.1} parent=1 // pred_fallthru
      _
    // Predicated region
    $region26: #{tpu_custom_call.1} parent=1 // pred_check
      _
    $region27: #{tpu_custom_call.1} parent=1 // pred_check_branch
      %82 = sbr.rel (0) target = $region29
    $region28: #{tpu_custom_call.1} parent=1 // pred_region
      %s84 = ssub.s32 64, 64
      %85 = vsyncadd [#allocation12], %s84
      %s87 = sshll.u32 [#allocation11], 4
      %s88 = int_to_ptr.vmem [resolvable:$true] %s87
      %90 = dma.hbm_to_vmem [thread:$0]  %s6, 64, %s88, [#allocation12]
    $region29: #{tpu_custom_call.1} parent=1 // pred_fallthru
      _
    // Predicated region
    $region30: #{tpu_custom_call.1} parent=1 // pred_check
      _
    $region31: #{tpu_custom_call.1} parent=1 // pred_check_branch
      %92 = sbr.rel (0) target = $region33
    $region32: #{tpu_custom_call.1} parent=1 // pred_region
      %s94 = ssub.s32 8192, 8192
      %95 = vsyncadd [#allocation12], %s94
      %s96 = sshll.u32 [#allocation13], 4
      %s97 = int_to_ptr.vmem [resolvable:$true] %s96
      %102 = dma.hbm_to_vmem [thread:$0]  %s7, 8192, %s97, [#allocation12], 128, 128, 8
    $region33: #{tpu_custom_call.1} parent=1 // pred_fallthru
      _
    // Predicated region
    $region34: #{tpu_custom_call.1} parent=1 // pred_check
      _
    $region35: #{tpu_custom_call.1} parent=1 // pred_check_branch
      %104 = sbr.rel (0) target = $region37
    $region36: #{tpu_custom_call.1} parent=1 // pred_region
      %s106 = ssub.s32 32, 32
      %107 = vsyncadd [#allocation15], %s106
      %s109 = sshll.u32 [#allocation14], 4
      %s110 = int_to_ptr.vmem [resolvable:$true] %s109
      %112 = dma.hbm_to_vmem [thread:$0]  %s8, 32, %s110, [#allocation15]
    $region37: #{tpu_custom_call.1} parent=1 // pred_fallthru
      _
    // Predicated region
    $region38: #{tpu_custom_call.1} parent=1 // pred_check
      _
    $region39: #{tpu_custom_call.1} parent=1 // pred_check_branch
      %114 = sbr.rel (0) target = $region41
    $region40: #{tpu_custom_call.1} parent=1 // pred_region
      %s116 = ssub.s32 32, 32
      %117 = vsyncadd [#allocation15], %s116
      %s119 = sshll.u32 [#allocation16], 4
      %s120 = int_to_ptr.vmem [resolvable:$true] %s119
      %122 = dma.hbm_to_vmem [thread:$0]  %s9, 32, %s120, [#allocation15]
    $region41: #{tpu_custom_call.1} parent=1 // pred_fallthru
      _
    // Predicated region
    $region42: #{tpu_custom_call.1} parent=1 // pred_check
      _
    $region43: #{tpu_custom_call.1} parent=1 // pred_check_branch
      %124 = sbr.rel (0) target = $region45
    $region44: #{tpu_custom_call.1} parent=1 // pred_region
      _
    $region45: #{tpu_custom_call.1} parent=1 // pred_fallthru
      _
    // Predicated region
    $region46: #{tpu_custom_call.1} parent=1 // pred_check
      _
    $region47: #{tpu_custom_call.1} parent=1 // pred_check_branch
      %126 = sbr.rel (0) target = $region49
    $region48: #{tpu_custom_call.1} parent=1 // pred_region
      %127 = dma.done [#allocation4], 896
    $region49: #{tpu_custom_call.1} parent=1 // pred_fallthru
      _
    // Predicated region
    $region50: #{tpu_custom_call.1} parent=1 // pred_check
      _
    $region51: #{tpu_custom_call.1} parent=1 // pred_check_branch
      %129 = sbr.rel (0) target = $region53
    $region52: #{tpu_custom_call.1} parent=1 // pred_region
      %130 = dma.done [#allocation6], 50176
    $region53: #{tpu_custom_call.1} parent=1 // pred_fallthru
      _
    // Predicated region
    $region54: #{tpu_custom_call.1} parent=1 // pred_check
      _
    $region55: #{tpu_custom_call.1} parent=1 // pred_check_branch
      %132 = sbr.rel (0) target = $region57
    $region56: #{tpu_custom_call.1} parent=1 // pred_region
      %133 = dma.done [#allocation6], 1024
    $region57: #{tpu_custom_call.1} parent=1 // pred_fallthru
      _
    // Predicated region
    $region58: #{tpu_custom_call.1} parent=1 // pred_check
      _
    $region59: #{tpu_custom_call.1} parent=1 // pred_check_branch
      %135 = sbr.rel (0) target = $region61
    $region60: #{tpu_custom_call.1} parent=1 // pred_region
      %136 = dma.done [#allocation9], 128
    $region61: #{tpu_custom_call.1} parent=1 // pred_fallthru
      _
    // Predicated region
    $region62: #{tpu_custom_call.1} parent=1 // pred_check
      _
    $region63: #{tpu_custom_call.1} parent=1 // pred_check_branch
      %138 = sbr.rel (0) target = $region65
    $region64: #{tpu_custom_call.1} parent=1 // pred_region
      %139 = dma.done [#allocation9], 32768
    $region65: #{tpu_custom_call.1} parent=1 // pred_fallthru
      _
    // Predicated region
    $region66: #{tpu_custom_call.1} parent=1 // pred_check
      _
    $region67: #{tpu_custom_call.1} parent=1 // pred_check_branch
      %141 = sbr.rel (0) target = $region69
    $region68: #{tpu_custom_call.1} parent=1 // pred_region
      %142 = dma.done [#allocation12], 64
    $region69: #{tpu_custom_call.1} parent=1 // pred_fallthru
      _
    // Predicated region
    $region70: #{tpu_custom_call.1} parent=1 // pred_check
      _
    $region71: #{tpu_custom_call.1} parent=1 // pred_check_branch
      %144 = sbr.rel (0) target = $region73
    $region72: #{tpu_custom_call.1} parent=1 // pred_region
      %145 = dma.done [#allocation12], 8192
    $region73: #{tpu_custom_call.1} parent=1 // pred_fallthru
      _
    // Predicated region
    $region74: #{tpu_custom_call.1} parent=1 // pred_check
      _
    $region75: #{tpu_custom_call.1} parent=1 // pred_check_branch
      %147 = sbr.rel (0) target = $region77
    $region76: #{tpu_custom_call.1} parent=1 // pred_region
      %148 = dma.done [#allocation15], 32
    $region77: #{tpu_custom_call.1} parent=1 // pred_fallthru
      _
    // Predicated region
    $region78: #{tpu_custom_call.1} parent=1 // pred_check
      _
    $region79: #{tpu_custom_call.1} parent=1 // pred_check_branch
      %150 = sbr.rel (0) target = $region81
    $region80: #{tpu_custom_call.1} parent=1 // pred_region
      %151 = dma.done [#allocation15], 32
    $region81: #{tpu_custom_call.1} parent=1 // pred_fallthru
      _
    %v153 = vld [vmem:[%s0] sm:$0xff]
    %v154 = vlaneseq
    %v155 = vand.u32 %v154, 127
    %156 = vset.pattern.permute.xlu0 0
    %157 = vperm.xlu0 %156, %v153
    %v158 = vpop.permute.xlu0 %157
    %vm159 = vcmp.eq.s32.totalorder %v158, %v155
    %v160 = vsel %vm159, 1, 0
    %v161 = vcvt.s32.f32 %v160
    %v162 = vpack.c.bf16 %v161, %v161
    %v163 = vld [vmem:[#allocation3] sm:$0xff]
    %v164 = vld [vmem:[#allocation3 + $0x8] sm:$0xff]
    %v165 = vld [vmem:[#allocation3 + $0x10] sm:$0xff]
    %v166 = vld [vmem:[#allocation3 + $0x18] sm:$0xff]
    %v167 = vld [vmem:[#allocation3 + $0x20] sm:$0xff]
    %v168 = vld [vmem:[#allocation3 + $0x28] sm:$0xff]
    %v169 = vld [vmem:[#allocation3 + $0x30] sm:$0xff]
    %v170 = vpack.c.bf16 %v163, %v163
    %v171 = vpack.c.bf16 %v164, %v164
    %v172 = vpack.c.bf16 %v165, %v165
    %v173 = vpack.c.bf16 %v166, %v166
    %v174 = vpack.c.bf16 %v167, %v167
    %v175 = vpack.c.bf16 %v168, %v168
    %v176 = vpack.c.bf16 %v169, %v169
    %v177 = vld [vmem:[#allocation5] sm:$0xff]
    %v178 = vld [vmem:[#allocation5 + $0x8] sm:$0xff]
    %v179 = vld [vmem:[#allocation5 + $0x10] sm:$0xff]
    %v180 = vld [vmem:[#allocation5 + $0x18] sm:$0xff]
    %v181 = vld [vmem:[#allocation5 + $0x20] sm:$0xff]
    %v182 = vld [vmem:[#allocation5 + $0x28] sm:$0xff]
    %v183 = vld [vmem:[#allocation5 + $0x30] sm:$0xff]
    %v184 = vld [vmem:[#allocation5 + $0x38] sm:$0xff]
    %v185 = vld [vmem:[#allocation5 + $0x40] sm:$0xff]
    %v186 = vld [vmem:[#allocation5 + $0x48] sm:$0xff]
    %v187 = vld [vmem:[#allocation5 + $0x50] sm:$0xff]
    %v188 = vld [vmem:[#allocation5 + $0x58] sm:$0xff]
    %v189 = vld [vmem:[#allocation5 + $0x60] sm:$0xff]
    %v190 = vld [vmem:[#allocation5 + $0x68] sm:$0xff]
    %v191 = vld [vmem:[#allocation5 + $0x70] sm:$0xff]
    %v192 = vld [vmem:[#allocation5 + $0x78] sm:$0xff]
    %v193 = vld [vmem:[#allocation5 + $0x80] sm:$0xff]
    %v194 = vld [vmem:[#allocation5 + $0x88] sm:$0xff]
    %v195 = vld [vmem:[#allocation5 + $0x90] sm:$0xff]
    %v196 = vld [vmem:[#allocation5 + $0x98] sm:$0xff]
    %v197 = vld [vmem:[#allocation5 + $0xa0] sm:$0xff]
    %v198 = vld [vmem:[#allocation5 + $0xa8] sm:$0xff]
    %v199 = vld [vmem:[#allocation5 + $0xb0] sm:$0xff]
    %v200 = vld [vmem:[#allocation5 + $0xb8] sm:$0xff]
    %v201 = vld [vmem:[#allocation5 + $0xc0] sm:$0xff]
    %v202 = vld [vmem:[#allocation5 + $0xc8] sm:$0xff]
    %v203 = vld [vmem:[#allocation5 + $0xd0] sm:$0xff]
    %v204 = vld [vmem:[#allocation5 + $0xd8] sm:$0xff]
    %v205 = vld [vmem:[#allocation5 + $0xe0] sm:$0xff]
    %v206 = vld [vmem:[#allocation5 + $0xe8] sm:$0xff]
    %v207 = vld [vmem:[#allocation5 + $0xf0] sm:$0xff]
    %v208 = vld [vmem:[#allocation5 + $0xf8] sm:$0xff]
    %v209 = vld [vmem:[#allocation5 + $0x100] sm:$0xff]
    %v210 = vld [vmem:[#allocation5 + $0x108] sm:$0xff]
    %v211 = vld [vmem:[#allocation5 + $0x110] sm:$0xff]
    %v212 = vld [vmem:[#allocation5 + $0x118] sm:$0xff]
    %v213 = vld [vmem:[#allocation5 + $0x120] sm:$0xff]
    %v214 = vld [vmem:[#allocation5 + $0x128] sm:$0xff]
    %v215 = vld [vmem:[#allocation5 + $0x130] sm:$0xff]
    %v216 = vld [vmem:[#allocation5 + $0x138] sm:$0xff]
    %v217 = vld [vmem:[#allocation5 + $0x140] sm:$0xff]
    %v218 = vld [vmem:[#allocation5 + $0x148] sm:$0xff]
    %v219 = vld [vmem:[#allocation5 + $0x150] sm:$0xff]
    %v220 = vld [vmem:[#allocation5 + $0x158] sm:$0xff]
    %v221 = vld [vmem:[#allocation5 + $0x160] sm:$0xff]
    %v222 = vld [vmem:[#allocation5 + $0x168] sm:$0xff]
    %v223 = vld [vmem:[#allocation5 + $0x170] sm:$0xff]
    %v224 = vld [vmem:[#allocation5 + $0x178] sm:$0xff]
    %v225 = vld [vmem:[#allocation5 + $0x180] sm:$0xff]
    %v226 = vld [vmem:[#allocation5 + $0x188] sm:$0xff]
    %v227 = vld [vmem:[#allocation5 + $0x190] sm:$0xff]
    %v228 = vld [vmem:[#allocation5 + $0x198] sm:$0xff]
    %v229 = vld [vmem:[#allocation5 + $0x1a0] sm:$0xff]
    %v230 = vld [vmem:[#allocation5 + $0x1a8] sm:$0xff]
    %v231 = vld [vmem:[#allocation5 + $0x1b0] sm:$0xff]
    %v232 = vld [vmem:[#allocation5 + $0x1b8] sm:$0xff]
    %v233 = vld [vmem:[#allocation5 + $0x1c0] sm:$0xff]
    %v234 = vld [vmem:[#allocation5 + $0x1c8] sm:$0xff]
    %v235 = vld [vmem:[#allocation5 + $0x1d0] sm:$0xff]
    %v236 = vld [vmem:[#allocation5 + $0x1d8] sm:$0xff]
    %v237 = vld [vmem:[#allocation5 + $0x1e0] sm:$0xff]
    %v238 = vld [vmem:[#allocation5 + $0x1e8] sm:$0xff]
    %v239 = vld [vmem:[#allocation5 + $0x1f0] sm:$0xff]
    %v240 = vld [vmem:[#allocation5 + $0x1f8] sm:$0xff]
    %v241 = vld [vmem:[#allocation5 + $0x200] sm:$0xff]
    %v242 = vld [vmem:[#allocation5 + $0x208] sm:$0xff]
    %v243 = vld [vmem:[#allocation5 + $0x210] sm:$0xff]
    %v244 = vld [vmem:[#allocation5 + $0x218] sm:$0xff]
    %v245 = vld [vmem:[#allocation5 + $0x220] sm:$0xff]
    %v246 = vld [vmem:[#allocation5 + $0x228] sm:$0xff]
    %v247 = vld [vmem:[#allocation5 + $0x230] sm:$0xff]
    %v248 = vld [vmem:[#allocation5 + $0x238] sm:$0xff]
    %v249 = vld [vmem:[#allocation5 + $0x240] sm:$0xff]
    %v250 = vld [vmem:[#allocation5 + $0x248] sm:$0xff]
    %v251 = vld [vmem:[#allocation5 + $0x250] sm:$0xff]
    %v252 = vld [vmem:[#allocation5 + $0x258] sm:$0xff]
    %v253 = vld [vmem:[#allocation5 + $0x260] sm:$0xff]
    %v254 = vld [vmem:[#allocation5 + $0x268] sm:$0xff]
    %v255 = vld [vmem:[#allocation5 + $0x270] sm:$0xff]
    %v256 = vld [vmem:[#allocation5 + $0x278] sm:$0xff]
    %v257 = vld [vmem:[#allocation5 + $0x280] sm:$0xff]
    %v258 = vld [vmem:[#allocation5 + $0x288] sm:$0xff]
    %v259 = vld [vmem:[#allocation5 + $0x290] sm:$0xff]
    %v260 = vld [vmem:[#allocation5 + $0x298] sm:$0xff]
    %v261 = vld [vmem:[#allocation5 + $0x2a0] sm:$0xff]
    %v262 = vld [vmem:[#allocation5 + $0x2a8] sm:$0xff]
    %v263 = vld [vmem:[#allocation5 + $0x2b0] sm:$0xff]
    %v264 = vld [vmem:[#allocation5 + $0x2b8] sm:$0xff]
    %v265 = vld [vmem:[#allocation5 + $0x2c0] sm:$0xff]
    %v266 = vld [vmem:[#allocation5 + $0x2c8] sm:$0xff]
    %v267 = vld [vmem:[#allocation5 + $0x2d0] sm:$0xff]
    %v268 = vld [vmem:[#allocation5 + $0x2d8] sm:$0xff]
    %v269 = vld [vmem:[#allocation5 + $0x2e0] sm:$0xff]
    %v270 = vld [vmem:[#allocation5 + $0x2e8] sm:$0xff]
    %v271 = vld [vmem:[#allocation5 + $0x2f0] sm:$0xff]
    %v272 = vld [vmem:[#allocation5 + $0x2f8] sm:$0xff]
    %v273 = vld [vmem:[#allocation5 + $0x300] sm:$0xff]
    %v274 = vld [vmem:[#allocation5 + $0x308] sm:$0xff]
    %v275 = vld [vmem:[#allocation5 + $0x310] sm:$0xff]
    %v276 = vld [vmem:[#allocation5 + $0x318] sm:$0xff]
    %v277 = vld [vmem:[#allocation5 + $0x320] sm:$0xff]
    %v278 = vld [vmem:[#allocation5 + $0x328] sm:$0xff]
    %v279 = vld [vmem:[#allocation5 + $0x330] sm:$0xff]
    %v280 = vld [vmem:[#allocation5 + $0x338] sm:$0xff]
    %v281 = vld [vmem:[#allocation5 + $0x340] sm:$0xff]
    %v282 = vld [vmem:[#allocation5 + $0x348] sm:$0xff]
    %v283 = vld [vmem:[#allocation5 + $0x350] sm:$0xff]
    %v284 = vld [vmem:[#allocation5 + $0x358] sm:$0xff]
    %v285 = vld [vmem:[#allocation5 + $0x360] sm:$0xff]
    %v286 = vld [vmem:[#allocation5 + $0x368] sm:$0xff]
    %v287 = vld [vmem:[#allocation5 + $0x370] sm:$0xff]
    %v288 = vld [vmem:[#allocation5 + $0x378] sm:$0xff]
    %v289 = vld [vmem:[#allocation5 + $0x380] sm:$0xff]
    %v290 = vld [vmem:[#allocation5 + $0x388] sm:$0xff]
    %v291 = vld [vmem:[#allocation5 + $0x390] sm:$0xff]
    %v292 = vld [vmem:[#allocation5 + $0x398] sm:$0xff]
    %v293 = vld [vmem:[#allocation5 + $0x3a0] sm:$0xff]
    %v294 = vld [vmem:[#allocation5 + $0x3a8] sm:$0xff]
    %v295 = vld [vmem:[#allocation5 + $0x3b0] sm:$0xff]
    %v296 = vld [vmem:[#allocation5 + $0x3b8] sm:$0xff]
    %v297 = vld [vmem:[#allocation5 + $0x3c0] sm:$0xff]
    %v298 = vld [vmem:[#allocation5 + $0x3c8] sm:$0xff]
    %v299 = vld [vmem:[#allocation5 + $0x3d0] sm:$0xff]
    %v300 = vld [vmem:[#allocation5 + $0x3d8] sm:$0xff]
    %v301 = vld [vmem:[#allocation5 + $0x3e0] sm:$0xff]
    %v302 = vld [vmem:[#allocation5 + $0x3e8] sm:$0xff]
    %v303 = vld [vmem:[#allocation5 + $0x3f0] sm:$0xff]
    %v304 = vld [vmem:[#allocation5 + $0x3f8] sm:$0xff]
    %v305 = vld [vmem:[#allocation5 + $0x400] sm:$0xff]
    %v306 = vld [vmem:[#allocation5 + $0x408] sm:$0xff]
    %v307 = vld [vmem:[#allocation5 + $0x410] sm:$0xff]
    %v308 = vld [vmem:[#allocation5 + $0x418] sm:$0xff]
    %v309 = vld [vmem:[#allocation5 + $0x420] sm:$0xff]
    %v310 = vld [vmem:[#allocation5 + $0x428] sm:$0xff]
    %v311 = vld [vmem:[#allocation5 + $0x430] sm:$0xff]
    %v312 = vld [vmem:[#allocation5 + $0x438] sm:$0xff]
    %v313 = vld [vmem:[#allocation5 + $0x440] sm:$0xff]
    %v314 = vld [vmem:[#allocation5 + $0x448] sm:$0xff]
    %v315 = vld [vmem:[#allocation5 + $0x450] sm:$0xff]
    %v316 = vld [vmem:[#allocation5 + $0x458] sm:$0xff]
    %v317 = vld [vmem:[#allocation5 + $0x460] sm:$0xff]
    %v318 = vld [vmem:[#allocation5 + $0x468] sm:$0xff]
    %v319 = vld [vmem:[#allocation5 + $0x470] sm:$0xff]
    %v320 = vld [vmem:[#allocation5 + $0x478] sm:$0xff]
    %v321 = vld [vmem:[#allocation5 + $0x480] sm:$0xff]
    %v322 = vld [vmem:[#allocation5 + $0x488] sm:$0xff]
    %v323 = vld [vmem:[#allocation5 + $0x490] sm:$0xff]
    %v324 = vld [vmem:[#allocation5 + $0x498] sm:$0xff]
    %v325 = vld [vmem:[#allocation5 + $0x4a0] sm:$0xff]
    %v326 = vld [vmem:[#allocation5 + $0x4a8] sm:$0xff]
    %v327 = vld [vmem:[#allocation5 + $0x4b0] sm:$0xff]
    %v328 = vld [vmem:[#allocation5 + $0x4b8] sm:$0xff]
    %v329 = vld [vmem:[#allocation5 + $0x4c0] sm:$0xff]
    %v330 = vld [vmem:[#allocation5 + $0x4c8] sm:$0xff]
    %v331 = vld [vmem:[#allocation5 + $0x4d0] sm:$0xff]
    %v332 = vld [vmem:[#allocation5 + $0x4d8] sm:$0xff]
    %v333 = vld [vmem:[#allocation5 + $0x4e0] sm:$0xff]
    %v334 = vld [vmem:[#allocation5 + $0x4e8] sm:$0xff]
    %v335 = vld [vmem:[#allocation5 + $0x4f0] sm:$0xff]
    %v336 = vld [vmem:[#allocation5 + $0x4f8] sm:$0xff]
    %v337 = vld [vmem:[#allocation5 + $0x500] sm:$0xff]
    %v338 = vld [vmem:[#allocation5 + $0x508] sm:$0xff]
    %v339 = vld [vmem:[#allocation5 + $0x510] sm:$0xff]
    %v340 = vld [vmem:[#allocation5 + $0x518] sm:$0xff]
    %v341 = vld [vmem:[#allocation5 + $0x520] sm:$0xff]
    %v342 = vld [vmem:[#allocation5 + $0x528] sm:$0xff]
    %v343 = vld [vmem:[#allocation5 + $0x530] sm:$0xff]
    %v344 = vld [vmem:[#allocation5 + $0x538] sm:$0xff]
    %v345 = vld [vmem:[#allocation5 + $0x540] sm:$0xff]
    %v346 = vld [vmem:[#allocation5 + $0x548] sm:$0xff]
    %v347 = vld [vmem:[#allocation5 + $0x550] sm:$0xff]
    %v348 = vld [vmem:[#allocation5 + $0x558] sm:$0xff]
    %v349 = vld [vmem:[#allocation5 + $0x560] sm:$0xff]
    %v350 = vld [vmem:[#allocation5 + $0x568] sm:$0xff]
    %v351 = vld [vmem:[#allocation5 + $0x570] sm:$0xff]
    %v352 = vld [vmem:[#allocation5 + $0x578] sm:$0xff]
    %v353 = vld [vmem:[#allocation5 + $0x580] sm:$0xff]
    %v354 = vld [vmem:[#allocation5 + $0x588] sm:$0xff]
    %v355 = vld [vmem:[#allocation5 + $0x590] sm:$0xff]
    %v356 = vld [vmem:[#allocation5 + $0x598] sm:$0xff]
    %v357 = vld [vmem:[#allocation5 + $0x5a0] sm:$0xff]
    %v358 = vld [vmem:[#allocation5 + $0x5a8] sm:$0xff]
    %v359 = vld [vmem:[#allocation5 + $0x5b0] sm:$0xff]
    %v360 = vld [vmem:[#allocation5 + $0x5b8] sm:$0xff]
    %v361 = vld [vmem:[#allocation5 + $0x5c0] sm:$0xff]
    %v362 = vld [vmem:[#allocation5 + $0x5c8] sm:$0xff]
    %v363 = vld [vmem:[#allocation5 + $0x5d0] sm:$0xff]
    %v364 = vld [vmem:[#allocation5 + $0x5d8] sm:$0xff]
    %v365 = vld [vmem:[#allocation5 + $0x5e0] sm:$0xff]
    %v366 = vld [vmem:[#allocation5 + $0x5e8] sm:$0xff]
    %v367 = vld [vmem:[#allocation5 + $0x5f0] sm:$0xff]
    %v368 = vld [vmem:[#allocation5 + $0x5f8] sm:$0xff]
    %v369 = vld [vmem:[#allocation5 + $0x600] sm:$0xff]
    %v370 = vld [vmem:[#allocation5 + $0x608] sm:$0xff]
    %v371 = vld [vmem:[#allocation5 + $0x610] sm:$0xff]
    %v372 = vld [vmem:[#allocation5 + $0x618] sm:$0xff]
    %v373 = vld [vmem:[#allocation5 + $0x620] sm:$0xff]
    %v374 = vld [vmem:[#allocation5 + $0x628] sm:$0xff]
    %v375 = vld [vmem:[#allocation5 + $0x630] sm:$0xff]
    %v376 = vld [vmem:[#allocation5 + $0x638] sm:$0xff]
    %v377 = vld [vmem:[#allocation5 + $0x640] sm:$0xff]
    %v378 = vld [vmem:[#allocation5 + $0x648] sm:$0xff]
    %v379 = vld [vmem:[#allocation5 + $0x650] sm:$0xff]
    %v380 = vld [vmem:[#allocation5 + $0x658] sm:$0xff]
    %v381 = vld [vmem:[#allocation5 + $0x660] sm:$0xff]
    %v382 = vld [vmem:[#allocation5 + $0x668] sm:$0xff]
    %v383 = vld [vmem:[#allocation5 + $0x670] sm:$0xff]
    %v384 = vld [vmem:[#allocation5 + $0x678] sm:$0xff]
    %v385 = vld [vmem:[#allocation5 + $0x680] sm:$0xff]
    %v386 = vld [vmem:[#allocation5 + $0x688] sm:$0xff]
    %v387 = vld [vmem:[#allocation5 + $0x690] sm:$0xff]
    %v388 = vld [vmem:[#allocation5 + $0x698] sm:$0xff]
    %v389 = vld [vmem:[#allocation5 + $0x6a0] sm:$0xff]
    %v390 = vld [vmem:[#allocation5 + $0x6a8] sm:$0xff]
    %v391 = vld [vmem:[#allocation5 + $0x6b0] sm:$0xff]
    %v392 = vld [vmem:[#allocation5 + $0x6b8] sm:$0xff]
    %v393 = vld [vmem:[#allocation5 + $0x6c0] sm:$0xff]
    %v394 = vld [vmem:[#allocation5 + $0x6c8] sm:$0xff]
    %v395 = vld [vmem:[#allocation5 + $0x6d0] sm:$0xff]
    %v396 = vld [vmem:[#allocation5 + $0x6d8] sm:$0xff]
    %v397 = vld [vmem:[#allocation5 + $0x6e0] sm:$0xff]
    %v398 = vld [vmem:[#allocation5 + $0x6e8] sm:$0xff]
    %v399 = vld [vmem:[#allocation5 + $0x6f0] sm:$0xff]
    %v400 = vld [vmem:[#allocation5 + $0x6f8] sm:$0xff]
    %v401 = vld [vmem:[#allocation5 + $0x700] sm:$0xff]
    %v402 = vld [vmem:[#allocation5 + $0x708] sm:$0xff]
    %v403 = vld [vmem:[#allocation5 + $0x710] sm:$0xff]
    %v404 = vld [vmem:[#allocation5 + $0x718] sm:$0xff]
    %v405 = vld [vmem:[#allocation5 + $0x720] sm:$0xff]
    %v406 = vld [vmem:[#allocation5 + $0x728] sm:$0xff]
    %v407 = vld [vmem:[#allocation5 + $0x730] sm:$0xff]
    %v408 = vld [vmem:[#allocation5 + $0x738] sm:$0xff]
    %v409 = vld [vmem:[#allocation5 + $0x740] sm:$0xff]
    %v410 = vld [vmem:[#allocation5 + $0x748] sm:$0xff]
    %v411 = vld [vmem:[#allocation5 + $0x750] sm:$0xff]
    %v412 = vld [vmem:[#allocation5 + $0x758] sm:$0xff]
    %v413 = vld [vmem:[#allocation5 + $0x760] sm:$0xff]
    %v414 = vld [vmem:[#allocation5 + $0x768] sm:$0xff]
    %v415 = vld [vmem:[#allocation5 + $0x770] sm:$0xff]
    %v416 = vld [vmem:[#allocation5 + $0x778] sm:$0xff]
    %v417 = vld [vmem:[#allocation5 + $0x780] sm:$0xff]
    %v418 = vld [vmem:[#allocation5 + $0x788] sm:$0xff]
    %v419 = vld [vmem:[#allocation5 + $0x790] sm:$0xff]
    %v420 = vld [vmem:[#allocation5 + $0x798] sm:$0xff]
    %v421 = vld [vmem:[#allocation5 + $0x7a0] sm:$0xff]
    %v422 = vld [vmem:[#allocation5 + $0x7a8] sm:$0xff]
    %v423 = vld [vmem:[#allocation5 + $0x7b0] sm:$0xff]
    %v424 = vld [vmem:[#allocation5 + $0x7b8] sm:$0xff]
    %v425 = vld [vmem:[#allocation5 + $0x7c0] sm:$0xff]
    %v426 = vld [vmem:[#allocation5 + $0x7c8] sm:$0xff]
    %v427 = vld [vmem:[#allocation5 + $0x7d0] sm:$0xff]
    %v428 = vld [vmem:[#allocation5 + $0x7d8] sm:$0xff]
    %v429 = vld [vmem:[#allocation5 + $0x7e0] sm:$0xff]
    %v430 = vld [vmem:[#allocation5 + $0x7e8] sm:$0xff]
    %v431 = vld [vmem:[#allocation5 + $0x7f0] sm:$0xff]
    %v432 = vld [vmem:[#allocation5 + $0x7f8] sm:$0xff]
    %v433 = vld [vmem:[#allocation5 + $0x800] sm:$0xff]
    %v434 = vld [vmem:[#allocation5 + $0x808] sm:$0xff]
    %v435 = vld [vmem:[#allocation5 + $0x810] sm:$0xff]
    %v436 = vld [vmem:[#allocation5 + $0x818] sm:$0xff]
    %v437 = vld [vmem:[#allocation5 + $0x820] sm:$0xff]
    %v438 = vld [vmem:[#allocation5 + $0x828] sm:$0xff]
    %v439 = vld [vmem:[#allocation5 + $0x830] sm:$0xff]
    %v440 = vld [vmem:[#allocation5 + $0x838] sm:$0xff]
    %v441 = vld [vmem:[#allocation5 + $0x840] sm:$0xff]
    %v442 = vld [vmem:[#allocation5 + $0x848] sm:$0xff]
    %v443 = vld [vmem:[#allocation5 + $0x850] sm:$0xff]
    %v444 = vld [vmem:[#allocation5 + $0x858] sm:$0xff]
    %v445 = vld [vmem:[#allocation5 + $0x860] sm:$0xff]
    %v446 = vld [vmem:[#allocation5 + $0x868] sm:$0xff]
    %v447 = vld [vmem:[#allocation5 + $0x870] sm:$0xff]
    %v448 = vld [vmem:[#allocation5 + $0x878] sm:$0xff]
    %v449 = vld [vmem:[#allocation5 + $0x880] sm:$0xff]
    %v450 = vld [vmem:[#allocation5 + $0x888] sm:$0xff]
    %v451 = vld [vmem:[#allocation5 + $0x890] sm:$0xff]
    %v452 = vld [vmem:[#allocation5 + $0x898] sm:$0xff]
    %v453 = vld [vmem:[#allocation5 + $0x8a0] sm:$0xff]
    %v454 = vld [vmem:[#allocation5 + $0x8a8] sm:$0xff]
    %v455 = vld [vmem:[#allocation5 + $0x8b0] sm:$0xff]
    %v456 = vld [vmem:[#allocation5 + $0x8b8] sm:$0xff]
    %v457 = vld [vmem:[#allocation5 + $0x8c0] sm:$0xff]
    %v458 = vld [vmem:[#allocation5 + $0x8c8] sm:$0xff]
    %v459 = vld [vmem:[#allocation5 + $0x8d0] sm:$0xff]
    %v460 = vld [vmem:[#allocation5 + $0x8d8] sm:$0xff]
    %v461 = vld [vmem:[#allocation5 + $0x8e0] sm:$0xff]
    %v462 = vld [vmem:[#allocation5 + $0x8e8] sm:$0xff]
    %v463 = vld [vmem:[#allocation5 + $0x8f0] sm:$0xff]
    %v464 = vld [vmem:[#allocation5 + $0x8f8] sm:$0xff]
    %v465 = vld [vmem:[#allocation5 + $0x900] sm:$0xff]
    %v466 = vld [vmem:[#allocation5 + $0x908] sm:$0xff]
    %v467 = vld [vmem:[#allocation5 + $0x910] sm:$0xff]
    %v468 = vld [vmem:[#allocation5 + $0x918] sm:$0xff]
    %v469 = vld [vmem:[#allocation5 + $0x920] sm:$0xff]
    %v470 = vld [vmem:[#allocation5 + $0x928] sm:$0xff]
    %v471 = vld [vmem:[#allocation5 + $0x930] sm:$0xff]
    %v472 = vld [vmem:[#allocation5 + $0x938] sm:$0xff]
    %v473 = vld [vmem:[#allocation5 + $0x940] sm:$0xff]
    %v474 = vld [vmem:[#allocation5 + $0x948] sm:$0xff]
    %v475 = vld [vmem:[#allocation5 + $0x950] sm:$0xff]
    %v476 = vld [vmem:[#allocation5 + $0x958] sm:$0xff]
    %v477 = vld [vmem:[#allocation5 + $0x960] sm:$0xff]
    %v478 = vld [vmem:[#allocation5 + $0x968] sm:$0xff]
    %v479 = vld [vmem:[#allocation5 + $0x970] sm:$0xff]
    %v480 = vld [vmem:[#allocation5 + $0x978] sm:$0xff]
    %v481 = vld [vmem:[#allocation5 + $0x980] sm:$0xff]
    %v482 = vld [vmem:[#allocation5 + $0x988] sm:$0xff]
    %v483 = vld [vmem:[#allocation5 + $0x990] sm:$0xff]
    %v484 = vld [vmem:[#allocation5 + $0x998] sm:$0xff]
    %v485 = vld [vmem:[#allocation5 + $0x9a0] sm:$0xff]
    %v486 = vld [vmem:[#allocation5 + $0x9a8] sm:$0xff]
    %v487 = vld [vmem:[#allocation5 + $0x9b0] sm:$0xff]
    %v488 = vld [vmem:[#allocation5 + $0x9b8] sm:$0xff]
    %v489 = vld [vmem:[#allocation5 + $0x9c0] sm:$0xff]
    %v490 = vld [vmem:[#allocation5 + $0x9c8] sm:$0xff]
    %v491 = vld [vmem:[#allocation5 + $0x9d0] sm:$0xff]
    %v492 = vld [vmem:[#allocation5 + $0x9d8] sm:$0xff]
    %v493 = vld [vmem:[#allocation5 + $0x9e0] sm:$0xff]
    %v494 = vld [vmem:[#allocation5 + $0x9e8] sm:$0xff]
    %v495 = vld [vmem:[#allocation5 + $0x9f0] sm:$0xff]
    %v496 = vld [vmem:[#allocation5 + $0x9f8] sm:$0xff]
    %v497 = vld [vmem:[#allocation5 + $0xa00] sm:$0xff]
    %v498 = vld [vmem:[#allocation5 + $0xa08] sm:$0xff]
    %v499 = vld [vmem:[#allocation5 + $0xa10] sm:$0xff]
    %v500 = vld [vmem:[#allocation5 + $0xa18] sm:$0xff]
    %v501 = vld [vmem:[#allocation5 + $0xa20] sm:$0xff]
    %v502 = vld [vmem:[#allocation5 + $0xa28] sm:$0xff]
    %v503 = vld [vmem:[#allocation5 + $0xa30] sm:$0xff]
    %v504 = vld [vmem:[#allocation5 + $0xa38] sm:$0xff]
    %v505 = vld [vmem:[#allocation5 + $0xa40] sm:$0xff]
    %v506 = vld [vmem:[#allocation5 + $0xa48] sm:$0xff]
    %v507 = vld [vmem:[#allocation5 + $0xa50] sm:$0xff]
    %v508 = vld [vmem:[#allocation5 + $0xa58] sm:$0xff]
    %v509 = vld [vmem:[#allocation5 + $0xa60] sm:$0xff]
    %v510 = vld [vmem:[#allocation5 + $0xa68] sm:$0xff]
    %v511 = vld [vmem:[#allocation5 + $0xa70] sm:$0xff]
    %v512 = vld [vmem:[#allocation5 + $0xa78] sm:$0xff]
    %v513 = vld [vmem:[#allocation5 + $0xa80] sm:$0xff]
    %v514 = vld [vmem:[#allocation5 + $0xa88] sm:$0xff]
    %v515 = vld [vmem:[#allocation5 + $0xa90] sm:$0xff]
    %v516 = vld [vmem:[#allocation5 + $0xa98] sm:$0xff]
    %v517 = vld [vmem:[#allocation5 + $0xaa0] sm:$0xff]
    %v518 = vld [vmem:[#allocation5 + $0xaa8] sm:$0xff]
    %v519 = vld [vmem:[#allocation5 + $0xab0] sm:$0xff]
    %v520 = vld [vmem:[#allocation5 + $0xab8] sm:$0xff]
    %v521 = vld [vmem:[#allocation5 + $0xac0] sm:$0xff]
    %v522 = vld [vmem:[#allocation5 + $0xac8] sm:$0xff]
    %v523 = vld [vmem:[#allocation5 + $0xad0] sm:$0xff]
    %v524 = vld [vmem:[#allocation5 + $0xad8] sm:$0xff]
    %v525 = vld [vmem:[#allocation5 + $0xae0] sm:$0xff]
    %v526 = vld [vmem:[#allocation5 + $0xae8] sm:$0xff]
    %v527 = vld [vmem:[#allocation5 + $0xaf0] sm:$0xff]
    %v528 = vld [vmem:[#allocation5 + $0xaf8] sm:$0xff]
    %v529 = vld [vmem:[#allocation5 + $0xb00] sm:$0xff]
    %v530 = vld [vmem:[#allocation5 + $0xb08] sm:$0xff]
    %v531 = vld [vmem:[#allocation5 + $0xb10] sm:$0xff]
    %v532 = vld [vmem:[#allocation5 + $0xb18] sm:$0xff]
    %v533 = vld [vmem:[#allocation5 + $0xb20] sm:$0xff]
    %v534 = vld [vmem:[#allocation5 + $0xb28] sm:$0xff]
    %v535 = vld [vmem:[#allocation5 + $0xb30] sm:$0xff]
    %v536 = vld [vmem:[#allocation5 + $0xb38] sm:$0xff]
    %v537 = vld [vmem:[#allocation5 + $0xb40] sm:$0xff]
    %v538 = vld [vmem:[#allocation5 + $0xb48] sm:$0xff]
    %v539 = vld [vmem:[#allocation5 + $0xb50] sm:$0xff]
    %v540 = vld [vmem:[#allocation5 + $0xb58] sm:$0xff]
    %v541 = vld [vmem:[#allocation5 + $0xb60] sm:$0xff]
    %v542 = vld [vmem:[#allocation5 + $0xb68] sm:$0xff]
    %v543 = vld [vmem:[#allocation5 + $0xb70] sm:$0xff]
    %v544 = vld [vmem:[#allocation5 + $0xb78] sm:$0xff]
    %v545 = vld [vmem:[#allocation5 + $0xb80] sm:$0xff]
    %v546 = vld [vmem:[#allocation5 + $0xb88] sm:$0xff]
    %v547 = vld [vmem:[#allocation5 + $0xb90] sm:$0xff]
    %v548 = vld [vmem:[#allocation5 + $0xb98] sm:$0xff]
    %v549 = vld [vmem:[#allocation5 + $0xba0] sm:$0xff]
    %v550 = vld [vmem:[#allocation5 + $0xba8] sm:$0xff]
    %v551 = vld [vmem:[#allocation5 + $0xbb0] sm:$0xff]
    %v552 = vld [vmem:[#allocation5 + $0xbb8] sm:$0xff]
    %v553 = vld [vmem:[#allocation5 + $0xbc0] sm:$0xff]
    %v554 = vld [vmem:[#allocation5 + $0xbc8] sm:$0xff]
    %v555 = vld [vmem:[#allocation5 + $0xbd0] sm:$0xff]
    %v556 = vld [vmem:[#allocation5 + $0xbd8] sm:$0xff]
    %v557 = vld [vmem:[#allocation5 + $0xbe0] sm:$0xff]
    %v558 = vld [vmem:[#allocation5 + $0xbe8] sm:$0xff]
    %v559 = vld [vmem:[#allocation5 + $0xbf0] sm:$0xff]
    %v560 = vld [vmem:[#allocation5 + $0xbf8] sm:$0xff]
    %v561 = vld [vmem:[#allocation5 + $0xc00] sm:$0xff]
    %v562 = vld [vmem:[#allocation5 + $0xc08] sm:$0xff]
    %v563 = vld [vmem:[#allocation5 + $0xc10] sm:$0xff]
    %v564 = vld [vmem:[#allocation5 + $0xc18] sm:$0xff]
    %v565 = vld [vmem:[#allocation5 + $0xc20] sm:$0xff]
    %v566 = vld [vmem:[#allocation5 + $0xc28] sm:$0xff]
    %v567 = vld [vmem:[#allocation5 + $0xc30] sm:$0xff]
    %v568 = vld [vmem:[#allocation5 + $0xc38] sm:$0xff]
    %v569 = vld [vmem:[#allocation7] sm:$0xff]
    %v570 = vld [vmem:[#allocation7 + $0x8] sm:$0xff]
    %v571 = vld [vmem:[#allocation7 + $0x10] sm:$0xff]
    %v572 = vld [vmem:[#allocation7 + $0x18] sm:$0xff]
    %v573 = vld [vmem:[#allocation7 + $0x20] sm:$0xff]
    %v574 = vld [vmem:[#allocation7 + $0x28] sm:$0xff]
    %v575 = vld [vmem:[#allocation7 + $0x30] sm:$0xff]
    %v576 = vld [vmem:[#allocation7 + $0x38] sm:$0xff]
    %v585 = vunpack.c.l.b16 %v569
    %v586 = vunpack.c.h.b16 %v569
    %v587 = vunpack.c.l.b16 %v570
    %v588 = vunpack.c.h.b16 %v570
    %v589 = vunpack.c.l.b16 %v571
    %v590 = vunpack.c.h.b16 %v571
    %v591 = vunpack.c.l.b16 %v572
    %v592 = vunpack.c.h.b16 %v572
    %v593 = vunpack.c.l.b16 %v573
    %v594 = vunpack.c.h.b16 %v573
    %v595 = vunpack.c.l.b16 %v574
    %v596 = vunpack.c.h.b16 %v574
    %v597 = vunpack.c.l.b16 %v575
    %v598 = vunpack.c.h.b16 %v575
    %v599 = vunpack.c.l.b16 %v576
    %v600 = vunpack.c.h.b16 %v576
    %v601 = vpack.c.b16 %v593, %v585
    %v602 = vpack.c.b16 %v594, %v586
    %v603 = vpack.c.b16 %v595, %v587
    %v604 = vpack.c.b16 %v596, %v588
    %v605 = vpack.c.b16 %v597, %v589
    %v606 = vpack.c.b16 %v598, %v590
    %v607 = vpack.c.b16 %v599, %v591
    %v608 = vpack.c.b16 %v600, %v592
    %vm617 = vcmask 130048
    %v619 = vsel %vm617, %v162, 0
    %621 = vmatprep.subr.bf16.mxu0 0
    %622 = vmatpush1.bf16.msra.mxu0 0
    %623 = vmatprep.subr.bf16.mxu0 0
    %624 = vmatpush1.bf16.msra.mxu0 0
    %625 = vmatprep.subr.bf16.mxu0 0
    %626 = vmatpush1.bf16.msra.mxu0 0
    %627 = vmatprep.subr.bf16.mxu0 0
    %628 = vmatpush1.bf16.msra.mxu0 0
    %629 = vmatprep.subr.bf16.mxu0 0
    %630 = vmatpush1.bf16.msra.mxu0 0
    %631 = vmatprep.subr.bf16.mxu0 0
    %632 = vmatpush1.bf16.msra.mxu0 0
    %633 = vmatprep.subr.bf16.mxu0 0
    %634 = vmatpush1.bf16.msra.mxu0 0
    %635 = vmatprep.subr.bf16.mxu0 %v602
    %636 = vmatpush1.bf16.msra.mxu0 %v601
    %637 = vmatprep.subr.bf16.mxu0 0
    %638 = vmatpush2.bf16.msra.mxu0 0
    %639 = vmatprep.subr.bf16.mxu0 0
    %640 = vmatpush2.bf16.msra.mxu0 0
    %641 = vmatprep.subr.bf16.mxu0 0
    %642 = vmatpush2.bf16.msra.mxu0 0
    %643 = vmatprep.subr.bf16.mxu0 0
    %644 = vmatpush2.bf16.msra.mxu0 0
    %645 = vmatprep.subr.bf16.mxu0 0
    %646 = vmatpush2.bf16.msra.mxu0 0
    %647 = vmatprep.subr.bf16.mxu0 0
    %648 = vmatpush2.bf16.msra.mxu0 0
    %649 = vmatprep.subr.bf16.mxu0 0
    %650 = vmatpush2.bf16.msra.mxu0 0
    %651 = vmatprep.subr.bf16.mxu0 0
    %652 = vmatpush2.bf16.msra.mxu0 0
    %653 = vmatprep.mubr.bf16.mxu0 0
    %654 = vmatmul.mubr.bf16.gmra.mxu0 %v619
    %v655 = vpop.f32.mrf.mxu0
    %v656 = vadd.f32 0.0, %v655
    %v657 = vpop.f32.mrf.mxu0
    %v658 = vadd.f32 0.0, %v657
    %v659 = vpop.f32.mrf.mxu0
    %v660 = vpop.f32.mrf.mxu0
    %661 = vdwg.mxu0
    %662 = vmatprep.subr.bf16.mxu0 0
    %663 = vmatpush1.bf16.msra.mxu0 0
    %664 = vmatprep.subr.bf16.mxu0 0
    %665 = vmatpush1.bf16.msra.mxu0 0
    %666 = vmatprep.subr.bf16.mxu0 0
    %667 = vmatpush1.bf16.msra.mxu0 0
    %668 = vmatprep.subr.bf16.mxu0 0
    %669 = vmatpush1.bf16.msra.mxu0 0
    %670 = vmatprep.subr.bf16.mxu0 0
    %671 = vmatpush1.bf16.msra.mxu0 0
    %672 = vmatprep.subr.bf16.mxu0 0
    %673 = vmatpush1.bf16.msra.mxu0 0
    %674 = vmatprep.subr.bf16.mxu0 0
    %675 = vmatpush1.bf16.msra.mxu0 0
    %676 = vmatprep.subr.bf16.mxu0 %v604
    %677 = vmatpush1.bf16.msra.mxu0 %v603
    %678 = vmatprep.subr.bf16.mxu0 0
    %679 = vmatpush2.bf16.msra.mxu0 0
    %680 = vmatprep.subr.bf16.mxu0 0
    %681 = vmatpush2.bf16.msra.mxu0 0
    %682 = vmatprep.subr.bf16.mxu0 0
    %683 = vmatpush2.bf16.msra.mxu0 0
    %684 = vmatprep.subr.bf16.mxu0 0
    %685 = vmatpush2.bf16.msra.mxu0 0
    %686 = vmatprep.subr.bf16.mxu0 0
    %687 = vmatpush2.bf16.msra.mxu0 0
    %688 = vmatprep.subr.bf16.mxu0 0
    %689 = vmatpush2.bf16.msra.mxu0 0
    %690 = vmatprep.subr.bf16.mxu0 0
    %691 = vmatpush2.bf16.msra.mxu0 0
    %692 = vmatprep.subr.bf16.mxu0 0
    %693 = vmatpush2.bf16.msra.mxu0 0
    %694 = vmatprep.mubr.bf16.mxu0 0
    %695 = vmatmul.mubr.bf16.gmra.mxu0 %v619
    %v696 = vpop.f32.mrf.mxu0
    %v697 = vadd.f32 0.0, %v696
    %v698 = vpop.f32.mrf.mxu0
    %v699 = vadd.f32 0.0, %v698
    %v700 = vpop.f32.mrf.mxu0
    %v701 = vpop.f32.mrf.mxu0
    %702 = vdwg.mxu0
    %703 = vmatprep.subr.bf16.mxu0 0
    %704 = vmatpush1.bf16.msra.mxu0 0
    %705 = vmatprep.subr.bf16.mxu0 0
    %706 = vmatpush1.bf16.msra.mxu0 0
    %707 = vmatprep.subr.bf16.mxu0 0
    %708 = vmatpush1.bf16.msra.mxu0 0
    %709 = vmatprep.subr.bf16.mxu0 0
    %710 = vmatpush1.bf16.msra.mxu0 0
    %711 = vmatprep.subr.bf16.mxu0 0
    %712 = vmatpush1.bf16.msra.mxu0 0
    %713 = vmatprep.subr.bf16.mxu0 0
    %714 = vmatpush1.bf16.msra.mxu0 0
    %715 = vmatprep.subr.bf16.mxu0 0
    %716 = vmatpush1.bf16.msra.mxu0 0
    %717 = vmatprep.subr.bf16.mxu0 %v606
    %718 = vmatpush1.bf16.msra.mxu0 %v605
    %719 = vmatprep.subr.bf16.mxu0 0
    %720 = vmatpush2.bf16.msra.mxu0 0
    %721 = vmatprep.subr.bf16.mxu0 0
    %722 = vmatpush2.bf16.msra.mxu0 0
    %723 = vmatprep.subr.bf16.mxu0 0
    %724 = vmatpush2.bf16.msra.mxu0 0
    %725 = vmatprep.subr.bf16.mxu0 0
    %726 = vmatpush2.bf16.msra.mxu0 0
    %727 = vmatprep.subr.bf16.mxu0 0
    %728 = vmatpush2.bf16.msra.mxu0 0
    %729 = vmatprep.subr.bf16.mxu0 0
    %730 = vmatpush2.bf16.msra.mxu0 0
    %731 = vmatprep.subr.bf16.mxu0 0
    %732 = vmatpush2.bf16.msra.mxu0 0
    %733 = vmatprep.subr.bf16.mxu0 0
    %734 = vmatpush2.bf16.msra.mxu0 0
    %735 = vmatprep.mubr.bf16.mxu0 0
    %736 = vmatmul.mubr.bf16.gmra.mxu0 %v619
    %v737 = vpop.f32.mrf.mxu0
    %v738 = vadd.f32 0.0, %v737
    %v739 = vpop.f32.mrf.mxu0
    %v740 = vadd.f32 0.0, %v739
    %v741 = vpop.f32.mrf.mxu0
    %v742 = vpop.f32.mrf.mxu0
    %743 = vdwg.mxu0
    %744 = vmatprep.subr.bf16.mxu0 0
    %745 = vmatpush1.bf16.msra.mxu0 0
    %746 = vmatprep.subr.bf16.mxu0 0
    %747 = vmatpush1.bf16.msra.mxu0 0
    %748 = vmatprep.subr.bf16.mxu0 0
    %749 = vmatpush1.bf16.msra.mxu0 0
    %750 = vmatprep.subr.bf16.mxu0 0
    %751 = vmatpush1.bf16.msra.mxu0 0
    %752 = vmatprep.subr.bf16.mxu0 0
    %753 = vmatpush1.bf16.msra.mxu0 0
    %754 = vmatprep.subr.bf16.mxu0 0
    %755 = vmatpush1.bf16.msra.mxu0 0
    %756 = vmatprep.subr.bf16.mxu0 0
    %757 = vmatpush1.bf16.msra.mxu0 0
    %758 = vmatprep.subr.bf16.mxu0 %v608
    %759 = vmatpush1.bf16.msra.mxu0 %v607
    %760 = vmatprep.subr.bf16.mxu0 0
    %761 = vmatpush2.bf16.msra.mxu0 0
    %762 = vmatprep.subr.bf16.mxu0 0
    %763 = vmatpush2.bf16.msra.mxu0 0
    %764 = vmatprep.subr.bf16.mxu0 0
    %765 = vmatpush2.bf16.msra.mxu0 0
    %766 = vmatprep.subr.bf16.mxu0 0
    %767 = vmatpush2.bf16.msra.mxu0 0
    %768 = vmatprep.subr.bf16.mxu0 0
    %769 = vmatpush2.bf16.msra.mxu0 0
    %770 = vmatprep.subr.bf16.mxu0 0
    %771 = vmatpush2.bf16.msra.mxu0 0
    %772 = vmatprep.subr.bf16.mxu0 0
    %773 = vmatpush2.bf16.msra.mxu0 0
    %774 = vmatprep.subr.bf16.mxu0 0
    %775 = vmatpush2.bf16.msra.mxu0 0
    %776 = vmatprep.mubr.bf16.mxu0 0
    %777 = vmatmul.mubr.bf16.gmra.mxu0 %v619
    %v778 = vpop.f32.mrf.mxu0
    %v779 = vadd.f32 0.0, %v778
    %v780 = vpop.f32.mrf.mxu0
    %v781 = vadd.f32 0.0, %v780
    %v782 = vpop.f32.mrf.mxu0
    %v783 = vpop.f32.mrf.mxu0
    %784 = vdwg.mxu0
    %v1177 = vunpack.c.l.b16 %v177
    %v1178 = vunpack.c.h.b16 %v177
    %v1179 = vunpack.c.l.b16 %v178
    %v1180 = vunpack.c.h.b16 %v178
    %v1181 = vunpack.c.l.b16 %v179
    %v1182 = vunpack.c.h.b16 %v179
    %v1183 = vunpack.c.l.b16 %v180
    %v1184 = vunpack.c.h.b16 %v180
    %v1185 = vunpack.c.l.b16 %v181
    %v1186 = vunpack.c.h.b16 %v181
    %v1187 = vunpack.c.l.b16 %v182
    %v1188 = vunpack.c.h.b16 %v182
    %v1189 = vunpack.c.l.b16 %v183
    %v1190 = vunpack.c.h.b16 %v183
    %v1191 = vunpack.c.l.b16 %v184
    %v1192 = vunpack.c.h.b16 %v184
    %v1193 = vunpack.c.l.b16 %v185
    %v1194 = vunpack.c.h.b16 %v185
    %v1195 = vunpack.c.l.b16 %v186
    %v1196 = vunpack.c.h.b16 %v186
    %v1197 = vunpack.c.l.b16 %v187
    %v1198 = vunpack.c.h.b16 %v187
    %v1199 = vunpack.c.l.b16 %v188
    %v1200 = vunpack.c.h.b16 %v188
    %v1201 = vunpack.c.l.b16 %v189
    %v1202 = vunpack.c.h.b16 %v189
    %v1203 = vunpack.c.l.b16 %v190
    %v1204 = vunpack.c.h.b16 %v190
    %v1205 = vunpack.c.l.b16 %v191
    %v1206 = vunpack.c.h.b16 %v191
    %v1207 = vunpack.c.l.b16 %v192
    %v1208 = vunpack.c.h.b16 %v192
    %v1209 = vunpack.c.l.b16 %v193
    %v1210 = vunpack.c.h.b16 %v193
    %v1211 = vunpack.c.l.b16 %v194
    %v1212 = vunpack.c.h.b16 %v194
    %v1213 = vunpack.c.l.b16 %v195
    %v1214 = vunpack.c.h.b16 %v195
    %v1215 = vunpack.c.l.b16 %v196
    %v1216 = vunpack.c.h.b16 %v196
    %v1217 = vunpack.c.l.b16 %v197
    %v1218 = vunpack.c.h.b16 %v197
    %v1219 = vunpack.c.l.b16 %v198
    %v1220 = vunpack.c.h.b16 %v198
    %v1221 = vunpack.c.l.b16 %v199
    %v1222 = vunpack.c.h.b16 %v199
    %v1223 = vunpack.c.l.b16 %v200
    %v1224 = vunpack.c.h.b16 %v200
    %v1225 = vunpack.c.l.b16 %v201
    %v1226 = vunpack.c.h.b16 %v201
    %v1227 = vunpack.c.l.b16 %v202
    %v1228 = vunpack.c.h.b16 %v202
    %v1229 = vunpack.c.l.b16 %v203
    %v1230 = vunpack.c.h.b16 %v203
    %v1231 = vunpack.c.l.b16 %v204
    %v1232 = vunpack.c.h.b16 %v204
    %v1233 = vunpack.c.l.b16 %v205
    %v1234 = vunpack.c.h.b16 %v205
    %v1235 = vunpack.c.l.b16 %v206
    %v1236 = vunpack.c.h.b16 %v206
    %v1237 = vunpack.c.l.b16 %v207
    %v1238 = vunpack.c.h.b16 %v207
    %v1239 = vunpack.c.l.b16 %v208
    %v1240 = vunpack.c.h.b16 %v208
    %v1241 = vunpack.c.l.b16 %v209
    %v1242 = vunpack.c.h.b16 %v209
    %v1243 = vunpack.c.l.b16 %v210
    %v1244 = vunpack.c.h.b16 %v210
    %v1245 = vunpack.c.l.b16 %v211
    %v1246 = vunpack.c.h.b16 %v211
    %v1247 = vunpack.c.l.b16 %v212
    %v1248 = vunpack.c.h.b16 %v212
    %v1249 = vunpack.c.l.b16 %v213
    %v1250 = vunpack.c.h.b16 %v213
    %v1251 = vunpack.c.l.b16 %v214
    %v1252 = vunpack.c.h.b16 %v214
    %v1253 = vunpack.c.l.b16 %v215
    %v1254 = vunpack.c.h.b16 %v215
    %v1255 = vunpack.c.l.b16 %v216
    %v1256 = vunpack.c.h.b16 %v216
    %v1257 = vunpack.c.l.b16 %v217
    %v1258 = vunpack.c.h.b16 %v217
    %v1259 = vunpack.c.l.b16 %v218
    %v1260 = vunpack.c.h.b16 %v218
    %v1261 = vunpack.c.l.b16 %v219
    %v1262 = vunpack.c.h.b16 %v219
    %v1263 = vunpack.c.l.b16 %v220
    %v1264 = vunpack.c.h.b16 %v220
    %v1265 = vunpack.c.l.b16 %v221
    %v1266 = vunpack.c.h.b16 %v221
    %v1267 = vunpack.c.l.b16 %v222
    %v1268 = vunpack.c.h.b16 %v222
    %v1269 = vunpack.c.l.b16 %v223
    %v1270 = vunpack.c.h.b16 %v223
    %v1271 = vunpack.c.l.b16 %v224
    %v1272 = vunpack.c.h.b16 %v224
    %v1273 = vunpack.c.l.b16 %v225
    %v1274 = vunpack.c.h.b16 %v225
    %v1275 = vunpack.c.l.b16 %v226
    %v1276 = vunpack.c.h.b16 %v226
    %v1277 = vunpack.c.l.b16 %v227
    %v1278 = vunpack.c.h.b16 %v227
    %v1279 = vunpack.c.l.b16 %v228
    %v1280 = vunpack.c.h.b16 %v228
    %v1281 = vunpack.c.l.b16 %v229
    %v1282 = vunpack.c.h.b16 %v229
    %v1283 = vunpack.c.l.b16 %v230
    %v1284 = vunpack.c.h.b16 %v230
    %v1285 = vunpack.c.l.b16 %v231
    %v1286 = vunpack.c.h.b16 %v231
    %v1287 = vunpack.c.l.b16 %v232
    %v1288 = vunpack.c.h.b16 %v232
    %v1289 = vunpack.c.l.b16 %v233
    %v1290 = vunpack.c.h.b16 %v233
    %v1291 = vunpack.c.l.b16 %v234
    %v1292 = vunpack.c.h.b16 %v234
    %v1293 = vunpack.c.l.b16 %v235
    %v1294 = vunpack.c.h.b16 %v235
    %v1295 = vunpack.c.l.b16 %v236
    %v1296 = vunpack.c.h.b16 %v236
    %v1297 = vunpack.c.l.b16 %v237
    %v1298 = vunpack.c.h.b16 %v237
    %v1299 = vunpack.c.l.b16 %v238
    %v1300 = vunpack.c.h.b16 %v238
    %v1301 = vunpack.c.l.b16 %v239
    %v1302 = vunpack.c.h.b16 %v239
    %v1303 = vunpack.c.l.b16 %v240
    %v1304 = vunpack.c.h.b16 %v240
    %v1305 = vunpack.c.l.b16 %v241
    %v1306 = vunpack.c.h.b16 %v241
    %v1307 = vunpack.c.l.b16 %v242
    %v1308 = vunpack.c.h.b16 %v242
    %v1309 = vunpack.c.l.b16 %v243
    %v1310 = vunpack.c.h.b16 %v243
    %v1311 = vunpack.c.l.b16 %v244
    %v1312 = vunpack.c.h.b16 %v244
    %v1313 = vunpack.c.l.b16 %v245
    %v1314 = vunpack.c.h.b16 %v245
    %v1315 = vunpack.c.l.b16 %v246
    %v1316 = vunpack.c.h.b16 %v246
    %v1317 = vunpack.c.l.b16 %v247
    %v1318 = vunpack.c.h.b16 %v247
    %v1319 = vunpack.c.l.b16 %v248
    %v1320 = vunpack.c.h.b16 %v248
    %v1321 = vunpack.c.l.b16 %v249
    %v1322 = vunpack.c.h.b16 %v249
    %v1323 = vunpack.c.l.b16 %v250
    %v1324 = vunpack.c.h.b16 %v250
    %v1325 = vunpack.c.l.b16 %v251
    %v1326 = vunpack.c.h.b16 %v251
    %v1327 = vunpack.c.l.b16 %v252
    %v1328 = vunpack.c.h.b16 %v252
    %v1329 = vunpack.c.l.b16 %v253
    %v1330 = vunpack.c.h.b16 %v253
    %v1331 = vunpack.c.l.b16 %v254
    %v1332 = vunpack.c.h.b16 %v254
    %v1333 = vunpack.c.l.b16 %v255
    %v1334 = vunpack.c.h.b16 %v255
    %v1335 = vunpack.c.l.b16 %v256
    %v1336 = vunpack.c.h.b16 %v256
    %v1337 = vunpack.c.l.b16 %v257
    %v1338 = vunpack.c.h.b16 %v257
    %v1339 = vunpack.c.l.b16 %v258
    %v1340 = vunpack.c.h.b16 %v258
    %v1341 = vunpack.c.l.b16 %v259
    %v1342 = vunpack.c.h.b16 %v259
    %v1343 = vunpack.c.l.b16 %v260
    %v1344 = vunpack.c.h.b16 %v260
    %v1345 = vunpack.c.l.b16 %v261
    %v1346 = vunpack.c.h.b16 %v261
    %v1347 = vunpack.c.l.b16 %v262
    %v1348 = vunpack.c.h.b16 %v262
    %v1349 = vunpack.c.l.b16 %v263
    %v1350 = vunpack.c.h.b16 %v263
    %v1351 = vunpack.c.l.b16 %v264
    %v1352 = vunpack.c.h.b16 %v264
    %v1353 = vunpack.c.l.b16 %v265
    %v1354 = vunpack.c.h.b16 %v265
    %v1355 = vunpack.c.l.b16 %v266
    %v1356 = vunpack.c.h.b16 %v266
    %v1357 = vunpack.c.l.b16 %v267
    %v1358 = vunpack.c.h.b16 %v267
    %v1359 = vunpack.c.l.b16 %v268
    %v1360 = vunpack.c.h.b16 %v268
    %v1361 = vunpack.c.l.b16 %v269
    %v1362 = vunpack.c.h.b16 %v269
    %v1363 = vunpack.c.l.b16 %v270
    %v1364 = vunpack.c.h.b16 %v270
    %v1365 = vunpack.c.l.b16 %v271
    %v1366 = vunpack.c.h.b16 %v271
    %v1367 = vunpack.c.l.b16 %v272
    %v1368 = vunpack.c.h.b16 %v272
    %v1369 = vunpack.c.l.b16 %v273
    %v1370 = vunpack.c.h.b16 %v273
    %v1371 = vunpack.c.l.b16 %v274
    %v1372 = vunpack.c.h.b16 %v274
    %v1373 = vunpack.c.l.b16 %v275
    %v1374 = vunpack.c.h.b16 %v275
    %v1375 = vunpack.c.l.b16 %v276
    %v1376 = vunpack.c.h.b16 %v276
    %v1377 = vunpack.c.l.b16 %v277
    %v1378 = vunpack.c.h.b16 %v277
    %v1379 = vunpack.c.l.b16 %v278
    %v1380 = vunpack.c.h.b16 %v278
    %v1381 = vunpack.c.l.b16 %v279
    %v1382 = vunpack.c.h.b16 %v279
    %v1383 = vunpack.c.l.b16 %v280
    %v1384 = vunpack.c.h.b16 %v280
    %v1385 = vunpack.c.l.b16 %v281
    %v1386 = vunpack.c.h.b16 %v281
    %v1387 = vunpack.c.l.b16 %v282
    %v1388 = vunpack.c.h.b16 %v282
    %v1389 = vunpack.c.l.b16 %v283
    %v1390 = vunpack.c.h.b16 %v283
    %v1391 = vunpack.c.l.b16 %v284
    %v1392 = vunpack.c.h.b16 %v284
    %v1393 = vunpack.c.l.b16 %v285
    %v1394 = vunpack.c.h.b16 %v285
    %v1395 = vunpack.c.l.b16 %v286
    %v1396 = vunpack.c.h.b16 %v286
    %v1397 = vunpack.c.l.b16 %v287
    %v1398 = vunpack.c.h.b16 %v287
    %v1399 = vunpack.c.l.b16 %v288
    %v1400 = vunpack.c.h.b16 %v288
    %v1401 = vunpack.c.l.b16 %v289
    %v1402 = vunpack.c.h.b16 %v289
    %v1403 = vunpack.c.l.b16 %v290
    %v1404 = vunpack.c.h.b16 %v290
    %v1405 = vunpack.c.l.b16 %v291
    %v1406 = vunpack.c.h.b16 %v291
    %v1407 = vunpack.c.l.b16 %v292
    %v1408 = vunpack.c.h.b16 %v292
    %v1409 = vunpack.c.l.b16 %v293
    %v1410 = vunpack.c.h.b16 %v293
    %v1411 = vunpack.c.l.b16 %v294
    %v1412 = vunpack.c.h.b16 %v294
    %v1413 = vunpack.c.l.b16 %v295
    %v1414 = vunpack.c.h.b16 %v295
    %v1415 = vunpack.c.l.b16 %v296
    %v1416 = vunpack.c.h.b16 %v296
    %v1417 = vunpack.c.l.b16 %v297
    %v1418 = vunpack.c.h.b16 %v297
    %v1419 = vunpack.c.l.b16 %v298
    %v1420 = vunpack.c.h.b16 %v298
    %v1421 = vunpack.c.l.b16 %v299
    %v1422 = vunpack.c.h.b16 %v299
    %v1423 = vunpack.c.l.b16 %v300
    %v1424 = vunpack.c.h.b16 %v300
    %v1425 = vunpack.c.l.b16 %v301
    %v1426 = vunpack.c.h.b16 %v301
    %v1427 = vunpack.c.l.b16 %v302
    %v1428 = vunpack.c.h.b16 %v302
    %v1429 = vunpack.c.l.b16 %v303
    %v1430 = vunpack.c.h.b16 %v303
    %v1431 = vunpack.c.l.b16 %v304
    %v1432 = vunpack.c.h.b16 %v304
    %v1433 = vunpack.c.l.b16 %v305
    %v1434 = vunpack.c.h.b16 %v305
    %v1435 = vunpack.c.l.b16 %v306
    %v1436 = vunpack.c.h.b16 %v306
    %v1437 = vunpack.c.l.b16 %v307
    %v1438 = vunpack.c.h.b16 %v307
    %v1439 = vunpack.c.l.b16 %v308
    %v1440 = vunpack.c.h.b16 %v308
    %v1441 = vunpack.c.l.b16 %v309
    %v1442 = vunpack.c.h.b16 %v309
    %v1443 = vunpack.c.l.b16 %v310
    %v1444 = vunpack.c.h.b16 %v310
    %v1445 = vunpack.c.l.b16 %v311
    %v1446 = vunpack.c.h.b16 %v311
    %v1447 = vunpack.c.l.b16 %v312
    %v1448 = vunpack.c.h.b16 %v312
    %v1449 = vunpack.c.l.b16 %v313
    %v1450 = vunpack.c.h.b16 %v313
    %v1451 = vunpack.c.l.b16 %v314
    %v1452 = vunpack.c.h.b16 %v314
    %v1453 = vunpack.c.l.b16 %v315
    %v1454 = vunpack.c.h.b16 %v315
    %v1455 = vunpack.c.l.b16 %v316
    %v1456 = vunpack.c.h.b16 %v316
    %v1457 = vunpack.c.l.b16 %v317
    %v1458 = vunpack.c.h.b16 %v317
    %v1459 = vunpack.c.l.b16 %v318
    %v1460 = vunpack.c.h.b16 %v318
    %v1461 = vunpack.c.l.b16 %v319
    %v1462 = vunpack.c.h.b16 %v319
    %v1463 = vunpack.c.l.b16 %v320
    %v1464 = vunpack.c.h.b16 %v320
    %v1465 = vunpack.c.l.b16 %v321
    %v1466 = vunpack.c.h.b16 %v321
    %v1467 = vunpack.c.l.b16 %v322
    %v1468 = vunpack.c.h.b16 %v322
    %v1469 = vunpack.c.l.b16 %v323
    %v1470 = vunpack.c.h.b16 %v323
    %v1471 = vunpack.c.l.b16 %v324
    %v1472 = vunpack.c.h.b16 %v324
    %v1473 = vunpack.c.l.b16 %v325
    %v1474 = vunpack.c.h.b16 %v325
    %v1475 = vunpack.c.l.b16 %v326
    %v1476 = vunpack.c.h.b16 %v326
    %v1477 = vunpack.c.l.b16 %v327
    %v1478 = vunpack.c.h.b16 %v327
    %v1479 = vunpack.c.l.b16 %v328
    %v1480 = vunpack.c.h.b16 %v328
    %v1481 = vunpack.c.l.b16 %v329
    %v1482 = vunpack.c.h.b16 %v329
    %v1483 = vunpack.c.l.b16 %v330
    %v1484 = vunpack.c.h.b16 %v330
    %v1485 = vunpack.c.l.b16 %v331
    %v1486 = vunpack.c.h.b16 %v331
    %v1487 = vunpack.c.l.b16 %v332
    %v1488 = vunpack.c.h.b16 %v332
    %v1489 = vunpack.c.l.b16 %v333
    %v1490 = vunpack.c.h.b16 %v333
    %v1491 = vunpack.c.l.b16 %v334
    %v1492 = vunpack.c.h.b16 %v334
    %v1493 = vunpack.c.l.b16 %v335
    %v1494 = vunpack.c.h.b16 %v335
    %v1495 = vunpack.c.l.b16 %v336
    %v1496 = vunpack.c.h.b16 %v336
    %v1497 = vunpack.c.l.b16 %v337
    %v1498 = vunpack.c.h.b16 %v337
    %v1499 = vunpack.c.l.b16 %v338
    %v1500 = vunpack.c.h.b16 %v338
    %v1501 = vunpack.c.l.b16 %v339
    %v1502 = vunpack.c.h.b16 %v339
    %v1503 = vunpack.c.l.b16 %v340
    %v1504 = vunpack.c.h.b16 %v340
    %v1505 = vunpack.c.l.b16 %v341
    %v1506 = vunpack.c.h.b16 %v341
    %v1507 = vunpack.c.l.b16 %v342
    %v1508 = vunpack.c.h.b16 %v342
    %v1509 = vunpack.c.l.b16 %v343
    %v1510 = vunpack.c.h.b16 %v343
    %v1511 = vunpack.c.l.b16 %v344
    %v1512 = vunpack.c.h.b16 %v344
    %v1513 = vunpack.c.l.b16 %v345
    %v1514 = vunpack.c.h.b16 %v345
    %v1515 = vunpack.c.l.b16 %v346
    %v1516 = vunpack.c.h.b16 %v346
    %v1517 = vunpack.c.l.b16 %v347
    %v1518 = vunpack.c.h.b16 %v347
    %v1519 = vunpack.c.l.b16 %v348
    %v1520 = vunpack.c.h.b16 %v348
    %v1521 = vunpack.c.l.b16 %v349
    %v1522 = vunpack.c.h.b16 %v349
    %v1523 = vunpack.c.l.b16 %v350
    %v1524 = vunpack.c.h.b16 %v350
    %v1525 = vunpack.c.l.b16 %v351
    %v1526 = vunpack.c.h.b16 %v351
    %v1527 = vunpack.c.l.b16 %v352
    %v1528 = vunpack.c.h.b16 %v352
    %v1529 = vunpack.c.l.b16 %v353
    %v1530 = vunpack.c.h.b16 %v353
    %v1531 = vunpack.c.l.b16 %v354
    %v1532 = vunpack.c.h.b16 %v354
    %v1533 = vunpack.c.l.b16 %v355
    %v1534 = vunpack.c.h.b16 %v355
    %v1535 = vunpack.c.l.b16 %v356
    %v1536 = vunpack.c.h.b16 %v356
    %v1537 = vunpack.c.l.b16 %v357
    %v1538 = vunpack.c.h.b16 %v357
    %v1539 = vunpack.c.l.b16 %v358
    %v1540 = vunpack.c.h.b16 %v358
    %v1541 = vunpack.c.l.b16 %v359
    %v1542 = vunpack.c.h.b16 %v359
    %v1543 = vunpack.c.l.b16 %v360
    %v1544 = vunpack.c.h.b16 %v360
    %v1545 = vunpack.c.l.b16 %v361
    %v1546 = vunpack.c.h.b16 %v361
    %v1547 = vunpack.c.l.b16 %v362
    %v1548 = vunpack.c.h.b16 %v362
    %v1549 = vunpack.c.l.b16 %v363
    %v1550 = vunpack.c.h.b16 %v363
    %v1551 = vunpack.c.l.b16 %v364
    %v1552 = vunpack.c.h.b16 %v364
    %v1553 = vunpack.c.l.b16 %v365
    %v1554 = vunpack.c.h.b16 %v365
    %v1555 = vunpack.c.l.b16 %v366
    %v1556 = vunpack.c.h.b16 %v366
    %v1557 = vunpack.c.l.b16 %v367
    %v1558 = vunpack.c.h.b16 %v367
    %v1559 = vunpack.c.l.b16 %v368
    %v1560 = vunpack.c.h.b16 %v368
    %v1561 = vunpack.c.l.b16 %v369
    %v1562 = vunpack.c.h.b16 %v369
    %v1563 = vunpack.c.l.b16 %v370
    %v1564 = vunpack.c.h.b16 %v370
    %v1565 = vunpack.c.l.b16 %v371
    %v1566 = vunpack.c.h.b16 %v371
    %v1567 = vunpack.c.l.b16 %v372
    %v1568 = vunpack.c.h.b16 %v372
    %v1569 = vunpack.c.l.b16 %v373
    %v1570 = vunpack.c.h.b16 %v373
    %v1571 = vunpack.c.l.b16 %v374
    %v1572 = vunpack.c.h.b16 %v374
    %v1573 = vunpack.c.l.b16 %v375
    %v1574 = vunpack.c.h.b16 %v375
    %v1575 = vunpack.c.l.b16 %v376
    %v1576 = vunpack.c.h.b16 %v376
    %v1577 = vunpack.c.l.b16 %v377
    %v1578 = vunpack.c.h.b16 %v377
    %v1579 = vunpack.c.l.b16 %v378
    %v1580 = vunpack.c.h.b16 %v378
    %v1581 = vunpack.c.l.b16 %v379
    %v1582 = vunpack.c.h.b16 %v379
    %v1583 = vunpack.c.l.b16 %v380
    %v1584 = vunpack.c.h.b16 %v380
    %v1585 = vunpack.c.l.b16 %v381
    %v1586 = vunpack.c.h.b16 %v381
    %v1587 = vunpack.c.l.b16 %v382
    %v1588 = vunpack.c.h.b16 %v382
    %v1589 = vunpack.c.l.b16 %v383
    %v1590 = vunpack.c.h.b16 %v383
    %v1591 = vunpack.c.l.b16 %v384
    %v1592 = vunpack.c.h.b16 %v384
    %v1593 = vunpack.c.l.b16 %v385
    %v1594 = vunpack.c.h.b16 %v385
    %v1595 = vunpack.c.l.b16 %v386
    %v1596 = vunpack.c.h.b16 %v386
    %v1597 = vunpack.c.l.b16 %v387
    %v1598 = vunpack.c.h.b16 %v387
    %v1599 = vunpack.c.l.b16 %v388
    %v1600 = vunpack.c.h.b16 %v388
    %v1601 = vunpack.c.l.b16 %v389
    %v1602 = vunpack.c.h.b16 %v389
    %v1603 = vunpack.c.l.b16 %v390
    %v1604 = vunpack.c.h.b16 %v390
    %v1605 = vunpack.c.l.b16 %v391
    %v1606 = vunpack.c.h.b16 %v391
    %v1607 = vunpack.c.l.b16 %v392
    %v1608 = vunpack.c.h.b16 %v392
    %v1609 = vunpack.c.l.b16 %v393
    %v1610 = vunpack.c.h.b16 %v393
    %v1611 = vunpack.c.l.b16 %v394
    %v1612 = vunpack.c.h.b16 %v394
    %v1613 = vunpack.c.l.b16 %v395
    %v1614 = vunpack.c.h.b16 %v395
    %v1615 = vunpack.c.l.b16 %v396
    %v1616 = vunpack.c.h.b16 %v396
    %v1617 = vunpack.c.l.b16 %v397
    %v1618 = vunpack.c.h.b16 %v397
    %v1619 = vunpack.c.l.b16 %v398
    %v1620 = vunpack.c.h.b16 %v398
    %v1621 = vunpack.c.l.b16 %v399
    %v1622 = vunpack.c.h.b16 %v399
    %v1623 = vunpack.c.l.b16 %v400
    %v1624 = vunpack.c.h.b16 %v400
    %v1625 = vunpack.c.l.b16 %v401
    %v1626 = vunpack.c.h.b16 %v401
    %v1627 = vunpack.c.l.b16 %v402
    %v1628 = vunpack.c.h.b16 %v402
    %v1629 = vunpack.c.l.b16 %v403
    %v1630 = vunpack.c.h.b16 %v403
    %v1631 = vunpack.c.l.b16 %v404
    %v1632 = vunpack.c.h.b16 %v404
    %v1633 = vunpack.c.l.b16 %v405
    %v1634 = vunpack.c.h.b16 %v405
    %v1635 = vunpack.c.l.b16 %v406
    %v1636 = vunpack.c.h.b16 %v406
    %v1637 = vunpack.c.l.b16 %v407
    %v1638 = vunpack.c.h.b16 %v407
    %v1639 = vunpack.c.l.b16 %v408
    %v1640 = vunpack.c.h.b16 %v408
    %v1641 = vunpack.c.l.b16 %v409
    %v1642 = vunpack.c.h.b16 %v409
    %v1643 = vunpack.c.l.b16 %v410
    %v1644 = vunpack.c.h.b16 %v410
    %v1645 = vunpack.c.l.b16 %v411
    %v1646 = vunpack.c.h.b16 %v411
    %v1647 = vunpack.c.l.b16 %v412
    %v1648 = vunpack.c.h.b16 %v412
    %v1649 = vunpack.c.l.b16 %v413
    %v1650 = vunpack.c.h.b16 %v413
    %v1651 = vunpack.c.l.b16 %v414
    %v1652 = vunpack.c.h.b16 %v414
    %v1653 = vunpack.c.l.b16 %v415
    %v1654 = vunpack.c.h.b16 %v415
    %v1655 = vunpack.c.l.b16 %v416
    %v1656 = vunpack.c.h.b16 %v416
    %v1657 = vunpack.c.l.b16 %v417
    %v1658 = vunpack.c.h.b16 %v417
    %v1659 = vunpack.c.l.b16 %v418
    %v1660 = vunpack.c.h.b16 %v418
    %v1661 = vunpack.c.l.b16 %v419
    %v1662 = vunpack.c.h.b16 %v419
    %v1663 = vunpack.c.l.b16 %v420
    %v1664 = vunpack.c.h.b16 %v420
    %v1665 = vunpack.c.l.b16 %v421
    %v1666 = vunpack.c.h.b16 %v421
    %v1667 = vunpack.c.l.b16 %v422
    %v1668 = vunpack.c.h.b16 %v422
    %v1669 = vunpack.c.l.b16 %v423
    %v1670 = vunpack.c.h.b16 %v423
    %v1671 = vunpack.c.l.b16 %v424
    %v1672 = vunpack.c.h.b16 %v424
    %v1673 = vunpack.c.l.b16 %v425
    %v1674 = vunpack.c.h.b16 %v425
    %v1675 = vunpack.c.l.b16 %v426
    %v1676 = vunpack.c.h.b16 %v426
    %v1677 = vunpack.c.l.b16 %v427
    %v1678 = vunpack.c.h.b16 %v427
    %v1679 = vunpack.c.l.b16 %v428
    %v1680 = vunpack.c.h.b16 %v428
    %v1681 = vunpack.c.l.b16 %v429
    %v1682 = vunpack.c.h.b16 %v429
    %v1683 = vunpack.c.l.b16 %v430
    %v1684 = vunpack.c.h.b16 %v430
    %v1685 = vunpack.c.l.b16 %v431
    %v1686 = vunpack.c.h.b16 %v431
    %v1687 = vunpack.c.l.b16 %v432
    %v1688 = vunpack.c.h.b16 %v432
    %v1689 = vunpack.c.l.b16 %v433
    %v1690 = vunpack.c.h.b16 %v433
    %v1691 = vunpack.c.l.b16 %v434
    %v1692 = vunpack.c.h.b16 %v434
    %v1693 = vunpack.c.l.b16 %v435
    %v1694 = vunpack.c.h.b16 %v435
    %v1695 = vunpack.c.l.b16 %v436
    %v1696 = vunpack.c.h.b16 %v436
    %v1697 = vunpack.c.l.b16 %v437
    %v1698 = vunpack.c.h.b16 %v437
    %v1699 = vunpack.c.l.b16 %v438
    %v1700 = vunpack.c.h.b16 %v438
    %v1701 = vunpack.c.l.b16 %v439
    %v1702 = vunpack.c.h.b16 %v439
    %v1703 = vunpack.c.l.b16 %v440
    %v1704 = vunpack.c.h.b16 %v440
    %v1705 = vunpack.c.l.b16 %v441
    %v1706 = vunpack.c.h.b16 %v441
    %v1707 = vunpack.c.l.b16 %v442
    %v1708 = vunpack.c.h.b16 %v442
    %v1709 = vunpack.c.l.b16 %v443
    %v1710 = vunpack.c.h.b16 %v443
    %v1711 = vunpack.c.l.b16 %v444
    %v1712 = vunpack.c.h.b16 %v444
    %v1713 = vunpack.c.l.b16 %v445
    %v1714 = vunpack.c.h.b16 %v445
    %v1715 = vunpack.c.l.b16 %v446
    %v1716 = vunpack.c.h.b16 %v446
    %v1717 = vunpack.c.l.b16 %v447
    %v1718 = vunpack.c.h.b16 %v447
    %v1719 = vunpack.c.l.b16 %v448
    %v1720 = vunpack.c.h.b16 %v448
    %v1721 = vunpack.c.l.b16 %v449
    %v1722 = vunpack.c.h.b16 %v449
    %v1723 = vunpack.c.l.b16 %v450
    %v1724 = vunpack.c.h.b16 %v450
    %v1725 = vunpack.c.l.b16 %v451
    %v1726 = vunpack.c.h.b16 %v451
    %v1727 = vunpack.c.l.b16 %v452
    %v1728 = vunpack.c.h.b16 %v452
    %v1729 = vunpack.c.l.b16 %v453
    %v1730 = vunpack.c.h.b16 %v453
    %v1731 = vunpack.c.l.b16 %v454
    %v1732 = vunpack.c.h.b16 %v454
    %v1733 = vunpack.c.l.b16 %v455
    %v1734 = vunpack.c.h.b16 %v455
    %v1735 = vunpack.c.l.b16 %v456
    %v1736 = vunpack.c.h.b16 %v456
    %v1737 = vunpack.c.l.b16 %v457
    %v1738 = vunpack.c.h.b16 %v457
    %v1739 = vunpack.c.l.b16 %v458
    %v1740 = vunpack.c.h.b16 %v458
    %v1741 = vunpack.c.l.b16 %v459
    %v1742 = vunpack.c.h.b16 %v459
    %v1743 = vunpack.c.l.b16 %v460
    %v1744 = vunpack.c.h.b16 %v460
    %v1745 = vunpack.c.l.b16 %v461
    %v1746 = vunpack.c.h.b16 %v461
    %v1747 = vunpack.c.l.b16 %v462
    %v1748 = vunpack.c.h.b16 %v462
    %v1749 = vunpack.c.l.b16 %v463
    %v1750 = vunpack.c.h.b16 %v463
    %v1751 = vunpack.c.l.b16 %v464
    %v1752 = vunpack.c.h.b16 %v464
    %v1753 = vunpack.c.l.b16 %v465
    %v1754 = vunpack.c.h.b16 %v465
    %v1755 = vunpack.c.l.b16 %v466
    %v1756 = vunpack.c.h.b16 %v466
    %v1757 = vunpack.c.l.b16 %v467
    %v1758 = vunpack.c.h.b16 %v467
    %v1759 = vunpack.c.l.b16 %v468
    %v1760 = vunpack.c.h.b16 %v468
    %v1761 = vunpack.c.l.b16 %v469
    %v1762 = vunpack.c.h.b16 %v469
    %v1763 = vunpack.c.l.b16 %v470
    %v1764 = vunpack.c.h.b16 %v470
    %v1765 = vunpack.c.l.b16 %v471
    %v1766 = vunpack.c.h.b16 %v471
    %v1767 = vunpack.c.l.b16 %v472
    %v1768 = vunpack.c.h.b16 %v472
    %v1769 = vunpack.c.l.b16 %v473
    %v1770 = vunpack.c.h.b16 %v473
    %v1771 = vunpack.c.l.b16 %v474
    %v1772 = vunpack.c.h.b16 %v474
    %v1773 = vunpack.c.l.b16 %v475
    %v1774 = vunpack.c.h.b16 %v475
    %v1775 = vunpack.c.l.b16 %v476
    %v1776 = vunpack.c.h.b16 %v476
    %v1777 = vunpack.c.l.b16 %v477
    %v1778 = vunpack.c.h.b16 %v477
    %v1779 = vunpack.c.l.b16 %v478
    %v1780 = vunpack.c.h.b16 %v478
    %v1781 = vunpack.c.l.b16 %v479
    %v1782 = vunpack.c.h.b16 %v479
    %v1783 = vunpack.c.l.b16 %v480
    %v1784 = vunpack.c.h.b16 %v480
    %v1785 = vunpack.c.l.b16 %v481
    %v1786 = vunpack.c.h.b16 %v481
    %v1787 = vunpack.c.l.b16 %v482
    %v1788 = vunpack.c.h.b16 %v482
    %v1789 = vunpack.c.l.b16 %v483
    %v1790 = vunpack.c.h.b16 %v483
    %v1791 = vunpack.c.l.b16 %v484
    %v1792 = vunpack.c.h.b16 %v484
    %v1793 = vunpack.c.l.b16 %v485
    %v1794 = vunpack.c.h.b16 %v485
    %v1795 = vunpack.c.l.b16 %v486
    %v1796 = vunpack.c.h.b16 %v486
    %v1797 = vunpack.c.l.b16 %v487
    %v1798 = vunpack.c.h.b16 %v487
    %v1799 = vunpack.c.l.b16 %v488
    %v1800 = vunpack.c.h.b16 %v488
    %v1801 = vunpack.c.l.b16 %v489
    %v1802 = vunpack.c.h.b16 %v489
    %v1803 = vunpack.c.l.b16 %v490
    %v1804 = vunpack.c.h.b16 %v490
    %v1805 = vunpack.c.l.b16 %v491
    %v1806 = vunpack.c.h.b16 %v491
    %v1807 = vunpack.c.l.b16 %v492
    %v1808 = vunpack.c.h.b16 %v492
    %v1809 = vunpack.c.l.b16 %v493
    %v1810 = vunpack.c.h.b16 %v493
    %v1811 = vunpack.c.l.b16 %v494
    %v1812 = vunpack.c.h.b16 %v494
    %v1813 = vunpack.c.l.b16 %v495
    %v1814 = vunpack.c.h.b16 %v495
    %v1815 = vunpack.c.l.b16 %v496
    %v1816 = vunpack.c.h.b16 %v496
    %v1817 = vunpack.c.l.b16 %v497
    %v1818 = vunpack.c.h.b16 %v497
    %v1819 = vunpack.c.l.b16 %v498
    %v1820 = vunpack.c.h.b16 %v498
    %v1821 = vunpack.c.l.b16 %v499
    %v1822 = vunpack.c.h.b16 %v499
    %v1823 = vunpack.c.l.b16 %v500
    %v1824 = vunpack.c.h.b16 %v500
    %v1825 = vunpack.c.l.b16 %v501
    %v1826 = vunpack.c.h.b16 %v501
    %v1827 = vunpack.c.l.b16 %v502
    %v1828 = vunpack.c.h.b16 %v502
    %v1829 = vunpack.c.l.b16 %v503
    %v1830 = vunpack.c.h.b16 %v503
    %v1831 = vunpack.c.l.b16 %v504
    %v1832 = vunpack.c.h.b16 %v504
    %v1833 = vunpack.c.l.b16 %v505
    %v1834 = vunpack.c.h.b16 %v505
    %v1835 = vunpack.c.l.b16 %v506
    %v1836 = vunpack.c.h.b16 %v506
    %v1837 = vunpack.c.l.b16 %v507
    %v1838 = vunpack.c.h.b16 %v507
    %v1839 = vunpack.c.l.b16 %v508
    %v1840 = vunpack.c.h.b16 %v508
    %v1841 = vunpack.c.l.b16 %v509
    %v1842 = vunpack.c.h.b16 %v509
    %v1843 = vunpack.c.l.b16 %v510
    %v1844 = vunpack.c.h.b16 %v510
    %v1845 = vunpack.c.l.b16 %v511
    %v1846 = vunpack.c.h.b16 %v511
    %v1847 = vunpack.c.l.b16 %v512
    %v1848 = vunpack.c.h.b16 %v512
    %v1849 = vunpack.c.l.b16 %v513
    %v1850 = vunpack.c.h.b16 %v513
    %v1851 = vunpack.c.l.b16 %v514
    %v1852 = vunpack.c.h.b16 %v514
    %v1853 = vunpack.c.l.b16 %v515
    %v1854 = vunpack.c.h.b16 %v515
    %v1855 = vunpack.c.l.b16 %v516
    %v1856 = vunpack.c.h.b16 %v516
    %v1857 = vunpack.c.l.b16 %v517
    %v1858 = vunpack.c.h.b16 %v517
    %v1859 = vunpack.c.l.b16 %v518
    %v1860 = vunpack.c.h.b16 %v518
    %v1861 = vunpack.c.l.b16 %v519
    %v1862 = vunpack.c.h.b16 %v519
    %v1863 = vunpack.c.l.b16 %v520
    %v1864 = vunpack.c.h.b16 %v520
    %v1865 = vunpack.c.l.b16 %v521
    %v1866 = vunpack.c.h.b16 %v521
    %v1867 = vunpack.c.l.b16 %v522
    %v1868 = vunpack.c.h.b16 %v522
    %v1869 = vunpack.c.l.b16 %v523
    %v1870 = vunpack.c.h.b16 %v523
    %v1871 = vunpack.c.l.b16 %v524
    %v1872 = vunpack.c.h.b16 %v524
    %v1873 = vunpack.c.l.b16 %v525
    %v1874 = vunpack.c.h.b16 %v525
    %v1875 = vunpack.c.l.b16 %v526
    %v1876 = vunpack.c.h.b16 %v526
    %v1877 = vunpack.c.l.b16 %v527
    %v1878 = vunpack.c.h.b16 %v527
    %v1879 = vunpack.c.l.b16 %v528
    %v1880 = vunpack.c.h.b16 %v528
    %v1881 = vunpack.c.l.b16 %v529
    %v1882 = vunpack.c.h.b16 %v529
    %v1883 = vunpack.c.l.b16 %v530
    %v1884 = vunpack.c.h.b16 %v530
    %v1885 = vunpack.c.l.b16 %v531
    %v1886 = vunpack.c.h.b16 %v531
    %v1887 = vunpack.c.l.b16 %v532
    %v1888 = vunpack.c.h.b16 %v532
    %v1889 = vunpack.c.l.b16 %v533
    %v1890 = vunpack.c.h.b16 %v533
    %v1891 = vunpack.c.l.b16 %v534
    %v1892 = vunpack.c.h.b16 %v534
    %v1893 = vunpack.c.l.b16 %v535
    %v1894 = vunpack.c.h.b16 %v535
    %v1895 = vunpack.c.l.b16 %v536
    %v1896 = vunpack.c.h.b16 %v536
    %v1897 = vunpack.c.l.b16 %v537
    %v1898 = vunpack.c.h.b16 %v537
    %v1899 = vunpack.c.l.b16 %v538
    %v1900 = vunpack.c.h.b16 %v538
    %v1901 = vunpack.c.l.b16 %v539
    %v1902 = vunpack.c.h.b16 %v539
    %v1903 = vunpack.c.l.b16 %v540
    %v1904 = vunpack.c.h.b16 %v540
    %v1905 = vunpack.c.l.b16 %v541
    %v1906 = vunpack.c.h.b16 %v541
    %v1907 = vunpack.c.l.b16 %v542
    %v1908 = vunpack.c.h.b16 %v542
    %v1909 = vunpack.c.l.b16 %v543
    %v1910 = vunpack.c.h.b16 %v543
    %v1911 = vunpack.c.l.b16 %v544
    %v1912 = vunpack.c.h.b16 %v544
    %v1913 = vunpack.c.l.b16 %v545
    %v1914 = vunpack.c.h.b16 %v545
    %v1915 = vunpack.c.l.b16 %v546
    %v1916 = vunpack.c.h.b16 %v546
    %v1917 = vunpack.c.l.b16 %v547
    %v1918 = vunpack.c.h.b16 %v547
    %v1919 = vunpack.c.l.b16 %v548
    %v1920 = vunpack.c.h.b16 %v548
    %v1921 = vunpack.c.l.b16 %v549
    %v1922 = vunpack.c.h.b16 %v549
    %v1923 = vunpack.c.l.b16 %v550
    %v1924 = vunpack.c.h.b16 %v550
    %v1925 = vunpack.c.l.b16 %v551
    %v1926 = vunpack.c.h.b16 %v551
    %v1927 = vunpack.c.l.b16 %v552
    %v1928 = vunpack.c.h.b16 %v552
    %v1929 = vunpack.c.l.b16 %v553
    %v1930 = vunpack.c.h.b16 %v553
    %v1931 = vunpack.c.l.b16 %v554
    %v1932 = vunpack.c.h.b16 %v554
    %v1933 = vunpack.c.l.b16 %v555
    %v1934 = vunpack.c.h.b16 %v555
    %v1935 = vunpack.c.l.b16 %v556
    %v1936 = vunpack.c.h.b16 %v556
    %v1937 = vunpack.c.l.b16 %v557
    %v1938 = vunpack.c.h.b16 %v557
    %v1939 = vunpack.c.l.b16 %v558
    %v1940 = vunpack.c.h.b16 %v558
    %v1941 = vunpack.c.l.b16 %v559
    %v1942 = vunpack.c.h.b16 %v559
    %v1943 = vunpack.c.l.b16 %v560
    %v1944 = vunpack.c.h.b16 %v560
    %v1945 = vunpack.c.l.b16 %v561
    %v1946 = vunpack.c.h.b16 %v561
    %v1947 = vunpack.c.l.b16 %v562
    %v1948 = vunpack.c.h.b16 %v562
    %v1949 = vunpack.c.l.b16 %v563
    %v1950 = vunpack.c.h.b16 %v563
    %v1951 = vunpack.c.l.b16 %v564
    %v1952 = vunpack.c.h.b16 %v564
    %v1953 = vunpack.c.l.b16 %v565
    %v1954 = vunpack.c.h.b16 %v565
    %v1955 = vunpack.c.l.b16 %v566
    %v1956 = vunpack.c.h.b16 %v566
    %v1957 = vunpack.c.l.b16 %v567
    %v1958 = vunpack.c.h.b16 %v567
    %v1959 = vunpack.c.l.b16 %v568
    %v1960 = vunpack.c.h.b16 %v568
    %v1961 = vpack.c.b16 %v1185, %v1177
    %v1962 = vpack.c.b16 %v1186, %v1178
    %v1963 = vpack.c.b16 %v1187, %v1179
    %v1964 = vpack.c.b16 %v1188, %v1180
    %v1965 = vpack.c.b16 %v1189, %v1181
    %v1966 = vpack.c.b16 %v1190, %v1182
    %v1967 = vpack.c.b16 %v1191, %v1183
    %v1968 = vpack.c.b16 %v1192, %v1184
    %v1969 = vpack.c.b16 %v1201, %v1193
    %v1970 = vpack.c.b16 %v1202, %v1194
    %v1971 = vpack.c.b16 %v1203, %v1195
    %v1972 = vpack.c.b16 %v1204, %v1196
    %v1973 = vpack.c.b16 %v1205, %v1197
    %v1974 = vpack.c.b16 %v1206, %v1198
    %v1975 = vpack.c.b16 %v1207, %v1199
    %v1976 = vpack.c.b16 %v1208, %v1200
    %v1977 = vpack.c.b16 %v1217, %v1209
    %v1978 = vpack.c.b16 %v1218, %v1210
    %v1979 = vpack.c.b16 %v1219, %v1211
    %v1980 = vpack.c.b16 %v1220, %v1212
    %v1981 = vpack.c.b16 %v1221, %v1213
    %v1982 = vpack.c.b16 %v1222, %v1214
    %v1983 = vpack.c.b16 %v1223, %v1215
    %v1984 = vpack.c.b16 %v1224, %v1216
    %v1985 = vpack.c.b16 %v1233, %v1225
    %v1986 = vpack.c.b16 %v1234, %v1226
    %v1987 = vpack.c.b16 %v1235, %v1227
    %v1988 = vpack.c.b16 %v1236, %v1228
    %v1989 = vpack.c.b16 %v1237, %v1229
    %v1990 = vpack.c.b16 %v1238, %v1230
    %v1991 = vpack.c.b16 %v1239, %v1231
    %v1992 = vpack.c.b16 %v1240, %v1232
    %v1993 = vpack.c.b16 %v1249, %v1241
    %v1994 = vpack.c.b16 %v1250, %v1242
    %v1995 = vpack.c.b16 %v1251, %v1243
    %v1996 = vpack.c.b16 %v1252, %v1244
    %v1997 = vpack.c.b16 %v1253, %v1245
    %v1998 = vpack.c.b16 %v1254, %v1246
    %v1999 = vpack.c.b16 %v1255, %v1247
    %v2000 = vpack.c.b16 %v1256, %v1248
    %v2001 = vpack.c.b16 %v1265, %v1257
    %v2002 = vpack.c.b16 %v1266, %v1258
    %v2003 = vpack.c.b16 %v1267, %v1259
    %v2004 = vpack.c.b16 %v1268, %v1260
    %v2005 = vpack.c.b16 %v1269, %v1261
    %v2006 = vpack.c.b16 %v1270, %v1262
    %v2007 = vpack.c.b16 %v1271, %v1263
    %v2008 = vpack.c.b16 %v1272, %v1264
    %v2009 = vpack.c.b16 %v1281, %v1273
    %v2010 = vpack.c.b16 %v1282, %v1274
    %v2011 = vpack.c.b16 %v1283, %v1275
    %v2012 = vpack.c.b16 %v1284, %v1276
    %v2013 = vpack.c.b16 %v1285, %v1277
    %v2014 = vpack.c.b16 %v1286, %v1278
    %v2015 = vpack.c.b16 %v1287, %v1279
    %v2016 = vpack.c.b16 %v1288, %v1280
    %v2017 = vpack.c.b16 %v1297, %v1289
    %v2018 = vpack.c.b16 %v1298, %v1290
    %v2019 = vpack.c.b16 %v1299, %v1291
    %v2020 = vpack.c.b16 %v1300, %v1292
    %v2021 = vpack.c.b16 %v1301, %v1293
    %v2022 = vpack.c.b16 %v1302, %v1294
    %v2023 = vpack.c.b16 %v1303, %v1295
    %v2024 = vpack.c.b16 %v1304, %v1296
    %v2025 = vpack.c.b16 %v1313, %v1305
    %v2026 = vpack.c.b16 %v1314, %v1306
    %v2027 = vpack.c.b16 %v1315, %v1307
    %v2028 = vpack.c.b16 %v1316, %v1308
    %v2029 = vpack.c.b16 %v1317, %v1309
    %v2030 = vpack.c.b16 %v1318, %v1310
    %v2031 = vpack.c.b16 %v1319, %v1311
    %v2032 = vpack.c.b16 %v1320, %v1312
    %v2033 = vpack.c.b16 %v1329, %v1321
    %v2034 = vpack.c.b16 %v1330, %v1322
    %v2035 = vpack.c.b16 %v1331, %v1323
    %v2036 = vpack.c.b16 %v1332, %v1324
    %v2037 = vpack.c.b16 %v1333, %v1325
    %v2038 = vpack.c.b16 %v1334, %v1326
    %v2039 = vpack.c.b16 %v1335, %v1327
    %v2040 = vpack.c.b16 %v1336, %v1328
    %v2041 = vpack.c.b16 %v1345, %v1337
    %v2042 = vpack.c.b16 %v1346, %v1338
    %v2043 = vpack.c.b16 %v1347, %v1339
    %v2044 = vpack.c.b16 %v1348, %v1340
    %v2045 = vpack.c.b16 %v1349, %v1341
    %v2046 = vpack.c.b16 %v1350, %v1342
    %v2047 = vpack.c.b16 %v1351, %v1343
    %v2048 = vpack.c.b16 %v1352, %v1344
    %v2049 = vpack.c.b16 %v1361, %v1353
    %v2050 = vpack.c.b16 %v1362, %v1354
    %v2051 = vpack.c.b16 %v1363, %v1355
    %v2052 = vpack.c.b16 %v1364, %v1356
    %v2053 = vpack.c.b16 %v1365, %v1357
    %v2054 = vpack.c.b16 %v1366, %v1358
    %v2055 = vpack.c.b16 %v1367, %v1359
    %v2056 = vpack.c.b16 %v1368, %v1360
    %v2057 = vpack.c.b16 %v1377, %v1369
    %v2058 = vpack.c.b16 %v1378, %v1370
    %v2059 = vpack.c.b16 %v1379, %v1371
    %v2060 = vpack.c.b16 %v1380, %v1372
    %v2061 = vpack.c.b16 %v1381, %v1373
    %v2062 = vpack.c.b16 %v1382, %v1374
    %v2063 = vpack.c.b16 %v1383, %v1375
    %v2064 = vpack.c.b16 %v1384, %v1376
    %v2065 = vpack.c.b16 %v1393, %v1385
    %v2066 = vpack.c.b16 %v1394, %v1386
    %v2067 = vpack.c.b16 %v1395, %v1387
    %v2068 = vpack.c.b16 %v1396, %v1388
    %v2069 = vpack.c.b16 %v1397, %v1389
    %v2070 = vpack.c.b16 %v1398, %v1390
    %v2071 = vpack.c.b16 %v1399, %v1391
    %v2072 = vpack.c.b16 %v1400, %v1392
    %v2073 = vpack.c.b16 %v1409, %v1401
    %v2074 = vpack.c.b16 %v1410, %v1402
    %v2075 = vpack.c.b16 %v1411, %v1403
    %v2076 = vpack.c.b16 %v1412, %v1404
    %v2077 = vpack.c.b16 %v1413, %v1405
    %v2078 = vpack.c.b16 %v1414, %v1406
    %v2079 = vpack.c.b16 %v1415, %v1407
    %v2080 = vpack.c.b16 %v1416, %v1408
    %v2081 = vpack.c.b16 %v1425, %v1417
    %v2082 = vpack.c.b16 %v1426, %v1418
    %v2083 = vpack.c.b16 %v1427, %v1419
    %v2084 = vpack.c.b16 %v1428, %v1420
    %v2085 = vpack.c.b16 %v1429, %v1421
    %v2086 = vpack.c.b16 %v1430, %v1422
    %v2087 = vpack.c.b16 %v1431, %v1423
    %v2088 = vpack.c.b16 %v1432, %v1424
    %v2089 = vpack.c.b16 %v1441, %v1433
    %v2090 = vpack.c.b16 %v1442, %v1434
    %v2091 = vpack.c.b16 %v1443, %v1435
    %v2092 = vpack.c.b16 %v1444, %v1436
    %v2093 = vpack.c.b16 %v1445, %v1437
    %v2094 = vpack.c.b16 %v1446, %v1438
    %v2095 = vpack.c.b16 %v1447, %v1439
    %v2096 = vpack.c.b16 %v1448, %v1440
    %v2097 = vpack.c.b16 %v1457, %v1449
    %v2098 = vpack.c.b16 %v1458, %v1450
    %v2099 = vpack.c.b16 %v1459, %v1451
    %v2100 = vpack.c.b16 %v1460, %v1452
    %v2101 = vpack.c.b16 %v1461, %v1453
    %v2102 = vpack.c.b16 %v1462, %v1454
    %v2103 = vpack.c.b16 %v1463, %v1455
    %v2104 = vpack.c.b16 %v1464, %v1456
    %v2105 = vpack.c.b16 %v1473, %v1465
    %v2106 = vpack.c.b16 %v1474, %v1466
    %v2107 = vpack.c.b16 %v1475, %v1467
    %v2108 = vpack.c.b16 %v1476, %v1468
    %v2109 = vpack.c.b16 %v1477, %v1469
    %v2110 = vpack.c.b16 %v1478, %v1470
    %v2111 = vpack.c.b16 %v1479, %v1471
    %v2112 = vpack.c.b16 %v1480, %v1472
    %v2113 = vpack.c.b16 %v1489, %v1481
    %v2114 = vpack.c.b16 %v1490, %v1482
    %v2115 = vpack.c.b16 %v1491, %v1483
    %v2116 = vpack.c.b16 %v1492, %v1484
    %v2117 = vpack.c.b16 %v1493, %v1485
    %v2118 = vpack.c.b16 %v1494, %v1486
    %v2119 = vpack.c.b16 %v1495, %v1487
    %v2120 = vpack.c.b16 %v1496, %v1488
    %v2121 = vpack.c.b16 %v1505, %v1497
    %v2122 = vpack.c.b16 %v1506, %v1498
    %v2123 = vpack.c.b16 %v1507, %v1499
    %v2124 = vpack.c.b16 %v1508, %v1500
    %v2125 = vpack.c.b16 %v1509, %v1501
    %v2126 = vpack.c.b16 %v1510, %v1502
    %v2127 = vpack.c.b16 %v1511, %v1503
    %v2128 = vpack.c.b16 %v1512, %v1504
    %v2129 = vpack.c.b16 %v1521, %v1513
    %v2130 = vpack.c.b16 %v1522, %v1514
    %v2131 = vpack.c.b16 %v1523, %v1515
    %v2132 = vpack.c.b16 %v1524, %v1516
    %v2133 = vpack.c.b16 %v1525, %v1517
    %v2134 = vpack.c.b16 %v1526, %v1518
    %v2135 = vpack.c.b16 %v1527, %v1519
    %v2136 = vpack.c.b16 %v1528, %v1520
    %v2137 = vpack.c.b16 %v1537, %v1529
    %v2138 = vpack.c.b16 %v1538, %v1530
    %v2139 = vpack.c.b16 %v1539, %v1531
    %v2140 = vpack.c.b16 %v1540, %v1532
    %v2141 = vpack.c.b16 %v1541, %v1533
    %v2142 = vpack.c.b16 %v1542, %v1534
    %v2143 = vpack.c.b16 %v1543, %v1535
    %v2144 = vpack.c.b16 %v1544, %v1536
    %v2145 = vpack.c.b16 %v1553, %v1545
    %v2146 = vpack.c.b16 %v1554, %v1546
    %v2147 = vpack.c.b16 %v1555, %v1547
    %v2148 = vpack.c.b16 %v1556, %v1548
    %v2149 = vpack.c.b16 %v1557, %v1549
    %v2150 = vpack.c.b16 %v1558, %v1550
    %v2151 = vpack.c.b16 %v1559, %v1551
    %v2152 = vpack.c.b16 %v1560, %v1552
    %v2153 = vpack.c.b16 %v1569, %v1561
    %v2154 = vpack.c.b16 %v1570, %v1562
    %v2155 = vpack.c.b16 %v1571, %v1563
    %v2156 = vpack.c.b16 %v1572, %v1564
    %v2157 = vpack.c.b16 %v1573, %v1565
    %v2158 = vpack.c.b16 %v1574, %v1566
    %v2159 = vpack.c.b16 %v1575, %v1567
    %v2160 = vpack.c.b16 %v1576, %v1568
    %v2161 = vpack.c.b16 %v1585, %v1577
    %v2162 = vpack.c.b16 %v1586, %v1578
    %v2163 = vpack.c.b16 %v1587, %v1579
    %v2164 = vpack.c.b16 %v1588, %v1580
    %v2165 = vpack.c.b16 %v1589, %v1581
    %v2166 = vpack.c.b16 %v1590, %v1582
    %v2167 = vpack.c.b16 %v1591, %v1583
    %v2168 = vpack.c.b16 %v1592, %v1584
    %v2169 = vpack.c.b16 %v1601, %v1593
    %v2170 = vpack.c.b16 %v1602, %v1594
    %v2171 = vpack.c.b16 %v1603, %v1595
    %v2172 = vpack.c.b16 %v1604, %v1596
    %v2173 = vpack.c.b16 %v1605, %v1597
    %v2174 = vpack.c.b16 %v1606, %v1598
    %v2175 = vpack.c.b16 %v1607, %v1599
    %v2176 = vpack.c.b16 %v1608, %v1600
    %v2177 = vpack.c.b16 %v1617, %v1609
    %v2178 = vpack.c.b16 %v1618, %v1610
    %v2179 = vpack.c.b16 %v1619, %v1611
    %v2180 = vpack.c.b16 %v1620, %v1612
    %v2181 = vpack.c.b16 %v1621, %v1613
    %v2182 = vpack.c.b16 %v1622, %v1614
    %v2183 = vpack.c.b16 %v1623, %v1615
    %v2184 = vpack.c.b16 %v1624, %v1616
    %v2185 = vpack.c.b16 %v1633, %v1625
    %v2186 = vpack.c.b16 %v1634, %v1626
    %v2187 = vpack.c.b16 %v1635, %v1627
    %v2188 = vpack.c.b16 %v1636, %v1628
    %v2189 = vpack.c.b16 %v1637, %v1629
    %v2190 = vpack.c.b16 %v1638, %v1630
    %v2191 = vpack.c.b16 %v1639, %v1631
    %v2192 = vpack.c.b16 %v1640, %v1632
    %v2193 = vpack.c.b16 %v1649, %v1641
    %v2194 = vpack.c.b16 %v1650, %v1642
    %v2195 = vpack.c.b16 %v1651, %v1643
    %v2196 = vpack.c.b16 %v1652, %v1644
    %v2197 = vpack.c.b16 %v1653, %v1645
    %v2198 = vpack.c.b16 %v1654, %v1646
    %v2199 = vpack.c.b16 %v1655, %v1647
    %v2200 = vpack.c.b16 %v1656, %v1648
    %v2201 = vpack.c.b16 %v1665, %v1657
    %v2202 = vpack.c.b16 %v1666, %v1658
    %v2203 = vpack.c.b16 %v1667, %v1659
    %v2204 = vpack.c.b16 %v1668, %v1660
    %v2205 = vpack.c.b16 %v1669, %v1661
    %v2206 = vpack.c.b16 %v1670, %v1662
    %v2207 = vpack.c.b16 %v1671, %v1663
    %v2208 = vpack.c.b16 %v1672, %v1664
    %v2209 = vpack.c.b16 %v1681, %v1673
    %v2210 = vpack.c.b16 %v1682, %v1674
    %v2211 = vpack.c.b16 %v1683, %v1675
    %v2212 = vpack.c.b16 %v1684, %v1676
    %v2213 = vpack.c.b16 %v1685, %v1677
    %v2214 = vpack.c.b16 %v1686, %v1678
    %v2215 = vpack.c.b16 %v1687, %v1679
    %v2216 = vpack.c.b16 %v1688, %v1680
    %v2217 = vpack.c.b16 %v1697, %v1689
    %v2218 = vpack.c.b16 %v1698, %v1690
    %v2219 = vpack.c.b16 %v1699, %v1691
    %v2220 = vpack.c.b16 %v1700, %v1692
    %v2221 = vpack.c.b16 %v1701, %v1693
    %v2222 = vpack.c.b16 %v1702, %v1694
    %v2223 = vpack.c.b16 %v1703, %v1695
    %v2224 = vpack.c.b16 %v1704, %v1696
    %v2225 = vpack.c.b16 %v1713, %v1705
    %v2226 = vpack.c.b16 %v1714, %v1706
    %v2227 = vpack.c.b16 %v1715, %v1707
    %v2228 = vpack.c.b16 %v1716, %v1708
    %v2229 = vpack.c.b16 %v1717, %v1709
    %v2230 = vpack.c.b16 %v1718, %v1710
    %v2231 = vpack.c.b16 %v1719, %v1711
    %v2232 = vpack.c.b16 %v1720, %v1712
    %v2233 = vpack.c.b16 %v1729, %v1721
    %v2234 = vpack.c.b16 %v1730, %v1722
    %v2235 = vpack.c.b16 %v1731, %v1723
    %v2236 = vpack.c.b16 %v1732, %v1724
    %v2237 = vpack.c.b16 %v1733, %v1725
    %v2238 = vpack.c.b16 %v1734, %v1726
    %v2239 = vpack.c.b16 %v1735, %v1727
    %v2240 = vpack.c.b16 %v1736, %v1728
    %v2241 = vpack.c.b16 %v1745, %v1737
    %v2242 = vpack.c.b16 %v1746, %v1738
    %v2243 = vpack.c.b16 %v1747, %v1739
    %v2244 = vpack.c.b16 %v1748, %v1740
    %v2245 = vpack.c.b16 %v1749, %v1741
    %v2246 = vpack.c.b16 %v1750, %v1742
    %v2247 = vpack.c.b16 %v1751, %v1743
    %v2248 = vpack.c.b16 %v1752, %v1744
    %v2249 = vpack.c.b16 %v1761, %v1753
    %v2250 = vpack.c.b16 %v1762, %v1754
    %v2251 = vpack.c.b16 %v1763, %v1755
    %v2252 = vpack.c.b16 %v1764, %v1756
    %v2253 = vpack.c.b16 %v1765, %v1757
    %v2254 = vpack.c.b16 %v1766, %v1758
    %v2255 = vpack.c.b16 %v1767, %v1759
    %v2256 = vpack.c.b16 %v1768, %v1760
    %v2257 = vpack.c.b16 %v1777, %v1769
    %v2258 = vpack.c.b16 %v1778, %v1770
    %v2259 = vpack.c.b16 %v1779, %v1771
    %v2260 = vpack.c.b16 %v1780, %v1772
    %v2261 = vpack.c.b16 %v1781, %v1773
    %v2262 = vpack.c.b16 %v1782, %v1774
    %v2263 = vpack.c.b16 %v1783, %v1775
    %v2264 = vpack.c.b16 %v1784, %v1776
    %v2265 = vpack.c.b16 %v1793, %v1785
    %v2266 = vpack.c.b16 %v1794, %v1786
    %v2267 = vpack.c.b16 %v1795, %v1787
    %v2268 = vpack.c.b16 %v1796, %v1788
    %v2269 = vpack.c.b16 %v1797, %v1789
    %v2270 = vpack.c.b16 %v1798, %v1790
    %v2271 = vpack.c.b16 %v1799, %v1791
    %v2272 = vpack.c.b16 %v1800, %v1792
    %v2273 = vpack.c.b16 %v1809, %v1801
    %v2274 = vpack.c.b16 %v1810, %v1802
    %v2275 = vpack.c.b16 %v1811, %v1803
    %v2276 = vpack.c.b16 %v1812, %v1804
    %v2277 = vpack.c.b16 %v1813, %v1805
    %v2278 = vpack.c.b16 %v1814, %v1806
    %v2279 = vpack.c.b16 %v1815, %v1807
    %v2280 = vpack.c.b16 %v1816, %v1808
    %v2281 = vpack.c.b16 %v1825, %v1817
    %v2282 = vpack.c.b16 %v1826, %v1818
    %v2283 = vpack.c.b16 %v1827, %v1819
    %v2284 = vpack.c.b16 %v1828, %v1820
    %v2285 = vpack.c.b16 %v1829, %v1821
    %v2286 = vpack.c.b16 %v1830, %v1822
    %v2287 = vpack.c.b16 %v1831, %v1823
    %v2288 = vpack.c.b16 %v1832, %v1824
    %v2289 = vpack.c.b16 %v1841, %v1833
    %v2290 = vpack.c.b16 %v1842, %v1834
    %v2291 = vpack.c.b16 %v1843, %v1835
    %v2292 = vpack.c.b16 %v1844, %v1836
    %v2293 = vpack.c.b16 %v1845, %v1837
    %v2294 = vpack.c.b16 %v1846, %v1838
    %v2295 = vpack.c.b16 %v1847, %v1839
    %v2296 = vpack.c.b16 %v1848, %v1840
    %v2297 = vpack.c.b16 %v1857, %v1849
    %v2298 = vpack.c.b16 %v1858, %v1850
    %v2299 = vpack.c.b16 %v1859, %v1851
    %v2300 = vpack.c.b16 %v1860, %v1852
    %v2301 = vpack.c.b16 %v1861, %v1853
    %v2302 = vpack.c.b16 %v1862, %v1854
    %v2303 = vpack.c.b16 %v1863, %v1855
    %v2304 = vpack.c.b16 %v1864, %v1856
    %v2305 = vpack.c.b16 %v1873, %v1865
    %v2306 = vpack.c.b16 %v1874, %v1866
    %v2307 = vpack.c.b16 %v1875, %v1867
    %v2308 = vpack.c.b16 %v1876, %v1868
    %v2309 = vpack.c.b16 %v1877, %v1869
    %v2310 = vpack.c.b16 %v1878, %v1870
    %v2311 = vpack.c.b16 %v1879, %v1871
    %v2312 = vpack.c.b16 %v1880, %v1872
    %v2313 = vpack.c.b16 %v1889, %v1881
    %v2314 = vpack.c.b16 %v1890, %v1882
    %v2315 = vpack.c.b16 %v1891, %v1883
    %v2316 = vpack.c.b16 %v1892, %v1884
    %v2317 = vpack.c.b16 %v1893, %v1885
    %v2318 = vpack.c.b16 %v1894, %v1886
    %v2319 = vpack.c.b16 %v1895, %v1887
    %v2320 = vpack.c.b16 %v1896, %v1888
    %v2321 = vpack.c.b16 %v1905, %v1897
    %v2322 = vpack.c.b16 %v1906, %v1898
    %v2323 = vpack.c.b16 %v1907, %v1899
    %v2324 = vpack.c.b16 %v1908, %v1900
    %v2325 = vpack.c.b16 %v1909, %v1901
    %v2326 = vpack.c.b16 %v1910, %v1902
    %v2327 = vpack.c.b16 %v1911, %v1903
    %v2328 = vpack.c.b16 %v1912, %v1904
    %v2329 = vpack.c.b16 %v1921, %v1913
    %v2330 = vpack.c.b16 %v1922, %v1914
    %v2331 = vpack.c.b16 %v1923, %v1915
    %v2332 = vpack.c.b16 %v1924, %v1916
    %v2333 = vpack.c.b16 %v1925, %v1917
    %v2334 = vpack.c.b16 %v1926, %v1918
    %v2335 = vpack.c.b16 %v1927, %v1919
    %v2336 = vpack.c.b16 %v1928, %v1920
    %v2337 = vpack.c.b16 %v1937, %v1929
    %v2338 = vpack.c.b16 %v1938, %v1930
    %v2339 = vpack.c.b16 %v1939, %v1931
    %v2340 = vpack.c.b16 %v1940, %v1932
    %v2341 = vpack.c.b16 %v1941, %v1933
    %v2342 = vpack.c.b16 %v1942, %v1934
    %v2343 = vpack.c.b16 %v1943, %v1935
    %v2344 = vpack.c.b16 %v1944, %v1936
    %v2345 = vpack.c.b16 %v1953, %v1945
    %v2346 = vpack.c.b16 %v1954, %v1946
    %v2347 = vpack.c.b16 %v1955, %v1947
    %v2348 = vpack.c.b16 %v1956, %v1948
    %v2349 = vpack.c.b16 %v1957, %v1949
    %v2350 = vpack.c.b16 %v1958, %v1950
    %v2351 = vpack.c.b16 %v1959, %v1951
    %v2352 = vpack.c.b16 %v1960, %v1952
    %v2746 = vsel %vm617, %v176, 0
    %2748 = vmatprep.subr.bf16.mxu0 %v2018
    %2749 = vmatpush1.bf16.msra.mxu0 %v2017
    %2750 = vmatprep.subr.bf16.mxu0 %v2010
    %2751 = vmatpush1.bf16.msra.mxu0 %v2009
    %2752 = vmatprep.subr.bf16.mxu0 %v2002
    %2753 = vmatpush1.bf16.msra.mxu0 %v2001
    %2754 = vmatprep.subr.bf16.mxu0 %v1994
    %2755 = vmatpush1.bf16.msra.mxu0 %v1993
    %2756 = vmatprep.subr.bf16.mxu0 %v1986
    %2757 = vmatpush1.bf16.msra.mxu0 %v1985
    %2758 = vmatprep.subr.bf16.mxu0 %v1978
    %2759 = vmatpush1.bf16.msra.mxu0 %v1977
    %2760 = vmatprep.subr.bf16.mxu0 %v1970
    %2761 = vmatpush1.bf16.msra.mxu0 %v1969
    %2762 = vmatprep.subr.bf16.mxu0 %v1962
    %2763 = vmatpush1.bf16.msra.mxu0 %v1961
    %2764 = vmatprep.subr.bf16.mxu0 %v2082
    %2765 = vmatpush2.bf16.msra.mxu0 %v2081
    %2766 = vmatprep.subr.bf16.mxu0 %v2074
    %2767 = vmatpush2.bf16.msra.mxu0 %v2073
    %2768 = vmatprep.subr.bf16.mxu0 %v2066
    %2769 = vmatpush2.bf16.msra.mxu0 %v2065
    %2770 = vmatprep.subr.bf16.mxu0 %v2058
    %2771 = vmatpush2.bf16.msra.mxu0 %v2057
    %2772 = vmatprep.subr.bf16.mxu0 %v2050
    %2773 = vmatpush2.bf16.msra.mxu0 %v2049
    %2774 = vmatprep.subr.bf16.mxu0 %v2042
    %2775 = vmatpush2.bf16.msra.mxu0 %v2041
    %2776 = vmatprep.subr.bf16.mxu0 %v2034
    %2777 = vmatpush2.bf16.msra.mxu0 %v2033
    %2778 = vmatprep.subr.bf16.mxu0 %v2026
    %2779 = vmatpush2.bf16.msra.mxu0 %v2025
    %2780 = vmatprep.mubr.bf16.mxu0 %v171
    %2781 = vmatmul.mubr.bf16.gmra.mxu0 %v170
    %v2782 = vpop.f32.mrf.mxu0
    %v2783 = vadd.f32 %v656, %v2782
    %v2784 = vpop.f32.mrf.mxu0
    %v2785 = vadd.f32 %v658, %v2784
    %v2786 = vpop.f32.mrf.mxu0
    %v2787 = vpop.f32.mrf.mxu0
    %2788 = vdwg.mxu0
    %2789 = vmatprep.subr.bf16.mxu0 %v2146
    %2790 = vmatpush1.bf16.msra.mxu0 %v2145
    %2791 = vmatprep.subr.bf16.mxu0 %v2138
    %2792 = vmatpush1.bf16.msra.mxu0 %v2137
    %2793 = vmatprep.subr.bf16.mxu0 %v2130
    %2794 = vmatpush1.bf16.msra.mxu0 %v2129
    %2795 = vmatprep.subr.bf16.mxu0 %v2122
    %2796 = vmatpush1.bf16.msra.mxu0 %v2121
    %2797 = vmatprep.subr.bf16.mxu0 %v2114
    %2798 = vmatpush1.bf16.msra.mxu0 %v2113
    %2799 = vmatprep.subr.bf16.mxu0 %v2106
    %2800 = vmatpush1.bf16.msra.mxu0 %v2105
    %2801 = vmatprep.subr.bf16.mxu0 %v2098
    %2802 = vmatpush1.bf16.msra.mxu0 %v2097
    %2803 = vmatprep.subr.bf16.mxu0 %v2090
    %2804 = vmatpush1.bf16.msra.mxu0 %v2089
    %2805 = vmatprep.subr.bf16.mxu0 %v2210
    %2806 = vmatpush2.bf16.msra.mxu0 %v2209
    %2807 = vmatprep.subr.bf16.mxu0 %v2202
    %2808 = vmatpush2.bf16.msra.mxu0 %v2201
    %2809 = vmatprep.subr.bf16.mxu0 %v2194
    %2810 = vmatpush2.bf16.msra.mxu0 %v2193
    %2811 = vmatprep.subr.bf16.mxu0 %v2186
    %2812 = vmatpush2.bf16.msra.mxu0 %v2185
    %2813 = vmatprep.subr.bf16.mxu0 %v2178
    %2814 = vmatpush2.bf16.msra.mxu0 %v2177
    %2815 = vmatprep.subr.bf16.mxu0 %v2170
    %2816 = vmatpush2.bf16.msra.mxu0 %v2169
    %2817 = vmatprep.subr.bf16.mxu0 %v2162
    %2818 = vmatpush2.bf16.msra.mxu0 %v2161
    %2819 = vmatprep.subr.bf16.mxu0 %v2154
    %2820 = vmatpush2.bf16.msra.mxu0 %v2153
    %2821 = vmatprep.mubr.bf16.mxu0 %v173
    %2822 = vmatmul.mubr.bf16.gmra.mxu0 %v172
    %v2823 = vpop.f32.mrf.mxu0
    %v2824 = vadd.f32 %v2783, %v2823
    %v2825 = vpop.f32.mrf.mxu0
    %v2826 = vadd.f32 %v2785, %v2825
    %v2827 = vpop.f32.mrf.mxu0
    %v2828 = vpop.f32.mrf.mxu0
    %2829 = vdwg.mxu0
    %2830 = vmatprep.subr.bf16.mxu0 %v2274
    %2831 = vmatpush1.bf16.msra.mxu0 %v2273
    %2832 = vmatprep.subr.bf16.mxu0 %v2266
    %2833 = vmatpush1.bf16.msra.mxu0 %v2265
    %2834 = vmatprep.subr.bf16.mxu0 %v2258
    %2835 = vmatpush1.bf16.msra.mxu0 %v2257
    %2836 = vmatprep.subr.bf16.mxu0 %v2250
    %2837 = vmatpush1.bf16.msra.mxu0 %v2249
    %2838 = vmatprep.subr.bf16.mxu0 %v2242
    %2839 = vmatpush1.bf16.msra.mxu0 %v2241
    %2840 = vmatprep.subr.bf16.mxu0 %v2234
    %2841 = vmatpush1.bf16.msra.mxu0 %v2233
    %2842 = vmatprep.subr.bf16.mxu0 %v2226
    %2843 = vmatpush1.bf16.msra.mxu0 %v2225
    %2844 = vmatprep.subr.bf16.mxu0 %v2218
    %2845 = vmatpush1.bf16.msra.mxu0 %v2217
    %2846 = vmatprep.subr.bf16.mxu0 %v2338
    %2847 = vmatpush2.bf16.msra.mxu0 %v2337
    %2848 = vmatprep.subr.bf16.mxu0 %v2330
    %2849 = vmatpush2.bf16.msra.mxu0 %v2329
    %2850 = vmatprep.subr.bf16.mxu0 %v2322
    %2851 = vmatpush2.bf16.msra.mxu0 %v2321
    %2852 = vmatprep.subr.bf16.mxu0 %v2314
    %2853 = vmatpush2.bf16.msra.mxu0 %v2313
    %2854 = vmatprep.subr.bf16.mxu0 %v2306
    %2855 = vmatpush2.bf16.msra.mxu0 %v2305
    %2856 = vmatprep.subr.bf16.mxu0 %v2298
    %2857 = vmatpush2.bf16.msra.mxu0 %v2297
    %2858 = vmatprep.subr.bf16.mxu0 %v2290
    %2859 = vmatpush2.bf16.msra.mxu0 %v2289
    %2860 = vmatprep.subr.bf16.mxu0 %v2282
    %2861 = vmatpush2.bf16.msra.mxu0 %v2281
    %2862 = vmatprep.mubr.bf16.mxu0 %v175
    %2863 = vmatmul.mubr.bf16.gmra.mxu0 %v174
    %v2864 = vpop.f32.mrf.mxu0
    %v2865 = vadd.f32 %v2824, %v2864
    %v2866 = vpop.f32.mrf.mxu0
    %v2867 = vadd.f32 %v2826, %v2866
    %v2868 = vpop.f32.mrf.mxu0
    %v2869 = vpop.f32.mrf.mxu0
    %2870 = vdwg.mxu0
    %2871 = vmatprep.subr.bf16.mxu0 0
    %2872 = vmatpush1.bf16.msra.mxu0 0
    %2873 = vmatprep.subr.bf16.mxu0 0
    %2874 = vmatpush1.bf16.msra.mxu0 0
    %2875 = vmatprep.subr.bf16.mxu0 0
    %2876 = vmatpush1.bf16.msra.mxu0 0
    %2877 = vmatprep.subr.bf16.mxu0 0
    %2878 = vmatpush1.bf16.msra.mxu0 0
    %2879 = vmatprep.subr.bf16.mxu0 0
    %2880 = vmatpush1.bf16.msra.mxu0 0
    %2881 = vmatprep.subr.bf16.mxu0 0
    %2882 = vmatpush1.bf16.msra.mxu0 0
    %2883 = vmatprep.subr.bf16.mxu0 0
    %2884 = vmatpush1.bf16.msra.mxu0 0
    %2885 = vmatprep.subr.bf16.mxu0 %v2346
    %2886 = vmatpush1.bf16.msra.mxu0 %v2345
    %2887 = vmatprep.subr.bf16.mxu0 0
    %2888 = vmatpush2.bf16.msra.mxu0 0
    %2889 = vmatprep.subr.bf16.mxu0 0
    %2890 = vmatpush2.bf16.msra.mxu0 0
    %2891 = vmatprep.subr.bf16.mxu0 0
    %2892 = vmatpush2.bf16.msra.mxu0 0
    %2893 = vmatprep.subr.bf16.mxu0 0
    %2894 = vmatpush2.bf16.msra.mxu0 0
    %2895 = vmatprep.subr.bf16.mxu0 0
    %2896 = vmatpush2.bf16.msra.mxu0 0
    %2897 = vmatprep.subr.bf16.mxu0 0
    %2898 = vmatpush2.bf16.msra.mxu0 0
    %2899 = vmatprep.subr.bf16.mxu0 0
    %2900 = vmatpush2.bf16.msra.mxu0 0
    %2901 = vmatprep.subr.bf16.mxu0 0
    %2902 = vmatpush2.bf16.msra.mxu0 0
    %2903 = vmatprep.mubr.bf16.mxu0 0
    %2904 = vmatmul.mubr.bf16.gmra.mxu0 %v2746
    %v2905 = vpop.f32.mrf.mxu0
    %v2906 = vadd.f32 %v2865, %v2905
    %v2907 = vpop.f32.mrf.mxu0
    %v2908 = vadd.f32 %v2867, %v2907
    %v2909 = vpop.f32.mrf.mxu0
    %v2910 = vpop.f32.mrf.mxu0
    %2911 = vdwg.mxu0
    %2912 = vmatprep.subr.bf16.mxu0 %v2020
    %2913 = vmatpush1.bf16.msra.mxu0 %v2019
    %2914 = vmatprep.subr.bf16.mxu0 %v2012
    %2915 = vmatpush1.bf16.msra.mxu0 %v2011
    %2916 = vmatprep.subr.bf16.mxu0 %v2004
    %2917 = vmatpush1.bf16.msra.mxu0 %v2003
    %2918 = vmatprep.subr.bf16.mxu0 %v1996
    %2919 = vmatpush1.bf16.msra.mxu0 %v1995
    %2920 = vmatprep.subr.bf16.mxu0 %v1988
    %2921 = vmatpush1.bf16.msra.mxu0 %v1987
    %2922 = vmatprep.subr.bf16.mxu0 %v1980
    %2923 = vmatpush1.bf16.msra.mxu0 %v1979
    %2924 = vmatprep.subr.bf16.mxu0 %v1972
    %2925 = vmatpush1.bf16.msra.mxu0 %v1971
    %2926 = vmatprep.subr.bf16.mxu0 %v1964
    %2927 = vmatpush1.bf16.msra.mxu0 %v1963
    %2928 = vmatprep.subr.bf16.mxu0 %v2084
    %2929 = vmatpush2.bf16.msra.mxu0 %v2083
    %2930 = vmatprep.subr.bf16.mxu0 %v2076
    %2931 = vmatpush2.bf16.msra.mxu0 %v2075
    %2932 = vmatprep.subr.bf16.mxu0 %v2068
    %2933 = vmatpush2.bf16.msra.mxu0 %v2067
    %2934 = vmatprep.subr.bf16.mxu0 %v2060
    %2935 = vmatpush2.bf16.msra.mxu0 %v2059
    %2936 = vmatprep.subr.bf16.mxu0 %v2052
    %2937 = vmatpush2.bf16.msra.mxu0 %v2051
    %2938 = vmatprep.subr.bf16.mxu0 %v2044
    %2939 = vmatpush2.bf16.msra.mxu0 %v2043
    %2940 = vmatprep.subr.bf16.mxu0 %v2036
    %2941 = vmatpush2.bf16.msra.mxu0 %v2035
    %2942 = vmatprep.subr.bf16.mxu0 %v2028
    %2943 = vmatpush2.bf16.msra.mxu0 %v2027
    %2944 = vmatprep.mubr.bf16.mxu0 %v171
    %2945 = vmatmul.mubr.bf16.gmra.mxu0 %v170
    %v2946 = vpop.f32.mrf.mxu0
    %v2947 = vadd.f32 %v697, %v2946
    %v2948 = vpop.f32.mrf.mxu0
    %v2949 = vadd.f32 %v699, %v2948
    %v2950 = vpop.f32.mrf.mxu0
    %v2951 = vpop.f32.mrf.mxu0
    %2952 = vdwg.mxu0
    %2953 = vmatprep.subr.bf16.mxu0 %v2148
    %2954 = vmatpush1.bf16.msra.mxu0 %v2147
    %2955 = vmatprep.subr.bf16.mxu0 %v2140
    %2956 = vmatpush1.bf16.msra.mxu0 %v2139
    %2957 = vmatprep.subr.bf16.mxu0 %v2132
    %2958 = vmatpush1.bf16.msra.mxu0 %v2131
    %2959 = vmatprep.subr.bf16.mxu0 %v2124
    %2960 = vmatpush1.bf16.msra.mxu0 %v2123
    %2961 = vmatprep.subr.bf16.mxu0 %v2116
    %2962 = vmatpush1.bf16.msra.mxu0 %v2115
    %2963 = vmatprep.subr.bf16.mxu0 %v2108
    %2964 = vmatpush1.bf16.msra.mxu0 %v2107
    %2965 = vmatprep.subr.bf16.mxu0 %v2100
    %2966 = vmatpush1.bf16.msra.mxu0 %v2099
    %2967 = vmatprep.subr.bf16.mxu0 %v2092
    %2968 = vmatpush1.bf16.msra.mxu0 %v2091
    %2969 = vmatprep.subr.bf16.mxu0 %v2212
    %2970 = vmatpush2.bf16.msra.mxu0 %v2211
    %2971 = vmatprep.subr.bf16.mxu0 %v2204
    %2972 = vmatpush2.bf16.msra.mxu0 %v2203
    %2973 = vmatprep.subr.bf16.mxu0 %v2196
    %2974 = vmatpush2.bf16.msra.mxu0 %v2195
    %2975 = vmatprep.subr.bf16.mxu0 %v2188
    %2976 = vmatpush2.bf16.msra.mxu0 %v2187
    %2977 = vmatprep.subr.bf16.mxu0 %v2180
    %2978 = vmatpush2.bf16.msra.mxu0 %v2179
    %2979 = vmatprep.subr.bf16.mxu0 %v2172
    %2980 = vmatpush2.bf16.msra.mxu0 %v2171
    %2981 = vmatprep.subr.bf16.mxu0 %v2164
    %2982 = vmatpush2.bf16.msra.mxu0 %v2163
    %2983 = vmatprep.subr.bf16.mxu0 %v2156
    %2984 = vmatpush2.bf16.msra.mxu0 %v2155
    %2985 = vmatprep.mubr.bf16.mxu0 %v173
    %2986 = vmatmul.mubr.bf16.gmra.mxu0 %v172
    %v2987 = vpop.f32.mrf.mxu0
    %v2988 = vadd.f32 %v2947, %v2987
    %v2989 = vpop.f32.mrf.mxu0
    %v2990 = vadd.f32 %v2949, %v2989
    %v2991 = vpop.f32.mrf.mxu0
    %v2992 = vpop.f32.mrf.mxu0
    %2993 = vdwg.mxu0
    %2994 = vmatprep.subr.bf16.mxu0 %v2276
    %2995 = vmatpush1.bf16.msra.mxu0 %v2275
    %2996 = vmatprep.subr.bf16.mxu0 %v2268
    %2997 = vmatpush1.bf16.msra.mxu0 %v2267
    %2998 = vmatprep.subr.bf16.mxu0 %v2260
    %2999 = vmatpush1.bf16.msra.mxu0 %v2259
    %3000 = vmatprep.subr.bf16.mxu0 %v2252
    %3001 = vmatpush1.bf16.msra.mxu0 %v2251
    %3002 = vmatprep.subr.bf16.mxu0 %v2244
    %3003 = vmatpush1.bf16.msra.mxu0 %v2243
    %3004 = vmatprep.subr.bf16.mxu0 %v2236
    %3005 = vmatpush1.bf16.msra.mxu0 %v2235
    %3006 = vmatprep.subr.bf16.mxu0 %v2228
    %3007 = vmatpush1.bf16.msra.mxu0 %v2227
    %3008 = vmatprep.subr.bf16.mxu0 %v2220
    %3009 = vmatpush1.bf16.msra.mxu0 %v2219
    %3010 = vmatprep.subr.bf16.mxu0 %v2340
    %3011 = vmatpush2.bf16.msra.mxu0 %v2339
    %3012 = vmatprep.subr.bf16.mxu0 %v2332
    %3013 = vmatpush2.bf16.msra.mxu0 %v2331
    %3014 = vmatprep.subr.bf16.mxu0 %v2324
    %3015 = vmatpush2.bf16.msra.mxu0 %v2323
    %3016 = vmatprep.subr.bf16.mxu0 %v2316
    %3017 = vmatpush2.bf16.msra.mxu0 %v2315
    %3018 = vmatprep.subr.bf16.mxu0 %v2308
    %3019 = vmatpush2.bf16.msra.mxu0 %v2307
    %3020 = vmatprep.subr.bf16.mxu0 %v2300
    %3021 = vmatpush2.bf16.msra.mxu0 %v2299
    %3022 = vmatprep.subr.bf16.mxu0 %v2292
    %3023 = vmatpush2.bf16.msra.mxu0 %v2291
    %3024 = vmatprep.subr.bf16.mxu0 %v2284
    %3025 = vmatpush2.bf16.msra.mxu0 %v2283
    %3026 = vmatprep.mubr.bf16.mxu0 %v175
    %3027 = vmatmul.mubr.bf16.gmra.mxu0 %v174
    %v3028 = vpop.f32.mrf.mxu0
    %v3029 = vadd.f32 %v2988, %v3028
    %v3030 = vpop.f32.mrf.mxu0
    %v3031 = vadd.f32 %v2990, %v3030
    %v3032 = vpop.f32.mrf.mxu0
    %v3033 = vpop.f32.mrf.mxu0
    %3034 = vdwg.mxu0
    %3035 = vmatprep.subr.bf16.mxu0 0
    %3036 = vmatpush1.bf16.msra.mxu0 0
    %3037 = vmatprep.subr.bf16.mxu0 0
    %3038 = vmatpush1.bf16.msra.mxu0 0
    %3039 = vmatprep.subr.bf16.mxu0 0
    %3040 = vmatpush1.bf16.msra.mxu0 0
    %3041 = vmatprep.subr.bf16.mxu0 0
    %3042 = vmatpush1.bf16.msra.mxu0 0
    %3043 = vmatprep.subr.bf16.mxu0 0
    %3044 = vmatpush1.bf16.msra.mxu0 0
    %3045 = vmatprep.subr.bf16.mxu0 0
    %3046 = vmatpush1.bf16.msra.mxu0 0
    %3047 = vmatprep.subr.bf16.mxu0 0
    %3048 = vmatpush1.bf16.msra.mxu0 0
    %3049 = vmatprep.subr.bf16.mxu0 %v2348
    %3050 = vmatpush1.bf16.msra.mxu0 %v2347
    %3051 = vmatprep.subr.bf16.mxu0 0
    %3052 = vmatpush2.bf16.msra.mxu0 0
    %3053 = vmatprep.subr.bf16.mxu0 0
    %3054 = vmatpush2.bf16.msra.mxu0 0
    %3055 = vmatprep.subr.bf16.mxu0 0
    %3056 = vmatpush2.bf16.msra.mxu0 0
    %3057 = vmatprep.subr.bf16.mxu0 0
    %3058 = vmatpush2.bf16.msra.mxu0 0
    %3059 = vmatprep.subr.bf16.mxu0 0
    %3060 = vmatpush2.bf16.msra.mxu0 0
    %3061 = vmatprep.subr.bf16.mxu0 0
    %3062 = vmatpush2.bf16.msra.mxu0 0
    %3063 = vmatprep.subr.bf16.mxu0 0
    %3064 = vmatpush2.bf16.msra.mxu0 0
    %3065 = vmatprep.subr.bf16.mxu0 0
    %3066 = vmatpush2.bf16.msra.mxu0 0
    %3067 = vmatprep.mubr.bf16.mxu0 0
    %3068 = vmatmul.mubr.bf16.gmra.mxu0 %v2746
    %v3069 = vpop.f32.mrf.mxu0
    %v3070 = vadd.f32 %v3029, %v3069
    %v3071 = vpop.f32.mrf.mxu0
    %v3072 = vadd.f32 %v3031, %v3071
    %v3073 = vpop.f32.mrf.mxu0
    %v3074 = vpop.f32.mrf.mxu0
    %3075 = vdwg.mxu0
    %3076 = vmatprep.subr.bf16.mxu0 %v2022
    %3077 = vmatpush1.bf16.msra.mxu0 %v2021
    %3078 = vmatprep.subr.bf16.mxu0 %v2014
    %3079 = vmatpush1.bf16.msra.mxu0 %v2013
    %3080 = vmatprep.subr.bf16.mxu0 %v2006
    %3081 = vmatpush1.bf16.msra.mxu0 %v2005
    %3082 = vmatprep.subr.bf16.mxu0 %v1998
    %3083 = vmatpush1.bf16.msra.mxu0 %v1997
    %3084 = vmatprep.subr.bf16.mxu0 %v1990
    %3085 = vmatpush1.bf16.msra.mxu0 %v1989
    %3086 = vmatprep.subr.bf16.mxu0 %v1982
    %3087 = vmatpush1.bf16.msra.mxu0 %v1981
    %3088 = vmatprep.subr.bf16.mxu0 %v1974
    %3089 = vmatpush1.bf16.msra.mxu0 %v1973
    %3090 = vmatprep.subr.bf16.mxu0 %v1966
    %3091 = vmatpush1.bf16.msra.mxu0 %v1965
    %3092 = vmatprep.subr.bf16.mxu0 %v2086
    %3093 = vmatpush2.bf16.msra.mxu0 %v2085
    %3094 = vmatprep.subr.bf16.mxu0 %v2078
    %3095 = vmatpush2.bf16.msra.mxu0 %v2077
    %3096 = vmatprep.subr.bf16.mxu0 %v2070
    %3097 = vmatpush2.bf16.msra.mxu0 %v2069
    %3098 = vmatprep.subr.bf16.mxu0 %v2062
    %3099 = vmatpush2.bf16.msra.mxu0 %v2061
    %3100 = vmatprep.subr.bf16.mxu0 %v2054
    %3101 = vmatpush2.bf16.msra.mxu0 %v2053
    %3102 = vmatprep.subr.bf16.mxu0 %v2046
    %3103 = vmatpush2.bf16.msra.mxu0 %v2045
    %3104 = vmatprep.subr.bf16.mxu0 %v2038
    %3105 = vmatpush2.bf16.msra.mxu0 %v2037
    %3106 = vmatprep.subr.bf16.mxu0 %v2030
    %3107 = vmatpush2.bf16.msra.mxu0 %v2029
    %3108 = vmatprep.mubr.bf16.mxu0 %v171
    %3109 = vmatmul.mubr.bf16.gmra.mxu0 %v170
    %v3110 = vpop.f32.mrf.mxu0
    %v3111 = vadd.f32 %v738, %v3110
    %v3112 = vpop.f32.mrf.mxu0
    %v3113 = vadd.f32 %v740, %v3112
    %v3114 = vpop.f32.mrf.mxu0
    %v3115 = vpop.f32.mrf.mxu0
    %3116 = vdwg.mxu0
    %3117 = vmatprep.subr.bf16.mxu0 %v2150
    %3118 = vmatpush1.bf16.msra.mxu0 %v2149
    %3119 = vmatprep.subr.bf16.mxu0 %v2142
    %3120 = vmatpush1.bf16.msra.mxu0 %v2141
    %3121 = vmatprep.subr.bf16.mxu0 %v2134
    %3122 = vmatpush1.bf16.msra.mxu0 %v2133
    %3123 = vmatprep.subr.bf16.mxu0 %v2126
    %3124 = vmatpush1.bf16.msra.mxu0 %v2125
    %3125 = vmatprep.subr.bf16.mxu0 %v2118
    %3126 = vmatpush1.bf16.msra.mxu0 %v2117
    %3127 = vmatprep.subr.bf16.mxu0 %v2110
    %3128 = vmatpush1.bf16.msra.mxu0 %v2109
    %3129 = vmatprep.subr.bf16.mxu0 %v2102
    %3130 = vmatpush1.bf16.msra.mxu0 %v2101
    %3131 = vmatprep.subr.bf16.mxu0 %v2094
    %3132 = vmatpush1.bf16.msra.mxu0 %v2093
    %3133 = vmatprep.subr.bf16.mxu0 %v2214
    %3134 = vmatpush2.bf16.msra.mxu0 %v2213
    %3135 = vmatprep.subr.bf16.mxu0 %v2206
    %3136 = vmatpush2.bf16.msra.mxu0 %v2205
    %3137 = vmatprep.subr.bf16.mxu0 %v2198
    %3138 = vmatpush2.bf16.msra.mxu0 %v2197
    %3139 = vmatprep.subr.bf16.mxu0 %v2190
    %3140 = vmatpush2.bf16.msra.mxu0 %v2189
    %3141 = vmatprep.subr.bf16.mxu0 %v2182
    %3142 = vmatpush2.bf16.msra.mxu0 %v2181
    %3143 = vmatprep.subr.bf16.mxu0 %v2174
    %3144 = vmatpush2.bf16.msra.mxu0 %v2173
    %3145 = vmatprep.subr.bf16.mxu0 %v2166
    %3146 = vmatpush2.bf16.msra.mxu0 %v2165
    %3147 = vmatprep.subr.bf16.mxu0 %v2158
    %3148 = vmatpush2.bf16.msra.mxu0 %v2157
    %3149 = vmatprep.mubr.bf16.mxu0 %v173
    %3150 = vmatmul.mubr.bf16.gmra.mxu0 %v172
    %v3151 = vpop.f32.mrf.mxu0
    %v3152 = vadd.f32 %v3111, %v3151
    %v3153 = vpop.f32.mrf.mxu0
    %v3154 = vadd.f32 %v3113, %v3153
    %v3155 = vpop.f32.mrf.mxu0
    %v3156 = vpop.f32.mrf.mxu0
    %3157 = vdwg.mxu0
    %3158 = vmatprep.subr.bf16.mxu0 %v2278
    %3159 = vmatpush1.bf16.msra.mxu0 %v2277
    %3160 = vmatprep.subr.bf16.mxu0 %v2270
    %3161 = vmatpush1.bf16.msra.mxu0 %v2269
    %3162 = vmatprep.subr.bf16.mxu0 %v2262
    %3163 = vmatpush1.bf16.msra.mxu0 %v2261
    %3164 = vmatprep.subr.bf16.mxu0 %v2254
    %3165 = vmatpush1.bf16.msra.mxu0 %v2253
    %3166 = vmatprep.subr.bf16.mxu0 %v2246
    %3167 = vmatpush1.bf16.msra.mxu0 %v2245
    %3168 = vmatprep.subr.bf16.mxu0 %v2238
    %3169 = vmatpush1.bf16.msra.mxu0 %v2237
    %3170 = vmatprep.subr.bf16.mxu0 %v2230
    %3171 = vmatpush1.bf16.msra.mxu0 %v2229
    %3172 = vmatprep.subr.bf16.mxu0 %v2222
    %3173 = vmatpush1.bf16.msra.mxu0 %v2221
    %3174 = vmatprep.subr.bf16.mxu0 %v2342
    %3175 = vmatpush2.bf16.msra.mxu0 %v2341
    %3176 = vmatprep.subr.bf16.mxu0 %v2334
    %3177 = vmatpush2.bf16.msra.mxu0 %v2333
    %3178 = vmatprep.subr.bf16.mxu0 %v2326
    %3179 = vmatpush2.bf16.msra.mxu0 %v2325
    %3180 = vmatprep.subr.bf16.mxu0 %v2318
    %3181 = vmatpush2.bf16.msra.mxu0 %v2317
    %3182 = vmatprep.subr.bf16.mxu0 %v2310
    %3183 = vmatpush2.bf16.msra.mxu0 %v2309
    %3184 = vmatprep.subr.bf16.mxu0 %v2302
    %3185 = vmatpush2.bf16.msra.mxu0 %v2301
    %3186 = vmatprep.subr.bf16.mxu0 %v2294
    %3187 = vmatpush2.bf16.msra.mxu0 %v2293
    %3188 = vmatprep.subr.bf16.mxu0 %v2286
    %3189 = vmatpush2.bf16.msra.mxu0 %v2285
    %3190 = vmatprep.mubr.bf16.mxu0 %v175
    %3191 = vmatmul.mubr.bf16.gmra.mxu0 %v174
    %v3192 = vpop.f32.mrf.mxu0
    %v3193 = vadd.f32 %v3152, %v3192
    %v3194 = vpop.f32.mrf.mxu0
    %v3195 = vadd.f32 %v3154, %v3194
    %v3196 = vpop.f32.mrf.mxu0
    %v3197 = vpop.f32.mrf.mxu0
    %3198 = vdwg.mxu0
    %3199 = vmatprep.subr.bf16.mxu0 0
    %3200 = vmatpush1.bf16.msra.mxu0 0
    %3201 = vmatprep.subr.bf16.mxu0 0
    %3202 = vmatpush1.bf16.msra.mxu0 0
    %3203 = vmatprep.subr.bf16.mxu0 0
    %3204 = vmatpush1.bf16.msra.mxu0 0
    %3205 = vmatprep.subr.bf16.mxu0 0
    %3206 = vmatpush1.bf16.msra.mxu0 0
    %3207 = vmatprep.subr.bf16.mxu0 0
    %3208 = vmatpush1.bf16.msra.mxu0 0
    %3209 = vmatprep.subr.bf16.mxu0 0
    %3210 = vmatpush1.bf16.msra.mxu0 0
    %3211 = vmatprep.subr.bf16.mxu0 0
    %3212 = vmatpush1.bf16.msra.mxu0 0
    %3213 = vmatprep.subr.bf16.mxu0 %v2350
    %3214 = vmatpush1.bf16.msra.mxu0 %v2349
    %3215 = vmatprep.subr.bf16.mxu0 0
    %3216 = vmatpush2.bf16.msra.mxu0 0
    %3217 = vmatprep.subr.bf16.mxu0 0
    %3218 = vmatpush2.bf16.msra.mxu0 0
    %3219 = vmatprep.subr.bf16.mxu0 0
    %3220 = vmatpush2.bf16.msra.mxu0 0
    %3221 = vmatprep.subr.bf16.mxu0 0
    %3222 = vmatpush2.bf16.msra.mxu0 0
    %3223 = vmatprep.subr.bf16.mxu0 0
    %3224 = vmatpush2.bf16.msra.mxu0 0
    %3225 = vmatprep.subr.bf16.mxu0 0
    %3226 = vmatpush2.bf16.msra.mxu0 0
    %3227 = vmatprep.subr.bf16.mxu0 0
    %3228 = vmatpush2.bf16.msra.mxu0 0
    %3229 = vmatprep.subr.bf16.mxu0 0
    %3230 = vmatpush2.bf16.msra.mxu0 0
    %3231 = vmatprep.mubr.bf16.mxu0 0
    %3232 = vmatmul.mubr.bf16.gmra.mxu0 %v2746
    %v3233 = vpop.f32.mrf.mxu0
    %v3234 = vadd.f32 %v3193, %v3233
    %v3235 = vpop.f32.mrf.mxu0
    %v3236 = vadd.f32 %v3195, %v3235
    %v3237 = vpop.f32.mrf.mxu0
    %v3238 = vpop.f32.mrf.mxu0
    %3239 = vdwg.mxu0
    %3240 = vmatprep.subr.bf16.mxu0 %v2024
    %3241 = vmatpush1.bf16.msra.mxu0 %v2023
    %3242 = vmatprep.subr.bf16.mxu0 %v2016
    %3243 = vmatpush1.bf16.msra.mxu0 %v2015
    %3244 = vmatprep.subr.bf16.mxu0 %v2008
    %3245 = vmatpush1.bf16.msra.mxu0 %v2007
    %3246 = vmatprep.subr.bf16.mxu0 %v2000
    %3247 = vmatpush1.bf16.msra.mxu0 %v1999
    %3248 = vmatprep.subr.bf16.mxu0 %v1992
    %3249 = vmatpush1.bf16.msra.mxu0 %v1991
    %3250 = vmatprep.subr.bf16.mxu0 %v1984
    %3251 = vmatpush1.bf16.msra.mxu0 %v1983
    %3252 = vmatprep.subr.bf16.mxu0 %v1976
    %3253 = vmatpush1.bf16.msra.mxu0 %v1975
    %3254 = vmatprep.subr.bf16.mxu0 %v1968
    %3255 = vmatpush1.bf16.msra.mxu0 %v1967
    %3256 = vmatprep.subr.bf16.mxu0 %v2088
    %3257 = vmatpush2.bf16.msra.mxu0 %v2087
    %3258 = vmatprep.subr.bf16.mxu0 %v2080
    %3259 = vmatpush2.bf16.msra.mxu0 %v2079
    %3260 = vmatprep.subr.bf16.mxu0 %v2072
    %3261 = vmatpush2.bf16.msra.mxu0 %v2071
    %3262 = vmatprep.subr.bf16.mxu0 %v2064
    %3263 = vmatpush2.bf16.msra.mxu0 %v2063
    %3264 = vmatprep.subr.bf16.mxu0 %v2056
    %3265 = vmatpush2.bf16.msra.mxu0 %v2055
    %3266 = vmatprep.subr.bf16.mxu0 %v2048
    %3267 = vmatpush2.bf16.msra.mxu0 %v2047
    %3268 = vmatprep.subr.bf16.mxu0 %v2040
    %3269 = vmatpush2.bf16.msra.mxu0 %v2039
    %3270 = vmatprep.subr.bf16.mxu0 %v2032
    %3271 = vmatpush2.bf16.msra.mxu0 %v2031
    %3272 = vmatprep.mubr.bf16.mxu0 %v171
    %3273 = vmatmul.mubr.bf16.gmra.mxu0 %v170
    %v3274 = vpop.f32.mrf.mxu0
    %v3275 = vadd.f32 %v779, %v3274
    %v3276 = vpop.f32.mrf.mxu0
    %v3277 = vadd.f32 %v781, %v3276
    %v3278 = vpop.f32.mrf.mxu0
    %v3279 = vpop.f32.mrf.mxu0
    %3280 = vdwg.mxu0
    %3281 = vmatprep.subr.bf16.mxu0 %v2152
    %3282 = vmatpush1.bf16.msra.mxu0 %v2151
    %3283 = vmatprep.subr.bf16.mxu0 %v2144
    %3284 = vmatpush1.bf16.msra.mxu0 %v2143
    %3285 = vmatprep.subr.bf16.mxu0 %v2136
    %3286 = vmatpush1.bf16.msra.mxu0 %v2135
    %3287 = vmatprep.subr.bf16.mxu0 %v2128
    %3288 = vmatpush1.bf16.msra.mxu0 %v2127
    %3289 = vmatprep.subr.bf16.mxu0 %v2120
    %3290 = vmatpush1.bf16.msra.mxu0 %v2119
    %3291 = vmatprep.subr.bf16.mxu0 %v2112
    %3292 = vmatpush1.bf16.msra.mxu0 %v2111
    %3293 = vmatprep.subr.bf16.mxu0 %v2104
    %3294 = vmatpush1.bf16.msra.mxu0 %v2103
    %3295 = vmatprep.subr.bf16.mxu0 %v2096
    %3296 = vmatpush1.bf16.msra.mxu0 %v2095
    %3297 = vmatprep.subr.bf16.mxu0 %v2216
    %3298 = vmatpush2.bf16.msra.mxu0 %v2215
    %3299 = vmatprep.subr.bf16.mxu0 %v2208
    %3300 = vmatpush2.bf16.msra.mxu0 %v2207
    %3301 = vmatprep.subr.bf16.mxu0 %v2200
    %3302 = vmatpush2.bf16.msra.mxu0 %v2199
    %3303 = vmatprep.subr.bf16.mxu0 %v2192
    %3304 = vmatpush2.bf16.msra.mxu0 %v2191
    %3305 = vmatprep.subr.bf16.mxu0 %v2184
    %3306 = vmatpush2.bf16.msra.mxu0 %v2183
    %3307 = vmatprep.subr.bf16.mxu0 %v2176
    %3308 = vmatpush2.bf16.msra.mxu0 %v2175
    %3309 = vmatprep.subr.bf16.mxu0 %v2168
    %3310 = vmatpush2.bf16.msra.mxu0 %v2167
    %3311 = vmatprep.subr.bf16.mxu0 %v2160
    %3312 = vmatpush2.bf16.msra.mxu0 %v2159
    %3313 = vmatprep.mubr.bf16.mxu0 %v173
    %3314 = vmatmul.mubr.bf16.gmra.mxu0 %v172
    %v3315 = vpop.f32.mrf.mxu0
    %v3316 = vadd.f32 %v3275, %v3315
    %v3317 = vpop.f32.mrf.mxu0
    %v3318 = vadd.f32 %v3277, %v3317
    %v3319 = vpop.f32.mrf.mxu0
    %v3320 = vpop.f32.mrf.mxu0
    %3321 = vdwg.mxu0
    %3322 = vmatprep.subr.bf16.mxu0 %v2280
    %3323 = vmatpush1.bf16.msra.mxu0 %v2279
    %3324 = vmatprep.subr.bf16.mxu0 %v2272
    %3325 = vmatpush1.bf16.msra.mxu0 %v2271
    %3326 = vmatprep.subr.bf16.mxu0 %v2264
    %3327 = vmatpush1.bf16.msra.mxu0 %v2263
    %3328 = vmatprep.subr.bf16.mxu0 %v2256
    %3329 = vmatpush1.bf16.msra.mxu0 %v2255
    %3330 = vmatprep.subr.bf16.mxu0 %v2248
    %3331 = vmatpush1.bf16.msra.mxu0 %v2247
    %3332 = vmatprep.subr.bf16.mxu0 %v2240
    %3333 = vmatpush1.bf16.msra.mxu0 %v2239
    %3334 = vmatprep.subr.bf16.mxu0 %v2232
    %3335 = vmatpush1.bf16.msra.mxu0 %v2231
    %3336 = vmatprep.subr.bf16.mxu0 %v2224
    %3337 = vmatpush1.bf16.msra.mxu0 %v2223
    %3338 = vmatprep.subr.bf16.mxu0 %v2344
    %3339 = vmatpush2.bf16.msra.mxu0 %v2343
    %3340 = vmatprep.subr.bf16.mxu0 %v2336
    %3341 = vmatpush2.bf16.msra.mxu0 %v2335
    %3342 = vmatprep.subr.bf16.mxu0 %v2328
    %3343 = vmatpush2.bf16.msra.mxu0 %v2327
    %3344 = vmatprep.subr.bf16.mxu0 %v2320
    %3345 = vmatpush2.bf16.msra.mxu0 %v2319
    %3346 = vmatprep.subr.bf16.mxu0 %v2312
    %3347 = vmatpush2.bf16.msra.mxu0 %v2311
    %3348 = vmatprep.subr.bf16.mxu0 %v2304
    %3349 = vmatpush2.bf16.msra.mxu0 %v2303
    %3350 = vmatprep.subr.bf16.mxu0 %v2296
    %3351 = vmatpush2.bf16.msra.mxu0 %v2295
    %3352 = vmatprep.subr.bf16.mxu0 %v2288
    %3353 = vmatpush2.bf16.msra.mxu0 %v2287
    %3354 = vmatprep.mubr.bf16.mxu0 %v175
    %3355 = vmatmul.mubr.bf16.gmra.mxu0 %v174
    %v3356 = vpop.f32.mrf.mxu0
    %v3357 = vadd.f32 %v3316, %v3356
    %v3358 = vpop.f32.mrf.mxu0
    %v3359 = vadd.f32 %v3318, %v3358
    %v3360 = vpop.f32.mrf.mxu0
    %v3361 = vpop.f32.mrf.mxu0
    %3362 = vdwg.mxu0
    %3363 = vmatprep.subr.bf16.mxu0 0
    %3364 = vmatpush1.bf16.msra.mxu0 0
    %3365 = vmatprep.subr.bf16.mxu0 0
    %3366 = vmatpush1.bf16.msra.mxu0 0
    %3367 = vmatprep.subr.bf16.mxu0 0
    %3368 = vmatpush1.bf16.msra.mxu0 0
    %3369 = vmatprep.subr.bf16.mxu0 0
    %3370 = vmatpush1.bf16.msra.mxu0 0
    %3371 = vmatprep.subr.bf16.mxu0 0
    %3372 = vmatpush1.bf16.msra.mxu0 0
    %3373 = vmatprep.subr.bf16.mxu0 0
    %3374 = vmatpush1.bf16.msra.mxu0 0
    %3375 = vmatprep.subr.bf16.mxu0 0
    %3376 = vmatpush1.bf16.msra.mxu0 0
    %3377 = vmatprep.subr.bf16.mxu0 %v2352
    %3378 = vmatpush1.bf16.msra.mxu0 %v2351
    %3379 = vmatprep.subr.bf16.mxu0 0
    %3380 = vmatpush2.bf16.msra.mxu0 0
    %3381 = vmatprep.subr.bf16.mxu0 0
    %3382 = vmatpush2.bf16.msra.mxu0 0
    %3383 = vmatprep.subr.bf16.mxu0 0
    %3384 = vmatpush2.bf16.msra.mxu0 0
    %3385 = vmatprep.subr.bf16.mxu0 0
    %3386 = vmatpush2.bf16.msra.mxu0 0
    %3387 = vmatprep.subr.bf16.mxu0 0
    %3388 = vmatpush2.bf16.msra.mxu0 0
    %3389 = vmatprep.subr.bf16.mxu0 0
    %3390 = vmatpush2.bf16.msra.mxu0 0
    %3391 = vmatprep.subr.bf16.mxu0 0
    %3392 = vmatpush2.bf16.msra.mxu0 0
    %3393 = vmatprep.subr.bf16.mxu0 0
    %3394 = vmatpush2.bf16.msra.mxu0 0
    %3395 = vmatprep.mubr.bf16.mxu0 0
    %3396 = vmatmul.mubr.bf16.gmra.mxu0 %v2746
    %v3397 = vpop.f32.mrf.mxu0
    %v3398 = vadd.f32 %v3357, %v3397
    %v3399 = vpop.f32.mrf.mxu0
    %v3400 = vadd.f32 %v3359, %v3399
    %v3401 = vpop.f32.mrf.mxu0
    %v3402 = vpop.f32.mrf.mxu0
    %3403 = vdwg.mxu0
    %v3404 = vld [vmem:[#allocation8] sm:$0xff]
    %v3406 = vlaneseq
    %v3407 = vshrl.u32 %v3406, 7
    %v3408 = vsub.s32 0, %v3407
    %v3409 = vrot.slane %v3404, %v3408
    %v3410 = vlaneseq
    %v3411 = vshrl.u32 %v3410, 7
    %v3412 = vsub.s32 1, %v3411
    %v3413 = vrot.slane %v3404, %v3412
    %v3414 = vlaneseq
    %v3415 = vshrl.u32 %v3414, 7
    %v3416 = vsub.s32 2, %v3415
    %v3417 = vrot.slane %v3404, %v3416
    %v3418 = vlaneseq
    %v3419 = vshrl.u32 %v3418, 7
    %v3420 = vsub.s32 3, %v3419
    %v3421 = vrot.slane %v3404, %v3420
    %v3422 = vlaneseq
    %v3423 = vshrl.u32 %v3422, 7
    %v3424 = vsub.s32 4, %v3423
    %v3425 = vrot.slane %v3404, %v3424
    %v3426 = vlaneseq
    %v3427 = vshrl.u32 %v3426, 7
    %v3428 = vsub.s32 5, %v3427
    %v3429 = vrot.slane %v3404, %v3428
    %v3430 = vlaneseq
    %v3431 = vshrl.u32 %v3430, 7
    %v3432 = vsub.s32 6, %v3431
    %v3433 = vrot.slane %v3404, %v3432
    %v3434 = vlaneseq
    %v3435 = vshrl.u32 %v3434, 7
    %v3436 = vsub.s32 7, %v3435
    %v3437 = vrot.slane %v3404, %v3436
    %v3446 = vadd.f32 %v2906, %v3409
    %v3447 = vadd.f32 %v2908, %v3413
    %v3448 = vadd.f32 %v3070, %v3417
    %v3449 = vadd.f32 %v3072, %v3421
    %v3450 = vadd.f32 %v3234, %v3425
    %v3451 = vadd.f32 %v3236, %v3429
    %v3452 = vadd.f32 %v3398, %v3433
    %v3453 = vadd.f32 %v3400, %v3437
    %vm3454 = vcmp.gt.f32.partialorder %v3446, 0.0
    %vm3455 = vcmp.gt.f32.partialorder %v3447, 0.0
    %vm3456 = vcmp.gt.f32.partialorder %v3448, 0.0
    %vm3457 = vcmp.gt.f32.partialorder %v3449, 0.0
    %vm3458 = vcmp.gt.f32.partialorder %v3450, 0.0
    %vm3459 = vcmp.gt.f32.partialorder %v3451, 0.0
    %vm3460 = vcmp.gt.f32.partialorder %v3452, 0.0
    %vm3461 = vcmp.gt.f32.partialorder %v3453, 0.0
    %v3462 = vmul.f32 %v3446, 0.2
    %v3463 = vmul.f32 %v3447, 0.2
    %v3464 = vmul.f32 %v3448, 0.2
    %v3465 = vmul.f32 %v3449, 0.2
    %v3466 = vmul.f32 %v3450, 0.2
    %v3467 = vmul.f32 %v3451, 0.2
    %v3468 = vmul.f32 %v3452, 0.2
    %v3469 = vmul.f32 %v3453, 0.2
    %v3470 = vsel %vm3454, %v3446, %v3462
    %v3471 = vsel %vm3455, %v3447, %v3463
    %v3472 = vsel %vm3456, %v3448, %v3464
    %v3473 = vsel %vm3457, %v3449, %v3465
    %v3474 = vsel %vm3458, %v3450, %v3466
    %v3475 = vsel %vm3459, %v3451, %v3467
    %v3476 = vsel %vm3460, %v3452, %v3468
    %v3477 = vsel %vm3461, %v3453, %v3469
    %v3478 = vpack.c.bf16 %v3470, %v3470
    %v3479 = vpack.c.bf16 %v3471, %v3471
    %v3480 = vpack.c.bf16 %v3472, %v3472
    %v3481 = vpack.c.bf16 %v3473, %v3473
    %v3482 = vpack.c.bf16 %v3474, %v3474
    %v3483 = vpack.c.bf16 %v3475, %v3475
    %v3484 = vpack.c.bf16 %v3476, %v3476
    %v3485 = vpack.c.bf16 %v3477, %v3477
    %v3486 = vld [vmem:[#allocation10] sm:$0xff]
    %v3487 = vld [vmem:[#allocation10 + $0x8] sm:$0xff]
    %v3488 = vld [vmem:[#allocation10 + $0x10] sm:$0xff]
    %v3489 = vld [vmem:[#allocation10 + $0x18] sm:$0xff]
    %v3490 = vld [vmem:[#allocation10 + $0x20] sm:$0xff]
    %v3491 = vld [vmem:[#allocation10 + $0x28] sm:$0xff]
    %v3492 = vld [vmem:[#allocation10 + $0x30] sm:$0xff]
    %v3493 = vld [vmem:[#allocation10 + $0x38] sm:$0xff]
    %v3494 = vld [vmem:[#allocation10 + $0x40] sm:$0xff]
    %v3495 = vld [vmem:[#allocation10 + $0x48] sm:$0xff]
    %v3496 = vld [vmem:[#allocation10 + $0x50] sm:$0xff]
    %v3497 = vld [vmem:[#allocation10 + $0x58] sm:$0xff]
    %v3498 = vld [vmem:[#allocation10 + $0x60] sm:$0xff]
    %v3499 = vld [vmem:[#allocation10 + $0x68] sm:$0xff]
    %v3500 = vld [vmem:[#allocation10 + $0x70] sm:$0xff]
    %v3501 = vld [vmem:[#allocation10 + $0x78] sm:$0xff]
    %v3502 = vld [vmem:[#allocation10 + $0x80] sm:$0xff]
    %v3503 = vld [vmem:[#allocation10 + $0x88] sm:$0xff]
    %v3504 = vld [vmem:[#allocation10 + $0x90] sm:$0xff]
    %v3505 = vld [vmem:[#allocation10 + $0x98] sm:$0xff]
    %v3506 = vld [vmem:[#allocation10 + $0xa0] sm:$0xff]
    %v3507 = vld [vmem:[#allocation10 + $0xa8] sm:$0xff]
    %v3508 = vld [vmem:[#allocation10 + $0xb0] sm:$0xff]
    %v3509 = vld [vmem:[#allocation10 + $0xb8] sm:$0xff]
    %v3510 = vld [vmem:[#allocation10 + $0xc0] sm:$0xff]
    %v3511 = vld [vmem:[#allocation10 + $0xc8] sm:$0xff]
    %v3512 = vld [vmem:[#allocation10 + $0xd0] sm:$0xff]
    %v3513 = vld [vmem:[#allocation10 + $0xd8] sm:$0xff]
    %v3514 = vld [vmem:[#allocation10 + $0xe0] sm:$0xff]
    %v3515 = vld [vmem:[#allocation10 + $0xe8] sm:$0xff]
    %v3516 = vld [vmem:[#allocation10 + $0xf0] sm:$0xff]
    %v3517 = vld [vmem:[#allocation10 + $0xf8] sm:$0xff]
    %v3518 = vld [vmem:[#allocation10 + $0x100] sm:$0xff]
    %v3519 = vld [vmem:[#allocation10 + $0x108] sm:$0xff]
    %v3520 = vld [vmem:[#allocation10 + $0x110] sm:$0xff]
    %v3521 = vld [vmem:[#allocation10 + $0x118] sm:$0xff]
    %v3522 = vld [vmem:[#allocation10 + $0x120] sm:$0xff]
    %v3523 = vld [vmem:[#allocation10 + $0x128] sm:$0xff]
    %v3524 = vld [vmem:[#allocation10 + $0x130] sm:$0xff]
    %v3525 = vld [vmem:[#allocation10 + $0x138] sm:$0xff]
    %v3526 = vld [vmem:[#allocation10 + $0x140] sm:$0xff]
    %v3527 = vld [vmem:[#allocation10 + $0x148] sm:$0xff]
    %v3528 = vld [vmem:[#allocation10 + $0x150] sm:$0xff]
    %v3529 = vld [vmem:[#allocation10 + $0x158] sm:$0xff]
    %v3530 = vld [vmem:[#allocation10 + $0x160] sm:$0xff]
    %v3531 = vld [vmem:[#allocation10 + $0x168] sm:$0xff]
    %v3532 = vld [vmem:[#allocation10 + $0x170] sm:$0xff]
    %v3533 = vld [vmem:[#allocation10 + $0x178] sm:$0xff]
    %v3534 = vld [vmem:[#allocation10 + $0x180] sm:$0xff]
    %v3535 = vld [vmem:[#allocation10 + $0x188] sm:$0xff]
    %v3536 = vld [vmem:[#allocation10 + $0x190] sm:$0xff]
    %v3537 = vld [vmem:[#allocation10 + $0x198] sm:$0xff]
    %v3538 = vld [vmem:[#allocation10 + $0x1a0] sm:$0xff]
    %v3539 = vld [vmem:[#allocation10 + $0x1a8] sm:$0xff]
    %v3540 = vld [vmem:[#allocation10 + $0x1b0] sm:$0xff]
    %v3541 = vld [vmem:[#allocation10 + $0x1b8] sm:$0xff]
    %v3542 = vld [vmem:[#allocation10 + $0x1c0] sm:$0xff]
    %v3543 = vld [vmem:[#allocation10 + $0x1c8] sm:$0xff]
    %v3544 = vld [vmem:[#allocation10 + $0x1d0] sm:$0xff]
    %v3545 = vld [vmem:[#allocation10 + $0x1d8] sm:$0xff]
    %v3546 = vld [vmem:[#allocation10 + $0x1e0] sm:$0xff]
    %v3547 = vld [vmem:[#allocation10 + $0x1e8] sm:$0xff]
    %v3548 = vld [vmem:[#allocation10 + $0x1f0] sm:$0xff]
    %v3549 = vld [vmem:[#allocation10 + $0x1f8] sm:$0xff]
    %v3550 = vld [vmem:[#allocation10 + $0x200] sm:$0xff]
    %v3551 = vld [vmem:[#allocation10 + $0x208] sm:$0xff]
    %v3552 = vld [vmem:[#allocation10 + $0x210] sm:$0xff]
    %v3553 = vld [vmem:[#allocation10 + $0x218] sm:$0xff]
    %v3554 = vld [vmem:[#allocation10 + $0x220] sm:$0xff]
    %v3555 = vld [vmem:[#allocation10 + $0x228] sm:$0xff]
    %v3556 = vld [vmem:[#allocation10 + $0x230] sm:$0xff]
    %v3557 = vld [vmem:[#allocation10 + $0x238] sm:$0xff]
    %v3558 = vld [vmem:[#allocation10 + $0x240] sm:$0xff]
    %v3559 = vld [vmem:[#allocation10 + $0x248] sm:$0xff]
    %v3560 = vld [vmem:[#allocation10 + $0x250] sm:$0xff]
    %v3561 = vld [vmem:[#allocation10 + $0x258] sm:$0xff]
    %v3562 = vld [vmem:[#allocation10 + $0x260] sm:$0xff]
    %v3563 = vld [vmem:[#allocation10 + $0x268] sm:$0xff]
    %v3564 = vld [vmem:[#allocation10 + $0x270] sm:$0xff]
    %v3565 = vld [vmem:[#allocation10 + $0x278] sm:$0xff]
    %v3566 = vld [vmem:[#allocation10 + $0x280] sm:$0xff]
    %v3567 = vld [vmem:[#allocation10 + $0x288] sm:$0xff]
    %v3568 = vld [vmem:[#allocation10 + $0x290] sm:$0xff]
    %v3569 = vld [vmem:[#allocation10 + $0x298] sm:$0xff]
    %v3570 = vld [vmem:[#allocation10 + $0x2a0] sm:$0xff]
    %v3571 = vld [vmem:[#allocation10 + $0x2a8] sm:$0xff]
    %v3572 = vld [vmem:[#allocation10 + $0x2b0] sm:$0xff]
    %v3573 = vld [vmem:[#allocation10 + $0x2b8] sm:$0xff]
    %v3574 = vld [vmem:[#allocation10 + $0x2c0] sm:$0xff]
    %v3575 = vld [vmem:[#allocation10 + $0x2c8] sm:$0xff]
    %v3576 = vld [vmem:[#allocation10 + $0x2d0] sm:$0xff]
    %v3577 = vld [vmem:[#allocation10 + $0x2d8] sm:$0xff]
    %v3578 = vld [vmem:[#allocation10 + $0x2e0] sm:$0xff]
    %v3579 = vld [vmem:[#allocation10 + $0x2e8] sm:$0xff]
    %v3580 = vld [vmem:[#allocation10 + $0x2f0] sm:$0xff]
    %v3581 = vld [vmem:[#allocation10 + $0x2f8] sm:$0xff]
    %v3582 = vld [vmem:[#allocation10 + $0x300] sm:$0xff]
    %v3583 = vld [vmem:[#allocation10 + $0x308] sm:$0xff]
    %v3584 = vld [vmem:[#allocation10 + $0x310] sm:$0xff]
    %v3585 = vld [vmem:[#allocation10 + $0x318] sm:$0xff]
    %v3586 = vld [vmem:[#allocation10 + $0x320] sm:$0xff]
    %v3587 = vld [vmem:[#allocation10 + $0x328] sm:$0xff]
    %v3588 = vld [vmem:[#allocation10 + $0x330] sm:$0xff]
    %v3589 = vld [vmem:[#allocation10 + $0x338] sm:$0xff]
    %v3590 = vld [vmem:[#allocation10 + $0x340] sm:$0xff]
    %v3591 = vld [vmem:[#allocation10 + $0x348] sm:$0xff]
    %v3592 = vld [vmem:[#allocation10 + $0x350] sm:$0xff]
    %v3593 = vld [vmem:[#allocation10 + $0x358] sm:$0xff]
    %v3594 = vld [vmem:[#allocation10 + $0x360] sm:$0xff]
    %v3595 = vld [vmem:[#allocation10 + $0x368] sm:$0xff]
    %v3596 = vld [vmem:[#allocation10 + $0x370] sm:$0xff]
    %v3597 = vld [vmem:[#allocation10 + $0x378] sm:$0xff]
    %v3598 = vld [vmem:[#allocation10 + $0x380] sm:$0xff]
    %v3599 = vld [vmem:[#allocation10 + $0x388] sm:$0xff]
    %v3600 = vld [vmem:[#allocation10 + $0x390] sm:$0xff]
    %v3601 = vld [vmem:[#allocation10 + $0x398] sm:$0xff]
    %v3602 = vld [vmem:[#allocation10 + $0x3a0] sm:$0xff]
    %v3603 = vld [vmem:[#allocation10 + $0x3a8] sm:$0xff]
    %v3604 = vld [vmem:[#allocation10 + $0x3b0] sm:$0xff]
    %v3605 = vld [vmem:[#allocation10 + $0x3b8] sm:$0xff]
    %v3606 = vld [vmem:[#allocation10 + $0x3c0] sm:$0xff]
    %v3607 = vld [vmem:[#allocation10 + $0x3c8] sm:$0xff]
    %v3608 = vld [vmem:[#allocation10 + $0x3d0] sm:$0xff]
    %v3609 = vld [vmem:[#allocation10 + $0x3d8] sm:$0xff]
    %v3610 = vld [vmem:[#allocation10 + $0x3e0] sm:$0xff]
    %v3611 = vld [vmem:[#allocation10 + $0x3e8] sm:$0xff]
    %v3612 = vld [vmem:[#allocation10 + $0x3f0] sm:$0xff]
    %v3613 = vld [vmem:[#allocation10 + $0x3f8] sm:$0xff]
    %v3614 = vld [vmem:[#allocation10 + $0x400] sm:$0xff]
    %v3615 = vld [vmem:[#allocation10 + $0x408] sm:$0xff]
    %v3616 = vld [vmem:[#allocation10 + $0x410] sm:$0xff]
    %v3617 = vld [vmem:[#allocation10 + $0x418] sm:$0xff]
    %v3618 = vld [vmem:[#allocation10 + $0x420] sm:$0xff]
    %v3619 = vld [vmem:[#allocation10 + $0x428] sm:$0xff]
    %v3620 = vld [vmem:[#allocation10 + $0x430] sm:$0xff]
    %v3621 = vld [vmem:[#allocation10 + $0x438] sm:$0xff]
    %v3622 = vld [vmem:[#allocation10 + $0x440] sm:$0xff]
    %v3623 = vld [vmem:[#allocation10 + $0x448] sm:$0xff]
    %v3624 = vld [vmem:[#allocation10 + $0x450] sm:$0xff]
    %v3625 = vld [vmem:[#allocation10 + $0x458] sm:$0xff]
    %v3626 = vld [vmem:[#allocation10 + $0x460] sm:$0xff]
    %v3627 = vld [vmem:[#allocation10 + $0x468] sm:$0xff]
    %v3628 = vld [vmem:[#allocation10 + $0x470] sm:$0xff]
    %v3629 = vld [vmem:[#allocation10 + $0x478] sm:$0xff]
    %v3630 = vld [vmem:[#allocation10 + $0x480] sm:$0xff]
    %v3631 = vld [vmem:[#allocation10 + $0x488] sm:$0xff]
    %v3632 = vld [vmem:[#allocation10 + $0x490] sm:$0xff]
    %v3633 = vld [vmem:[#allocation10 + $0x498] sm:$0xff]
    %v3634 = vld [vmem:[#allocation10 + $0x4a0] sm:$0xff]
    %v3635 = vld [vmem:[#allocation10 + $0x4a8] sm:$0xff]
    %v3636 = vld [vmem:[#allocation10 + $0x4b0] sm:$0xff]
    %v3637 = vld [vmem:[#allocation10 + $0x4b8] sm:$0xff]
    %v3638 = vld [vmem:[#allocation10 + $0x4c0] sm:$0xff]
    %v3639 = vld [vmem:[#allocation10 + $0x4c8] sm:$0xff]
    %v3640 = vld [vmem:[#allocation10 + $0x4d0] sm:$0xff]
    %v3641 = vld [vmem:[#allocation10 + $0x4d8] sm:$0xff]
    %v3642 = vld [vmem:[#allocation10 + $0x4e0] sm:$0xff]
    %v3643 = vld [vmem:[#allocation10 + $0x4e8] sm:$0xff]
    %v3644 = vld [vmem:[#allocation10 + $0x4f0] sm:$0xff]
    %v3645 = vld [vmem:[#allocation10 + $0x4f8] sm:$0xff]
    %v3646 = vld [vmem:[#allocation10 + $0x500] sm:$0xff]
    %v3647 = vld [vmem:[#allocation10 + $0x508] sm:$0xff]
    %v3648 = vld [vmem:[#allocation10 + $0x510] sm:$0xff]
    %v3649 = vld [vmem:[#allocation10 + $0x518] sm:$0xff]
    %v3650 = vld [vmem:[#allocation10 + $0x520] sm:$0xff]
    %v3651 = vld [vmem:[#allocation10 + $0x528] sm:$0xff]
    %v3652 = vld [vmem:[#allocation10 + $0x530] sm:$0xff]
    %v3653 = vld [vmem:[#allocation10 + $0x538] sm:$0xff]
    %v3654 = vld [vmem:[#allocation10 + $0x540] sm:$0xff]
    %v3655 = vld [vmem:[#allocation10 + $0x548] sm:$0xff]
    %v3656 = vld [vmem:[#allocation10 + $0x550] sm:$0xff]
    %v3657 = vld [vmem:[#allocation10 + $0x558] sm:$0xff]
    %v3658 = vld [vmem:[#allocation10 + $0x560] sm:$0xff]
    %v3659 = vld [vmem:[#allocation10 + $0x568] sm:$0xff]
    %v3660 = vld [vmem:[#allocation10 + $0x570] sm:$0xff]
    %v3661 = vld [vmem:[#allocation10 + $0x578] sm:$0xff]
    %v3662 = vld [vmem:[#allocation10 + $0x580] sm:$0xff]
    %v3663 = vld [vmem:[#allocation10 + $0x588] sm:$0xff]
    %v3664 = vld [vmem:[#allocation10 + $0x590] sm:$0xff]
    %v3665 = vld [vmem:[#allocation10 + $0x598] sm:$0xff]
    %v3666 = vld [vmem:[#allocation10 + $0x5a0] sm:$0xff]
    %v3667 = vld [vmem:[#allocation10 + $0x5a8] sm:$0xff]
    %v3668 = vld [vmem:[#allocation10 + $0x5b0] sm:$0xff]
    %v3669 = vld [vmem:[#allocation10 + $0x5b8] sm:$0xff]
    %v3670 = vld [vmem:[#allocation10 + $0x5c0] sm:$0xff]
    %v3671 = vld [vmem:[#allocation10 + $0x5c8] sm:$0xff]
    %v3672 = vld [vmem:[#allocation10 + $0x5d0] sm:$0xff]
    %v3673 = vld [vmem:[#allocation10 + $0x5d8] sm:$0xff]
    %v3674 = vld [vmem:[#allocation10 + $0x5e0] sm:$0xff]
    %v3675 = vld [vmem:[#allocation10 + $0x5e8] sm:$0xff]
    %v3676 = vld [vmem:[#allocation10 + $0x5f0] sm:$0xff]
    %v3677 = vld [vmem:[#allocation10 + $0x5f8] sm:$0xff]
    %v3678 = vld [vmem:[#allocation10 + $0x600] sm:$0xff]
    %v3679 = vld [vmem:[#allocation10 + $0x608] sm:$0xff]
    %v3680 = vld [vmem:[#allocation10 + $0x610] sm:$0xff]
    %v3681 = vld [vmem:[#allocation10 + $0x618] sm:$0xff]
    %v3682 = vld [vmem:[#allocation10 + $0x620] sm:$0xff]
    %v3683 = vld [vmem:[#allocation10 + $0x628] sm:$0xff]
    %v3684 = vld [vmem:[#allocation10 + $0x630] sm:$0xff]
    %v3685 = vld [vmem:[#allocation10 + $0x638] sm:$0xff]
    %v3686 = vld [vmem:[#allocation10 + $0x640] sm:$0xff]
    %v3687 = vld [vmem:[#allocation10 + $0x648] sm:$0xff]
    %v3688 = vld [vmem:[#allocation10 + $0x650] sm:$0xff]
    %v3689 = vld [vmem:[#allocation10 + $0x658] sm:$0xff]
    %v3690 = vld [vmem:[#allocation10 + $0x660] sm:$0xff]
    %v3691 = vld [vmem:[#allocation10 + $0x668] sm:$0xff]
    %v3692 = vld [vmem:[#allocation10 + $0x670] sm:$0xff]
    %v3693 = vld [vmem:[#allocation10 + $0x678] sm:$0xff]
    %v3694 = vld [vmem:[#allocation10 + $0x680] sm:$0xff]
    %v3695 = vld [vmem:[#allocation10 + $0x688] sm:$0xff]
    %v3696 = vld [vmem:[#allocation10 + $0x690] sm:$0xff]
    %v3697 = vld [vmem:[#allocation10 + $0x698] sm:$0xff]
    %v3698 = vld [vmem:[#allocation10 + $0x6a0] sm:$0xff]
    %v3699 = vld [vmem:[#allocation10 + $0x6a8] sm:$0xff]
    %v3700 = vld [vmem:[#allocation10 + $0x6b0] sm:$0xff]
    %v3701 = vld [vmem:[#allocation10 + $0x6b8] sm:$0xff]
    %v3702 = vld [vmem:[#allocation10 + $0x6c0] sm:$0xff]
    %v3703 = vld [vmem:[#allocation10 + $0x6c8] sm:$0xff]
    %v3704 = vld [vmem:[#allocation10 + $0x6d0] sm:$0xff]
    %v3705 = vld [vmem:[#allocation10 + $0x6d8] sm:$0xff]
    %v3706 = vld [vmem:[#allocation10 + $0x6e0] sm:$0xff]
    %v3707 = vld [vmem:[#allocation10 + $0x6e8] sm:$0xff]
    %v3708 = vld [vmem:[#allocation10 + $0x6f0] sm:$0xff]
    %v3709 = vld [vmem:[#allocation10 + $0x6f8] sm:$0xff]
    %v3710 = vld [vmem:[#allocation10 + $0x700] sm:$0xff]
    %v3711 = vld [vmem:[#allocation10 + $0x708] sm:$0xff]
    %v3712 = vld [vmem:[#allocation10 + $0x710] sm:$0xff]
    %v3713 = vld [vmem:[#allocation10 + $0x718] sm:$0xff]
    %v3714 = vld [vmem:[#allocation10 + $0x720] sm:$0xff]
    %v3715 = vld [vmem:[#allocation10 + $0x728] sm:$0xff]
    %v3716 = vld [vmem:[#allocation10 + $0x730] sm:$0xff]
    %v3717 = vld [vmem:[#allocation10 + $0x738] sm:$0xff]
    %v3718 = vld [vmem:[#allocation10 + $0x740] sm:$0xff]
    %v3719 = vld [vmem:[#allocation10 + $0x748] sm:$0xff]
    %v3720 = vld [vmem:[#allocation10 + $0x750] sm:$0xff]
    %v3721 = vld [vmem:[#allocation10 + $0x758] sm:$0xff]
    %v3722 = vld [vmem:[#allocation10 + $0x760] sm:$0xff]
    %v3723 = vld [vmem:[#allocation10 + $0x768] sm:$0xff]
    %v3724 = vld [vmem:[#allocation10 + $0x770] sm:$0xff]
    %v3725 = vld [vmem:[#allocation10 + $0x778] sm:$0xff]
    %v3726 = vld [vmem:[#allocation10 + $0x780] sm:$0xff]
    %v3727 = vld [vmem:[#allocation10 + $0x788] sm:$0xff]
    %v3728 = vld [vmem:[#allocation10 + $0x790] sm:$0xff]
    %v3729 = vld [vmem:[#allocation10 + $0x798] sm:$0xff]
    %v3730 = vld [vmem:[#allocation10 + $0x7a0] sm:$0xff]
    %v3731 = vld [vmem:[#allocation10 + $0x7a8] sm:$0xff]
    %v3732 = vld [vmem:[#allocation10 + $0x7b0] sm:$0xff]
    %v3733 = vld [vmem:[#allocation10 + $0x7b8] sm:$0xff]
    %v3734 = vld [vmem:[#allocation10 + $0x7c0] sm:$0xff]
    %v3735 = vld [vmem:[#allocation10 + $0x7c8] sm:$0xff]
    %v3736 = vld [vmem:[#allocation10 + $0x7d0] sm:$0xff]
    %v3737 = vld [vmem:[#allocation10 + $0x7d8] sm:$0xff]
    %v3738 = vld [vmem:[#allocation10 + $0x7e0] sm:$0xff]
    %v3739 = vld [vmem:[#allocation10 + $0x7e8] sm:$0xff]
    %v3740 = vld [vmem:[#allocation10 + $0x7f0] sm:$0xff]
    %v3741 = vld [vmem:[#allocation10 + $0x7f8] sm:$0xff]
    %v3742 = vld [vmem:[#allocation11] sm:$0xf]
    %v3744 = vlaneseq
    %v3745 = vshrl.u32 %v3744, 7
    %v3746 = vsub.s32 0, %v3745
    %v3747 = vrot.slane %v3742, %v3746
    %v3748 = vlaneseq
    %v3749 = vshrl.u32 %v3748, 7
    %v3750 = vsub.s32 1, %v3749
    %v3751 = vrot.slane %v3742, %v3750
    %v3752 = vlaneseq
    %v3753 = vshrl.u32 %v3752, 7
    %v3754 = vsub.s32 2, %v3753
    %v3755 = vrot.slane %v3742, %v3754
    %v3756 = vlaneseq
    %v3757 = vshrl.u32 %v3756, 7
    %v3758 = vsub.s32 3, %v3757
    %v3759 = vrot.slane %v3742, %v3758
    %v4020 = vunpack.c.l.b16 %v3486
    %v4021 = vunpack.c.h.b16 %v3486
    %v4022 = vunpack.c.l.b16 %v3487
    %v4023 = vunpack.c.h.b16 %v3487
    %v4024 = vunpack.c.l.b16 %v3488
    %v4025 = vunpack.c.h.b16 %v3488
    %v4026 = vunpack.c.l.b16 %v3489
    %v4027 = vunpack.c.h.b16 %v3489
    %v4028 = vunpack.c.l.b16 %v3490
    %v4029 = vunpack.c.h.b16 %v3490
    %v4030 = vunpack.c.l.b16 %v3491
    %v4031 = vunpack.c.h.b16 %v3491
    %v4032 = vunpack.c.l.b16 %v3492
    %v4033 = vunpack.c.h.b16 %v3492
    %v4034 = vunpack.c.l.b16 %v3493
    %v4035 = vunpack.c.h.b16 %v3493
    %v4036 = vunpack.c.l.b16 %v3494
    %v4037 = vunpack.c.h.b16 %v3494
    %v4038 = vunpack.c.l.b16 %v3495
    %v4039 = vunpack.c.h.b16 %v3495
    %v4040 = vunpack.c.l.b16 %v3496
    %v4041 = vunpack.c.h.b16 %v3496
    %v4042 = vunpack.c.l.b16 %v3497
    %v4043 = vunpack.c.h.b16 %v3497
    %v4044 = vunpack.c.l.b16 %v3498
    %v4045 = vunpack.c.h.b16 %v3498
    %v4046 = vunpack.c.l.b16 %v3499
    %v4047 = vunpack.c.h.b16 %v3499
    %v4048 = vunpack.c.l.b16 %v3500
    %v4049 = vunpack.c.h.b16 %v3500
    %v4050 = vunpack.c.l.b16 %v3501
    %v4051 = vunpack.c.h.b16 %v3501
    %v4052 = vunpack.c.l.b16 %v3502
    %v4053 = vunpack.c.h.b16 %v3502
    %v4054 = vunpack.c.l.b16 %v3503
    %v4055 = vunpack.c.h.b16 %v3503
    %v4056 = vunpack.c.l.b16 %v3504
    %v4057 = vunpack.c.h.b16 %v3504
    %v4058 = vunpack.c.l.b16 %v3505
    %v4059 = vunpack.c.h.b16 %v3505
    %v4060 = vunpack.c.l.b16 %v3506
    %v4061 = vunpack.c.h.b16 %v3506
    %v4062 = vunpack.c.l.b16 %v3507
    %v4063 = vunpack.c.h.b16 %v3507
    %v4064 = vunpack.c.l.b16 %v3508
    %v4065 = vunpack.c.h.b16 %v3508
    %v4066 = vunpack.c.l.b16 %v3509
    %v4067 = vunpack.c.h.b16 %v3509
    %v4068 = vunpack.c.l.b16 %v3510
    %v4069 = vunpack.c.h.b16 %v3510
    %v4070 = vunpack.c.l.b16 %v3511
    %v4071 = vunpack.c.h.b16 %v3511
    %v4072 = vunpack.c.l.b16 %v3512
    %v4073 = vunpack.c.h.b16 %v3512
    %v4074 = vunpack.c.l.b16 %v3513
    %v4075 = vunpack.c.h.b16 %v3513
    %v4076 = vunpack.c.l.b16 %v3514
    %v4077 = vunpack.c.h.b16 %v3514
    %v4078 = vunpack.c.l.b16 %v3515
    %v4079 = vunpack.c.h.b16 %v3515
    %v4080 = vunpack.c.l.b16 %v3516
    %v4081 = vunpack.c.h.b16 %v3516
    %v4082 = vunpack.c.l.b16 %v3517
    %v4083 = vunpack.c.h.b16 %v3517
    %v4084 = vunpack.c.l.b16 %v3518
    %v4085 = vunpack.c.h.b16 %v3518
    %v4086 = vunpack.c.l.b16 %v3519
    %v4087 = vunpack.c.h.b16 %v3519
    %v4088 = vunpack.c.l.b16 %v3520
    %v4089 = vunpack.c.h.b16 %v3520
    %v4090 = vunpack.c.l.b16 %v3521
    %v4091 = vunpack.c.h.b16 %v3521
    %v4092 = vunpack.c.l.b16 %v3522
    %v4093 = vunpack.c.h.b16 %v3522
    %v4094 = vunpack.c.l.b16 %v3523
    %v4095 = vunpack.c.h.b16 %v3523
    %v4096 = vunpack.c.l.b16 %v3524
    %v4097 = vunpack.c.h.b16 %v3524
    %v4098 = vunpack.c.l.b16 %v3525
    %v4099 = vunpack.c.h.b16 %v3525
    %v4100 = vunpack.c.l.b16 %v3526
    %v4101 = vunpack.c.h.b16 %v3526
    %v4102 = vunpack.c.l.b16 %v3527
    %v4103 = vunpack.c.h.b16 %v3527
    %v4104 = vunpack.c.l.b16 %v3528
    %v4105 = vunpack.c.h.b16 %v3528
    %v4106 = vunpack.c.l.b16 %v3529
    %v4107 = vunpack.c.h.b16 %v3529
    %v4108 = vunpack.c.l.b16 %v3530
    %v4109 = vunpack.c.h.b16 %v3530
    %v4110 = vunpack.c.l.b16 %v3531
    %v4111 = vunpack.c.h.b16 %v3531
    %v4112 = vunpack.c.l.b16 %v3532
    %v4113 = vunpack.c.h.b16 %v3532
    %v4114 = vunpack.c.l.b16 %v3533
    %v4115 = vunpack.c.h.b16 %v3533
    %v4116 = vunpack.c.l.b16 %v3534
    %v4117 = vunpack.c.h.b16 %v3534
    %v4118 = vunpack.c.l.b16 %v3535
    %v4119 = vunpack.c.h.b16 %v3535
    %v4120 = vunpack.c.l.b16 %v3536
    %v4121 = vunpack.c.h.b16 %v3536
    %v4122 = vunpack.c.l.b16 %v3537
    %v4123 = vunpack.c.h.b16 %v3537
    %v4124 = vunpack.c.l.b16 %v3538
    %v4125 = vunpack.c.h.b16 %v3538
    %v4126 = vunpack.c.l.b16 %v3539
    %v4127 = vunpack.c.h.b16 %v3539
    %v4128 = vunpack.c.l.b16 %v3540
    %v4129 = vunpack.c.h.b16 %v3540
    %v4130 = vunpack.c.l.b16 %v3541
    %v4131 = vunpack.c.h.b16 %v3541
    %v4132 = vunpack.c.l.b16 %v3542
    %v4133 = vunpack.c.h.b16 %v3542
    %v4134 = vunpack.c.l.b16 %v3543
    %v4135 = vunpack.c.h.b16 %v3543
    %v4136 = vunpack.c.l.b16 %v3544
    %v4137 = vunpack.c.h.b16 %v3544
    %v4138 = vunpack.c.l.b16 %v3545
    %v4139 = vunpack.c.h.b16 %v3545
    %v4140 = vunpack.c.l.b16 %v3546
    %v4141 = vunpack.c.h.b16 %v3546
    %v4142 = vunpack.c.l.b16 %v3547
    %v4143 = vunpack.c.h.b16 %v3547
    %v4144 = vunpack.c.l.b16 %v3548
    %v4145 = vunpack.c.h.b16 %v3548
    %v4146 = vunpack.c.l.b16 %v3549
    %v4147 = vunpack.c.h.b16 %v3549
    %v4148 = vunpack.c.l.b16 %v3550
    %v4149 = vunpack.c.h.b16 %v3550
    %v4150 = vunpack.c.l.b16 %v3551
    %v4151 = vunpack.c.h.b16 %v3551
    %v4152 = vunpack.c.l.b16 %v3552
    %v4153 = vunpack.c.h.b16 %v3552
    %v4154 = vunpack.c.l.b16 %v3553
    %v4155 = vunpack.c.h.b16 %v3553
    %v4156 = vunpack.c.l.b16 %v3554
    %v4157 = vunpack.c.h.b16 %v3554
    %v4158 = vunpack.c.l.b16 %v3555
    %v4159 = vunpack.c.h.b16 %v3555
    %v4160 = vunpack.c.l.b16 %v3556
    %v4161 = vunpack.c.h.b16 %v3556
    %v4162 = vunpack.c.l.b16 %v3557
    %v4163 = vunpack.c.h.b16 %v3557
    %v4164 = vunpack.c.l.b16 %v3558
    %v4165 = vunpack.c.h.b16 %v3558
    %v4166 = vunpack.c.l.b16 %v3559
    %v4167 = vunpack.c.h.b16 %v3559
    %v4168 = vunpack.c.l.b16 %v3560
    %v4169 = vunpack.c.h.b16 %v3560
    %v4170 = vunpack.c.l.b16 %v3561
    %v4171 = vunpack.c.h.b16 %v3561
    %v4172 = vunpack.c.l.b16 %v3562
    %v4173 = vunpack.c.h.b16 %v3562
    %v4174 = vunpack.c.l.b16 %v3563
    %v4175 = vunpack.c.h.b16 %v3563
    %v4176 = vunpack.c.l.b16 %v3564
    %v4177 = vunpack.c.h.b16 %v3564
    %v4178 = vunpack.c.l.b16 %v3565
    %v4179 = vunpack.c.h.b16 %v3565
    %v4180 = vunpack.c.l.b16 %v3566
    %v4181 = vunpack.c.h.b16 %v3566
    %v4182 = vunpack.c.l.b16 %v3567
    %v4183 = vunpack.c.h.b16 %v3567
    %v4184 = vunpack.c.l.b16 %v3568
    %v4185 = vunpack.c.h.b16 %v3568
    %v4186 = vunpack.c.l.b16 %v3569
    %v4187 = vunpack.c.h.b16 %v3569
    %v4188 = vunpack.c.l.b16 %v3570
    %v4189 = vunpack.c.h.b16 %v3570
    %v4190 = vunpack.c.l.b16 %v3571
    %v4191 = vunpack.c.h.b16 %v3571
    %v4192 = vunpack.c.l.b16 %v3572
    %v4193 = vunpack.c.h.b16 %v3572
    %v4194 = vunpack.c.l.b16 %v3573
    %v4195 = vunpack.c.h.b16 %v3573
    %v4196 = vunpack.c.l.b16 %v3574
    %v4197 = vunpack.c.h.b16 %v3574
    %v4198 = vunpack.c.l.b16 %v3575
    %v4199 = vunpack.c.h.b16 %v3575
    %v4200 = vunpack.c.l.b16 %v3576
    %v4201 = vunpack.c.h.b16 %v3576
    %v4202 = vunpack.c.l.b16 %v3577
    %v4203 = vunpack.c.h.b16 %v3577
    %v4204 = vunpack.c.l.b16 %v3578
    %v4205 = vunpack.c.h.b16 %v3578
    %v4206 = vunpack.c.l.b16 %v3579
    %v4207 = vunpack.c.h.b16 %v3579
    %v4208 = vunpack.c.l.b16 %v3580
    %v4209 = vunpack.c.h.b16 %v3580
    %v4210 = vunpack.c.l.b16 %v3581
    %v4211 = vunpack.c.h.b16 %v3581
    %v4212 = vunpack.c.l.b16 %v3582
    %v4213 = vunpack.c.h.b16 %v3582
    %v4214 = vunpack.c.l.b16 %v3583
    %v4215 = vunpack.c.h.b16 %v3583
    %v4216 = vunpack.c.l.b16 %v3584
    %v4217 = vunpack.c.h.b16 %v3584
    %v4218 = vunpack.c.l.b16 %v3585
    %v4219 = vunpack.c.h.b16 %v3585
    %v4220 = vunpack.c.l.b16 %v3586
    %v4221 = vunpack.c.h.b16 %v3586
    %v4222 = vunpack.c.l.b16 %v3587
    %v4223 = vunpack.c.h.b16 %v3587
    %v4224 = vunpack.c.l.b16 %v3588
    %v4225 = vunpack.c.h.b16 %v3588
    %v4226 = vunpack.c.l.b16 %v3589
    %v4227 = vunpack.c.h.b16 %v3589
    %v4228 = vunpack.c.l.b16 %v3590
    %v4229 = vunpack.c.h.b16 %v3590
    %v4230 = vunpack.c.l.b16 %v3591
    %v4231 = vunpack.c.h.b16 %v3591
    %v4232 = vunpack.c.l.b16 %v3592
    %v4233 = vunpack.c.h.b16 %v3592
    %v4234 = vunpack.c.l.b16 %v3593
    %v4235 = vunpack.c.h.b16 %v3593
    %v4236 = vunpack.c.l.b16 %v3594
    %v4237 = vunpack.c.h.b16 %v3594
    %v4238 = vunpack.c.l.b16 %v3595
    %v4239 = vunpack.c.h.b16 %v3595
    %v4240 = vunpack.c.l.b16 %v3596
    %v4241 = vunpack.c.h.b16 %v3596
    %v4242 = vunpack.c.l.b16 %v3597
    %v4243 = vunpack.c.h.b16 %v3597
    %v4244 = vunpack.c.l.b16 %v3598
    %v4245 = vunpack.c.h.b16 %v3598
    %v4246 = vunpack.c.l.b16 %v3599
    %v4247 = vunpack.c.h.b16 %v3599
    %v4248 = vunpack.c.l.b16 %v3600
    %v4249 = vunpack.c.h.b16 %v3600
    %v4250 = vunpack.c.l.b16 %v3601
    %v4251 = vunpack.c.h.b16 %v3601
    %v4252 = vunpack.c.l.b16 %v3602
    %v4253 = vunpack.c.h.b16 %v3602
    %v4254 = vunpack.c.l.b16 %v3603
    %v4255 = vunpack.c.h.b16 %v3603
    %v4256 = vunpack.c.l.b16 %v3604
    %v4257 = vunpack.c.h.b16 %v3604
    %v4258 = vunpack.c.l.b16 %v3605
    %v4259 = vunpack.c.h.b16 %v3605
    %v4260 = vunpack.c.l.b16 %v3606
    %v4261 = vunpack.c.h.b16 %v3606
    %v4262 = vunpack.c.l.b16 %v3607
    %v4263 = vunpack.c.h.b16 %v3607
    %v4264 = vunpack.c.l.b16 %v3608
    %v4265 = vunpack.c.h.b16 %v3608
    %v4266 = vunpack.c.l.b16 %v3609
    %v4267 = vunpack.c.h.b16 %v3609
    %v4268 = vunpack.c.l.b16 %v3610
    %v4269 = vunpack.c.h.b16 %v3610
    %v4270 = vunpack.c.l.b16 %v3611
    %v4271 = vunpack.c.h.b16 %v3611
    %v4272 = vunpack.c.l.b16 %v3612
    %v4273 = vunpack.c.h.b16 %v3612
    %v4274 = vunpack.c.l.b16 %v3613
    %v4275 = vunpack.c.h.b16 %v3613
    %v4276 = vunpack.c.l.b16 %v3614
    %v4277 = vunpack.c.h.b16 %v3614
    %v4278 = vunpack.c.l.b16 %v3615
    %v4279 = vunpack.c.h.b16 %v3615
    %v4280 = vunpack.c.l.b16 %v3616
    %v4281 = vunpack.c.h.b16 %v3616
    %v4282 = vunpack.c.l.b16 %v3617
    %v4283 = vunpack.c.h.b16 %v3617
    %v4284 = vunpack.c.l.b16 %v3618
    %v4285 = vunpack.c.h.b16 %v3618
    %v4286 = vunpack.c.l.b16 %v3619
    %v4287 = vunpack.c.h.b16 %v3619
    %v4288 = vunpack.c.l.b16 %v3620
    %v4289 = vunpack.c.h.b16 %v3620
    %v4290 = vunpack.c.l.b16 %v3621
    %v4291 = vunpack.c.h.b16 %v3621
    %v4292 = vunpack.c.l.b16 %v3622
    %v4293 = vunpack.c.h.b16 %v3622
    %v4294 = vunpack.c.l.b16 %v3623
    %v4295 = vunpack.c.h.b16 %v3623
    %v4296 = vunpack.c.l.b16 %v3624
    %v4297 = vunpack.c.h.b16 %v3624
    %v4298 = vunpack.c.l.b16 %v3625
    %v4299 = vunpack.c.h.b16 %v3625
    %v4300 = vunpack.c.l.b16 %v3626
    %v4301 = vunpack.c.h.b16 %v3626
    %v4302 = vunpack.c.l.b16 %v3627
    %v4303 = vunpack.c.h.b16 %v3627
    %v4304 = vunpack.c.l.b16 %v3628
    %v4305 = vunpack.c.h.b16 %v3628
    %v4306 = vunpack.c.l.b16 %v3629
    %v4307 = vunpack.c.h.b16 %v3629
    %v4308 = vunpack.c.l.b16 %v3630
    %v4309 = vunpack.c.h.b16 %v3630
    %v4310 = vunpack.c.l.b16 %v3631
    %v4311 = vunpack.c.h.b16 %v3631
    %v4312 = vunpack.c.l.b16 %v3632
    %v4313 = vunpack.c.h.b16 %v3632
    %v4314 = vunpack.c.l.b16 %v3633
    %v4315 = vunpack.c.h.b16 %v3633
    %v4316 = vunpack.c.l.b16 %v3634
    %v4317 = vunpack.c.h.b16 %v3634
    %v4318 = vunpack.c.l.b16 %v3635
    %v4319 = vunpack.c.h.b16 %v3635
    %v4320 = vunpack.c.l.b16 %v3636
    %v4321 = vunpack.c.h.b16 %v3636
    %v4322 = vunpack.c.l.b16 %v3637
    %v4323 = vunpack.c.h.b16 %v3637
    %v4324 = vunpack.c.l.b16 %v3638
    %v4325 = vunpack.c.h.b16 %v3638
    %v4326 = vunpack.c.l.b16 %v3639
    %v4327 = vunpack.c.h.b16 %v3639
    %v4328 = vunpack.c.l.b16 %v3640
    %v4329 = vunpack.c.h.b16 %v3640
    %v4330 = vunpack.c.l.b16 %v3641
    %v4331 = vunpack.c.h.b16 %v3641
    %v4332 = vunpack.c.l.b16 %v3642
    %v4333 = vunpack.c.h.b16 %v3642
    %v4334 = vunpack.c.l.b16 %v3643
    %v4335 = vunpack.c.h.b16 %v3643
    %v4336 = vunpack.c.l.b16 %v3644
    %v4337 = vunpack.c.h.b16 %v3644
    %v4338 = vunpack.c.l.b16 %v3645
    %v4339 = vunpack.c.h.b16 %v3645
    %v4340 = vunpack.c.l.b16 %v3646
    %v4341 = vunpack.c.h.b16 %v3646
    %v4342 = vunpack.c.l.b16 %v3647
    %v4343 = vunpack.c.h.b16 %v3647
    %v4344 = vunpack.c.l.b16 %v3648
    %v4345 = vunpack.c.h.b16 %v3648
    %v4346 = vunpack.c.l.b16 %v3649
    %v4347 = vunpack.c.h.b16 %v3649
    %v4348 = vunpack.c.l.b16 %v3650
    %v4349 = vunpack.c.h.b16 %v3650
    %v4350 = vunpack.c.l.b16 %v3651
    %v4351 = vunpack.c.h.b16 %v3651
    %v4352 = vunpack.c.l.b16 %v3652
    %v4353 = vunpack.c.h.b16 %v3652
    %v4354 = vunpack.c.l.b16 %v3653
    %v4355 = vunpack.c.h.b16 %v3653
    %v4356 = vunpack.c.l.b16 %v3654
    %v4357 = vunpack.c.h.b16 %v3654
    %v4358 = vunpack.c.l.b16 %v3655
    %v4359 = vunpack.c.h.b16 %v3655
    %v4360 = vunpack.c.l.b16 %v3656
    %v4361 = vunpack.c.h.b16 %v3656
    %v4362 = vunpack.c.l.b16 %v3657
    %v4363 = vunpack.c.h.b16 %v3657
    %v4364 = vunpack.c.l.b16 %v3658
    %v4365 = vunpack.c.h.b16 %v3658
    %v4366 = vunpack.c.l.b16 %v3659
    %v4367 = vunpack.c.h.b16 %v3659
    %v4368 = vunpack.c.l.b16 %v3660
    %v4369 = vunpack.c.h.b16 %v3660
    %v4370 = vunpack.c.l.b16 %v3661
    %v4371 = vunpack.c.h.b16 %v3661
    %v4372 = vunpack.c.l.b16 %v3662
    %v4373 = vunpack.c.h.b16 %v3662
    %v4374 = vunpack.c.l.b16 %v3663
    %v4375 = vunpack.c.h.b16 %v3663
    %v4376 = vunpack.c.l.b16 %v3664
    %v4377 = vunpack.c.h.b16 %v3664
    %v4378 = vunpack.c.l.b16 %v3665
    %v4379 = vunpack.c.h.b16 %v3665
    %v4380 = vunpack.c.l.b16 %v3666
    %v4381 = vunpack.c.h.b16 %v3666
    %v4382 = vunpack.c.l.b16 %v3667
    %v4383 = vunpack.c.h.b16 %v3667
    %v4384 = vunpack.c.l.b16 %v3668
    %v4385 = vunpack.c.h.b16 %v3668
    %v4386 = vunpack.c.l.b16 %v3669
    %v4387 = vunpack.c.h.b16 %v3669
    %v4388 = vunpack.c.l.b16 %v3670
    %v4389 = vunpack.c.h.b16 %v3670
    %v4390 = vunpack.c.l.b16 %v3671
    %v4391 = vunpack.c.h.b16 %v3671
    %v4392 = vunpack.c.l.b16 %v3672
    %v4393 = vunpack.c.h.b16 %v3672
    %v4394 = vunpack.c.l.b16 %v3673
    %v4395 = vunpack.c.h.b16 %v3673
    %v4396 = vunpack.c.l.b16 %v3674
    %v4397 = vunpack.c.h.b16 %v3674
    %v4398 = vunpack.c.l.b16 %v3675
    %v4399 = vunpack.c.h.b16 %v3675
    %v4400 = vunpack.c.l.b16 %v3676
    %v4401 = vunpack.c.h.b16 %v3676
    %v4402 = vunpack.c.l.b16 %v3677
    %v4403 = vunpack.c.h.b16 %v3677
    %v4404 = vunpack.c.l.b16 %v3678
    %v4405 = vunpack.c.h.b16 %v3678
    %v4406 = vunpack.c.l.b16 %v3679
    %v4407 = vunpack.c.h.b16 %v3679
    %v4408 = vunpack.c.l.b16 %v3680
    %v4409 = vunpack.c.h.b16 %v3680
    %v4410 = vunpack.c.l.b16 %v3681
    %v4411 = vunpack.c.h.b16 %v3681
    %v4412 = vunpack.c.l.b16 %v3682
    %v4413 = vunpack.c.h.b16 %v3682
    %v4414 = vunpack.c.l.b16 %v3683
    %v4415 = vunpack.c.h.b16 %v3683
    %v4416 = vunpack.c.l.b16 %v3684
    %v4417 = vunpack.c.h.b16 %v3684
    %v4418 = vunpack.c.l.b16 %v3685
    %v4419 = vunpack.c.h.b16 %v3685
    %v4420 = vunpack.c.l.b16 %v3686
    %v4421 = vunpack.c.h.b16 %v3686
    %v4422 = vunpack.c.l.b16 %v3687
    %v4423 = vunpack.c.h.b16 %v3687
    %v4424 = vunpack.c.l.b16 %v3688
    %v4425 = vunpack.c.h.b16 %v3688
    %v4426 = vunpack.c.l.b16 %v3689
    %v4427 = vunpack.c.h.b16 %v3689
    %v4428 = vunpack.c.l.b16 %v3690
    %v4429 = vunpack.c.h.b16 %v3690
    %v4430 = vunpack.c.l.b16 %v3691
    %v4431 = vunpack.c.h.b16 %v3691
    %v4432 = vunpack.c.l.b16 %v3692
    %v4433 = vunpack.c.h.b16 %v3692
    %v4434 = vunpack.c.l.b16 %v3693
    %v4435 = vunpack.c.h.b16 %v3693
    %v4436 = vunpack.c.l.b16 %v3694
    %v4437 = vunpack.c.h.b16 %v3694
    %v4438 = vunpack.c.l.b16 %v3695
    %v4439 = vunpack.c.h.b16 %v3695
    %v4440 = vunpack.c.l.b16 %v3696
    %v4441 = vunpack.c.h.b16 %v3696
    %v4442 = vunpack.c.l.b16 %v3697
    %v4443 = vunpack.c.h.b16 %v3697
    %v4444 = vunpack.c.l.b16 %v3698
    %v4445 = vunpack.c.h.b16 %v3698
    %v4446 = vunpack.c.l.b16 %v3699
    %v4447 = vunpack.c.h.b16 %v3699
    %v4448 = vunpack.c.l.b16 %v3700
    %v4449 = vunpack.c.h.b16 %v3700
    %v4450 = vunpack.c.l.b16 %v3701
    %v4451 = vunpack.c.h.b16 %v3701
    %v4452 = vunpack.c.l.b16 %v3702
    %v4453 = vunpack.c.h.b16 %v3702
    %v4454 = vunpack.c.l.b16 %v3703
    %v4455 = vunpack.c.h.b16 %v3703
    %v4456 = vunpack.c.l.b16 %v3704
    %v4457 = vunpack.c.h.b16 %v3704
    %v4458 = vunpack.c.l.b16 %v3705
    %v4459 = vunpack.c.h.b16 %v3705
    %v4460 = vunpack.c.l.b16 %v3706
    %v4461 = vunpack.c.h.b16 %v3706
    %v4462 = vunpack.c.l.b16 %v3707
    %v4463 = vunpack.c.h.b16 %v3707
    %v4464 = vunpack.c.l.b16 %v3708
    %v4465 = vunpack.c.h.b16 %v3708
    %v4466 = vunpack.c.l.b16 %v3709
    %v4467 = vunpack.c.h.b16 %v3709
    %v4468 = vunpack.c.l.b16 %v3710
    %v4469 = vunpack.c.h.b16 %v3710
    %v4470 = vunpack.c.l.b16 %v3711
    %v4471 = vunpack.c.h.b16 %v3711
    %v4472 = vunpack.c.l.b16 %v3712
    %v4473 = vunpack.c.h.b16 %v3712
    %v4474 = vunpack.c.l.b16 %v3713
    %v4475 = vunpack.c.h.b16 %v3713
    %v4476 = vunpack.c.l.b16 %v3714
    %v4477 = vunpack.c.h.b16 %v3714
    %v4478 = vunpack.c.l.b16 %v3715
    %v4479 = vunpack.c.h.b16 %v3715
    %v4480 = vunpack.c.l.b16 %v3716
    %v4481 = vunpack.c.h.b16 %v3716
    %v4482 = vunpack.c.l.b16 %v3717
    %v4483 = vunpack.c.h.b16 %v3717
    %v4484 = vunpack.c.l.b16 %v3718
    %v4485 = vunpack.c.h.b16 %v3718
    %v4486 = vunpack.c.l.b16 %v3719
    %v4487 = vunpack.c.h.b16 %v3719
    %v4488 = vunpack.c.l.b16 %v3720
    %v4489 = vunpack.c.h.b16 %v3720
    %v4490 = vunpack.c.l.b16 %v3721
    %v4491 = vunpack.c.h.b16 %v3721
    %v4492 = vunpack.c.l.b16 %v3722
    %v4493 = vunpack.c.h.b16 %v3722
    %v4494 = vunpack.c.l.b16 %v3723
    %v4495 = vunpack.c.h.b16 %v3723
    %v4496 = vunpack.c.l.b16 %v3724
    %v4497 = vunpack.c.h.b16 %v3724
    %v4498 = vunpack.c.l.b16 %v3725
    %v4499 = vunpack.c.h.b16 %v3725
    %v4500 = vunpack.c.l.b16 %v3726
    %v4501 = vunpack.c.h.b16 %v3726
    %v4502 = vunpack.c.l.b16 %v3727
    %v4503 = vunpack.c.h.b16 %v3727
    %v4504 = vunpack.c.l.b16 %v3728
    %v4505 = vunpack.c.h.b16 %v3728
    %v4506 = vunpack.c.l.b16 %v3729
    %v4507 = vunpack.c.h.b16 %v3729
    %v4508 = vunpack.c.l.b16 %v3730
    %v4509 = vunpack.c.h.b16 %v3730
    %v4510 = vunpack.c.l.b16 %v3731
    %v4511 = vunpack.c.h.b16 %v3731
    %v4512 = vunpack.c.l.b16 %v3732
    %v4513 = vunpack.c.h.b16 %v3732
    %v4514 = vunpack.c.l.b16 %v3733
    %v4515 = vunpack.c.h.b16 %v3733
    %v4516 = vunpack.c.l.b16 %v3734
    %v4517 = vunpack.c.h.b16 %v3734
    %v4518 = vunpack.c.l.b16 %v3735
    %v4519 = vunpack.c.h.b16 %v3735
    %v4520 = vunpack.c.l.b16 %v3736
    %v4521 = vunpack.c.h.b16 %v3736
    %v4522 = vunpack.c.l.b16 %v3737
    %v4523 = vunpack.c.h.b16 %v3737
    %v4524 = vunpack.c.l.b16 %v3738
    %v4525 = vunpack.c.h.b16 %v3738
    %v4526 = vunpack.c.l.b16 %v3739
    %v4527 = vunpack.c.h.b16 %v3739
    %v4528 = vunpack.c.l.b16 %v3740
    %v4529 = vunpack.c.h.b16 %v3740
    %v4530 = vunpack.c.l.b16 %v3741
    %v4531 = vunpack.c.h.b16 %v3741
    %v4532 = vpack.c.b16 %v4024, %v4020
    %v4533 = vpack.c.b16 %v4025, %v4021
    %v4534 = vpack.c.b16 %v4026, %v4022
    %v4535 = vpack.c.b16 %v4027, %v4023
    %v4536 = vpack.c.b16 %v4032, %v4028
    %v4537 = vpack.c.b16 %v4033, %v4029
    %v4538 = vpack.c.b16 %v4034, %v4030
    %v4539 = vpack.c.b16 %v4035, %v4031
    %v4540 = vpack.c.b16 %v4040, %v4036
    %v4541 = vpack.c.b16 %v4041, %v4037
    %v4542 = vpack.c.b16 %v4042, %v4038
    %v4543 = vpack.c.b16 %v4043, %v4039
    %v4544 = vpack.c.b16 %v4048, %v4044
    %v4545 = vpack.c.b16 %v4049, %v4045
    %v4546 = vpack.c.b16 %v4050, %v4046
    %v4547 = vpack.c.b16 %v4051, %v4047
    %v4548 = vpack.c.b16 %v4056, %v4052
    %v4549 = vpack.c.b16 %v4057, %v4053
    %v4550 = vpack.c.b16 %v4058, %v4054
    %v4551 = vpack.c.b16 %v4059, %v4055
    %v4552 = vpack.c.b16 %v4064, %v4060
    %v4553 = vpack.c.b16 %v4065, %v4061
    %v4554 = vpack.c.b16 %v4066, %v4062
    %v4555 = vpack.c.b16 %v4067, %v4063
    %v4556 = vpack.c.b16 %v4072, %v4068
    %v4557 = vpack.c.b16 %v4073, %v4069
    %v4558 = vpack.c.b16 %v4074, %v4070
    %v4559 = vpack.c.b16 %v4075, %v4071
    %v4560 = vpack.c.b16 %v4080, %v4076
    %v4561 = vpack.c.b16 %v4081, %v4077
    %v4562 = vpack.c.b16 %v4082, %v4078
    %v4563 = vpack.c.b16 %v4083, %v4079
    %v4564 = vpack.c.b16 %v4088, %v4084
    %v4565 = vpack.c.b16 %v4089, %v4085
    %v4566 = vpack.c.b16 %v4090, %v4086
    %v4567 = vpack.c.b16 %v4091, %v4087
    %v4568 = vpack.c.b16 %v4096, %v4092
    %v4569 = vpack.c.b16 %v4097, %v4093
    %v4570 = vpack.c.b16 %v4098, %v4094
    %v4571 = vpack.c.b16 %v4099, %v4095
    %v4572 = vpack.c.b16 %v4104, %v4100
    %v4573 = vpack.c.b16 %v4105, %v4101
    %v4574 = vpack.c.b16 %v4106, %v4102
    %v4575 = vpack.c.b16 %v4107, %v4103
    %v4576 = vpack.c.b16 %v4112, %v4108
    %v4577 = vpack.c.b16 %v4113, %v4109
    %v4578 = vpack.c.b16 %v4114, %v4110
    %v4579 = vpack.c.b16 %v4115, %v4111
    %v4580 = vpack.c.b16 %v4120, %v4116
    %v4581 = vpack.c.b16 %v4121, %v4117
    %v4582 = vpack.c.b16 %v4122, %v4118
    %v4583 = vpack.c.b16 %v4123, %v4119
    %v4584 = vpack.c.b16 %v4128, %v4124
    %v4585 = vpack.c.b16 %v4129, %v4125
    %v4586 = vpack.c.b16 %v4130, %v4126
    %v4587 = vpack.c.b16 %v4131, %v4127
    %v4588 = vpack.c.b16 %v4136, %v4132
    %v4589 = vpack.c.b16 %v4137, %v4133
    %v4590 = vpack.c.b16 %v4138, %v4134
    %v4591 = vpack.c.b16 %v4139, %v4135
    %v4592 = vpack.c.b16 %v4144, %v4140
    %v4593 = vpack.c.b16 %v4145, %v4141
    %v4594 = vpack.c.b16 %v4146, %v4142
    %v4595 = vpack.c.b16 %v4147, %v4143
    %v4596 = vpack.c.b16 %v4152, %v4148
    %v4597 = vpack.c.b16 %v4153, %v4149
    %v4598 = vpack.c.b16 %v4154, %v4150
    %v4599 = vpack.c.b16 %v4155, %v4151
    %v4600 = vpack.c.b16 %v4160, %v4156
    %v4601 = vpack.c.b16 %v4161, %v4157
    %v4602 = vpack.c.b16 %v4162, %v4158
    %v4603 = vpack.c.b16 %v4163, %v4159
    %v4604 = vpack.c.b16 %v4168, %v4164
    %v4605 = vpack.c.b16 %v4169, %v4165
    %v4606 = vpack.c.b16 %v4170, %v4166
    %v4607 = vpack.c.b16 %v4171, %v4167
    %v4608 = vpack.c.b16 %v4176, %v4172
    %v4609 = vpack.c.b16 %v4177, %v4173
    %v4610 = vpack.c.b16 %v4178, %v4174
    %v4611 = vpack.c.b16 %v4179, %v4175
    %v4612 = vpack.c.b16 %v4184, %v4180
    %v4613 = vpack.c.b16 %v4185, %v4181
    %v4614 = vpack.c.b16 %v4186, %v4182
    %v4615 = vpack.c.b16 %v4187, %v4183
    %v4616 = vpack.c.b16 %v4192, %v4188
    %v4617 = vpack.c.b16 %v4193, %v4189
    %v4618 = vpack.c.b16 %v4194, %v4190
    %v4619 = vpack.c.b16 %v4195, %v4191
    %v4620 = vpack.c.b16 %v4200, %v4196
    %v4621 = vpack.c.b16 %v4201, %v4197
    %v4622 = vpack.c.b16 %v4202, %v4198
    %v4623 = vpack.c.b16 %v4203, %v4199
    %v4624 = vpack.c.b16 %v4208, %v4204
    %v4625 = vpack.c.b16 %v4209, %v4205
    %v4626 = vpack.c.b16 %v4210, %v4206
    %v4627 = vpack.c.b16 %v4211, %v4207
    %v4628 = vpack.c.b16 %v4216, %v4212
    %v4629 = vpack.c.b16 %v4217, %v4213
    %v4630 = vpack.c.b16 %v4218, %v4214
    %v4631 = vpack.c.b16 %v4219, %v4215
    %v4632 = vpack.c.b16 %v4224, %v4220
    %v4633 = vpack.c.b16 %v4225, %v4221
    %v4634 = vpack.c.b16 %v4226, %v4222
    %v4635 = vpack.c.b16 %v4227, %v4223
    %v4636 = vpack.c.b16 %v4232, %v4228
    %v4637 = vpack.c.b16 %v4233, %v4229
    %v4638 = vpack.c.b16 %v4234, %v4230
    %v4639 = vpack.c.b16 %v4235, %v4231
    %v4640 = vpack.c.b16 %v4240, %v4236
    %v4641 = vpack.c.b16 %v4241, %v4237
    %v4642 = vpack.c.b16 %v4242, %v4238
    %v4643 = vpack.c.b16 %v4243, %v4239
    %v4644 = vpack.c.b16 %v4248, %v4244
    %v4645 = vpack.c.b16 %v4249, %v4245
    %v4646 = vpack.c.b16 %v4250, %v4246
    %v4647 = vpack.c.b16 %v4251, %v4247
    %v4648 = vpack.c.b16 %v4256, %v4252
    %v4649 = vpack.c.b16 %v4257, %v4253
    %v4650 = vpack.c.b16 %v4258, %v4254
    %v4651 = vpack.c.b16 %v4259, %v4255
    %v4652 = vpack.c.b16 %v4264, %v4260
    %v4653 = vpack.c.b16 %v4265, %v4261
    %v4654 = vpack.c.b16 %v4266, %v4262
    %v4655 = vpack.c.b16 %v4267, %v4263
    %v4656 = vpack.c.b16 %v4272, %v4268
    %v4657 = vpack.c.b16 %v4273, %v4269
    %v4658 = vpack.c.b16 %v4274, %v4270
    %v4659 = vpack.c.b16 %v4275, %v4271
    %v4660 = vpack.c.b16 %v4280, %v4276
    %v4661 = vpack.c.b16 %v4281, %v4277
    %v4662 = vpack.c.b16 %v4282, %v4278
    %v4663 = vpack.c.b16 %v4283, %v4279
    %v4664 = vpack.c.b16 %v4288, %v4284
    %v4665 = vpack.c.b16 %v4289, %v4285
    %v4666 = vpack.c.b16 %v4290, %v4286
    %v4667 = vpack.c.b16 %v4291, %v4287
    %v4668 = vpack.c.b16 %v4296, %v4292
    %v4669 = vpack.c.b16 %v4297, %v4293
    %v4670 = vpack.c.b16 %v4298, %v4294
    %v4671 = vpack.c.b16 %v4299, %v4295
    %v4672 = vpack.c.b16 %v4304, %v4300
    %v4673 = vpack.c.b16 %v4305, %v4301
    %v4674 = vpack.c.b16 %v4306, %v4302
    %v4675 = vpack.c.b16 %v4307, %v4303
    %v4676 = vpack.c.b16 %v4312, %v4308
    %v4677 = vpack.c.b16 %v4313, %v4309
    %v4678 = vpack.c.b16 %v4314, %v4310
    %v4679 = vpack.c.b16 %v4315, %v4311
    %v4680 = vpack.c.b16 %v4320, %v4316
    %v4681 = vpack.c.b16 %v4321, %v4317
    %v4682 = vpack.c.b16 %v4322, %v4318
    %v4683 = vpack.c.b16 %v4323, %v4319
    %v4684 = vpack.c.b16 %v4328, %v4324
    %v4685 = vpack.c.b16 %v4329, %v4325
    %v4686 = vpack.c.b16 %v4330, %v4326
    %v4687 = vpack.c.b16 %v4331, %v4327
    %v4688 = vpack.c.b16 %v4336, %v4332
    %v4689 = vpack.c.b16 %v4337, %v4333
    %v4690 = vpack.c.b16 %v4338, %v4334
    %v4691 = vpack.c.b16 %v4339, %v4335
    %v4692 = vpack.c.b16 %v4344, %v4340
    %v4693 = vpack.c.b16 %v4345, %v4341
    %v4694 = vpack.c.b16 %v4346, %v4342
    %v4695 = vpack.c.b16 %v4347, %v4343
    %v4696 = vpack.c.b16 %v4352, %v4348
    %v4697 = vpack.c.b16 %v4353, %v4349
    %v4698 = vpack.c.b16 %v4354, %v4350
    %v4699 = vpack.c.b16 %v4355, %v4351
    %v4700 = vpack.c.b16 %v4360, %v4356
    %v4701 = vpack.c.b16 %v4361, %v4357
    %v4702 = vpack.c.b16 %v4362, %v4358
    %v4703 = vpack.c.b16 %v4363, %v4359
    %v4704 = vpack.c.b16 %v4368, %v4364
    %v4705 = vpack.c.b16 %v4369, %v4365
    %v4706 = vpack.c.b16 %v4370, %v4366
    %v4707 = vpack.c.b16 %v4371, %v4367
    %v4708 = vpack.c.b16 %v4376, %v4372
    %v4709 = vpack.c.b16 %v4377, %v4373
    %v4710 = vpack.c.b16 %v4378, %v4374
    %v4711 = vpack.c.b16 %v4379, %v4375
    %v4712 = vpack.c.b16 %v4384, %v4380
    %v4713 = vpack.c.b16 %v4385, %v4381
    %v4714 = vpack.c.b16 %v4386, %v4382
    %v4715 = vpack.c.b16 %v4387, %v4383
    %v4716 = vpack.c.b16 %v4392, %v4388
    %v4717 = vpack.c.b16 %v4393, %v4389
    %v4718 = vpack.c.b16 %v4394, %v4390
    %v4719 = vpack.c.b16 %v4395, %v4391
    %v4720 = vpack.c.b16 %v4400, %v4396
    %v4721 = vpack.c.b16 %v4401, %v4397
    %v4722 = vpack.c.b16 %v4402, %v4398
    %v4723 = vpack.c.b16 %v4403, %v4399
    %v4724 = vpack.c.b16 %v4408, %v4404
    %v4725 = vpack.c.b16 %v4409, %v4405
    %v4726 = vpack.c.b16 %v4410, %v4406
    %v4727 = vpack.c.b16 %v4411, %v4407
    %v4728 = vpack.c.b16 %v4416, %v4412
    %v4729 = vpack.c.b16 %v4417, %v4413
    %v4730 = vpack.c.b16 %v4418, %v4414
    %v4731 = vpack.c.b16 %v4419, %v4415
    %v4732 = vpack.c.b16 %v4424, %v4420
    %v4733 = vpack.c.b16 %v4425, %v4421
    %v4734 = vpack.c.b16 %v4426, %v4422
    %v4735 = vpack.c.b16 %v4427, %v4423
    %v4736 = vpack.c.b16 %v4432, %v4428
    %v4737 = vpack.c.b16 %v4433, %v4429
    %v4738 = vpack.c.b16 %v4434, %v4430
    %v4739 = vpack.c.b16 %v4435, %v4431
    %v4740 = vpack.c.b16 %v4440, %v4436
    %v4741 = vpack.c.b16 %v4441, %v4437
    %v4742 = vpack.c.b16 %v4442, %v4438
    %v4743 = vpack.c.b16 %v4443, %v4439
    %v4744 = vpack.c.b16 %v4448, %v4444
    %v4745 = vpack.c.b16 %v4449, %v4445
    %v4746 = vpack.c.b16 %v4450, %v4446
    %v4747 = vpack.c.b16 %v4451, %v4447
    %v4748 = vpack.c.b16 %v4456, %v4452
    %v4749 = vpack.c.b16 %v4457, %v4453
    %v4750 = vpack.c.b16 %v4458, %v4454
    %v4751 = vpack.c.b16 %v4459, %v4455
    %v4752 = vpack.c.b16 %v4464, %v4460
    %v4753 = vpack.c.b16 %v4465, %v4461
    %v4754 = vpack.c.b16 %v4466, %v4462
    %v4755 = vpack.c.b16 %v4467, %v4463
    %v4756 = vpack.c.b16 %v4472, %v4468
    %v4757 = vpack.c.b16 %v4473, %v4469
    %v4758 = vpack.c.b16 %v4474, %v4470
    %v4759 = vpack.c.b16 %v4475, %v4471
    %v4760 = vpack.c.b16 %v4480, %v4476
    %v4761 = vpack.c.b16 %v4481, %v4477
    %v4762 = vpack.c.b16 %v4482, %v4478
    %v4763 = vpack.c.b16 %v4483, %v4479
    %v4764 = vpack.c.b16 %v4488, %v4484
    %v4765 = vpack.c.b16 %v4489, %v4485
    %v4766 = vpack.c.b16 %v4490, %v4486
    %v4767 = vpack.c.b16 %v4491, %v4487
    %v4768 = vpack.c.b16 %v4496, %v4492
    %v4769 = vpack.c.b16 %v4497, %v4493
    %v4770 = vpack.c.b16 %v4498, %v4494
    %v4771 = vpack.c.b16 %v4499, %v4495
    %v4772 = vpack.c.b16 %v4504, %v4500
    %v4773 = vpack.c.b16 %v4505, %v4501
    %v4774 = vpack.c.b16 %v4506, %v4502
    %v4775 = vpack.c.b16 %v4507, %v4503
    %v4776 = vpack.c.b16 %v4512, %v4508
    %v4777 = vpack.c.b16 %v4513, %v4509
    %v4778 = vpack.c.b16 %v4514, %v4510
    %v4779 = vpack.c.b16 %v4515, %v4511
    %v4780 = vpack.c.b16 %v4520, %v4516
    %v4781 = vpack.c.b16 %v4521, %v4517
    %v4782 = vpack.c.b16 %v4522, %v4518
    %v4783 = vpack.c.b16 %v4523, %v4519
    %v4784 = vpack.c.b16 %v4528, %v4524
    %v4785 = vpack.c.b16 %v4529, %v4525
    %v4786 = vpack.c.b16 %v4530, %v4526
    %v4787 = vpack.c.b16 %v4531, %v4527
    %5044 = vmatprep.subr.bf16.mxu0 %v4561
    %5045 = vmatpush1.bf16.msra.mxu0 %v4560
    %5046 = vmatprep.subr.bf16.mxu0 %v4557
    %5047 = vmatpush1.bf16.msra.mxu0 %v4556
    %5048 = vmatprep.subr.bf16.mxu0 %v4553
    %5049 = vmatpush1.bf16.msra.mxu0 %v4552
    %5050 = vmatprep.subr.bf16.mxu0 %v4549
    %5051 = vmatpush1.bf16.msra.mxu0 %v4548
    %5052 = vmatprep.subr.bf16.mxu0 %v4545
    %5053 = vmatpush1.bf16.msra.mxu0 %v4544
    %5054 = vmatprep.subr.bf16.mxu0 %v4541
    %5055 = vmatpush1.bf16.msra.mxu0 %v4540
    %5056 = vmatprep.subr.bf16.mxu0 %v4537
    %5057 = vmatpush1.bf16.msra.mxu0 %v4536
    %5058 = vmatprep.subr.bf16.mxu0 %v4533
    %5059 = vmatpush1.bf16.msra.mxu0 %v4532
    %5060 = vmatprep.subr.bf16.mxu0 %v4593
    %5061 = vmatpush2.bf16.msra.mxu0 %v4592
    %5062 = vmatprep.subr.bf16.mxu0 %v4589
    %5063 = vmatpush2.bf16.msra.mxu0 %v4588
    %5064 = vmatprep.subr.bf16.mxu0 %v4585
    %5065 = vmatpush2.bf16.msra.mxu0 %v4584
    %5066 = vmatprep.subr.bf16.mxu0 %v4581
    %5067 = vmatpush2.bf16.msra.mxu0 %v4580
    %5068 = vmatprep.subr.bf16.mxu0 %v4577
    %5069 = vmatpush2.bf16.msra.mxu0 %v4576
    %5070 = vmatprep.subr.bf16.mxu0 %v4573
    %5071 = vmatpush2.bf16.msra.mxu0 %v4572
    %5072 = vmatprep.subr.bf16.mxu0 %v4569
    %5073 = vmatpush2.bf16.msra.mxu0 %v4568
    %5074 = vmatprep.subr.bf16.mxu0 %v4565
    %5075 = vmatpush2.bf16.msra.mxu0 %v4564
    %5076 = vmatprep.mubr.bf16.mxu0 %v3479
    %5077 = vmatmul.mubr.bf16.gmra.mxu0 %v3478
    %v5078 = vpop.f32.mrf.mxu0
    %v5079 = vadd.f32 %v3747, %v5078
    %v5080 = vpop.f32.mrf.mxu0
    %v5081 = vadd.f32 %v3751, %v5080
    %v5082 = vpop.f32.mrf.mxu0
    %v5083 = vpop.f32.mrf.mxu0
    %5084 = vdwg.mxu0
    %5085 = vmatprep.subr.bf16.mxu0 %v4625
    %5086 = vmatpush1.bf16.msra.mxu0 %v4624
    %5087 = vmatprep.subr.bf16.mxu0 %v4621
    %5088 = vmatpush1.bf16.msra.mxu0 %v4620
    %5089 = vmatprep.subr.bf16.mxu0 %v4617
    %5090 = vmatpush1.bf16.msra.mxu0 %v4616
    %5091 = vmatprep.subr.bf16.mxu0 %v4613
    %5092 = vmatpush1.bf16.msra.mxu0 %v4612
    %5093 = vmatprep.subr.bf16.mxu0 %v4609
    %5094 = vmatpush1.bf16.msra.mxu0 %v4608
    %5095 = vmatprep.subr.bf16.mxu0 %v4605
    %5096 = vmatpush1.bf16.msra.mxu0 %v4604
    %5097 = vmatprep.subr.bf16.mxu0 %v4601
    %5098 = vmatpush1.bf16.msra.mxu0 %v4600
    %5099 = vmatprep.subr.bf16.mxu0 %v4597
    %5100 = vmatpush1.bf16.msra.mxu0 %v4596
    %5101 = vmatprep.subr.bf16.mxu0 %v4657
    %5102 = vmatpush2.bf16.msra.mxu0 %v4656
    %5103 = vmatprep.subr.bf16.mxu0 %v4653
    %5104 = vmatpush2.bf16.msra.mxu0 %v4652
    %5105 = vmatprep.subr.bf16.mxu0 %v4649
    %5106 = vmatpush2.bf16.msra.mxu0 %v4648
    %5107 = vmatprep.subr.bf16.mxu0 %v4645
    %5108 = vmatpush2.bf16.msra.mxu0 %v4644
    %5109 = vmatprep.subr.bf16.mxu0 %v4641
    %5110 = vmatpush2.bf16.msra.mxu0 %v4640
    %5111 = vmatprep.subr.bf16.mxu0 %v4637
    %5112 = vmatpush2.bf16.msra.mxu0 %v4636
    %5113 = vmatprep.subr.bf16.mxu0 %v4633
    %5114 = vmatpush2.bf16.msra.mxu0 %v4632
    %5115 = vmatprep.subr.bf16.mxu0 %v4629
    %5116 = vmatpush2.bf16.msra.mxu0 %v4628
    %5117 = vmatprep.mubr.bf16.mxu0 %v3481
    %5118 = vmatmul.mubr.bf16.gmra.mxu0 %v3480
    %v5119 = vpop.f32.mrf.mxu0
    %v5120 = vadd.f32 %v5079, %v5119
    %v5121 = vpop.f32.mrf.mxu0
    %v5122 = vadd.f32 %v5081, %v5121
    %v5123 = vpop.f32.mrf.mxu0
    %v5124 = vpop.f32.mrf.mxu0
    %5125 = vdwg.mxu0
    %5126 = vmatprep.subr.bf16.mxu0 %v4689
    %5127 = vmatpush1.bf16.msra.mxu0 %v4688
    %5128 = vmatprep.subr.bf16.mxu0 %v4685
    %5129 = vmatpush1.bf16.msra.mxu0 %v4684
    %5130 = vmatprep.subr.bf16.mxu0 %v4681
    %5131 = vmatpush1.bf16.msra.mxu0 %v4680
    %5132 = vmatprep.subr.bf16.mxu0 %v4677
    %5133 = vmatpush1.bf16.msra.mxu0 %v4676
    %5134 = vmatprep.subr.bf16.mxu0 %v4673
    %5135 = vmatpush1.bf16.msra.mxu0 %v4672
    %5136 = vmatprep.subr.bf16.mxu0 %v4669
    %5137 = vmatpush1.bf16.msra.mxu0 %v4668
    %5138 = vmatprep.subr.bf16.mxu0 %v4665
    %5139 = vmatpush1.bf16.msra.mxu0 %v4664
    %5140 = vmatprep.subr.bf16.mxu0 %v4661
    %5141 = vmatpush1.bf16.msra.mxu0 %v4660
    %5142 = vmatprep.subr.bf16.mxu0 %v4721
    %5143 = vmatpush2.bf16.msra.mxu0 %v4720
    %5144 = vmatprep.subr.bf16.mxu0 %v4717
    %5145 = vmatpush2.bf16.msra.mxu0 %v4716
    %5146 = vmatprep.subr.bf16.mxu0 %v4713
    %5147 = vmatpush2.bf16.msra.mxu0 %v4712
    %5148 = vmatprep.subr.bf16.mxu0 %v4709
    %5149 = vmatpush2.bf16.msra.mxu0 %v4708
    %5150 = vmatprep.subr.bf16.mxu0 %v4705
    %5151 = vmatpush2.bf16.msra.mxu0 %v4704
    %5152 = vmatprep.subr.bf16.mxu0 %v4701
    %5153 = vmatpush2.bf16.msra.mxu0 %v4700
    %5154 = vmatprep.subr.bf16.mxu0 %v4697
    %5155 = vmatpush2.bf16.msra.mxu0 %v4696
    %5156 = vmatprep.subr.bf16.mxu0 %v4693
    %5157 = vmatpush2.bf16.msra.mxu0 %v4692
    %5158 = vmatprep.mubr.bf16.mxu0 %v3483
    %5159 = vmatmul.mubr.bf16.gmra.mxu0 %v3482
    %v5160 = vpop.f32.mrf.mxu0
    %v5161 = vadd.f32 %v5120, %v5160
    %v5162 = vpop.f32.mrf.mxu0
    %v5163 = vadd.f32 %v5122, %v5162
    %v5164 = vpop.f32.mrf.mxu0
    %v5165 = vpop.f32.mrf.mxu0
    %5166 = vdwg.mxu0
    %5167 = vmatprep.subr.bf16.mxu0 %v4753
    %5168 = vmatpush1.bf16.msra.mxu0 %v4752
    %5169 = vmatprep.subr.bf16.mxu0 %v4749
    %5170 = vmatpush1.bf16.msra.mxu0 %v4748
    %5171 = vmatprep.subr.bf16.mxu0 %v4745
    %5172 = vmatpush1.bf16.msra.mxu0 %v4744
    %5173 = vmatprep.subr.bf16.mxu0 %v4741
    %5174 = vmatpush1.bf16.msra.mxu0 %v4740
    %5175 = vmatprep.subr.bf16.mxu0 %v4737
    %5176 = vmatpush1.bf16.msra.mxu0 %v4736
    %5177 = vmatprep.subr.bf16.mxu0 %v4733
    %5178 = vmatpush1.bf16.msra.mxu0 %v4732
    %5179 = vmatprep.subr.bf16.mxu0 %v4729
    %5180 = vmatpush1.bf16.msra.mxu0 %v4728
    %5181 = vmatprep.subr.bf16.mxu0 %v4725
    %5182 = vmatpush1.bf16.msra.mxu0 %v4724
    %5183 = vmatprep.subr.bf16.mxu0 %v4785
    %5184 = vmatpush2.bf16.msra.mxu0 %v4784
    %5185 = vmatprep.subr.bf16.mxu0 %v4781
    %5186 = vmatpush2.bf16.msra.mxu0 %v4780
    %5187 = vmatprep.subr.bf16.mxu0 %v4777
    %5188 = vmatpush2.bf16.msra.mxu0 %v4776
    %5189 = vmatprep.subr.bf16.mxu0 %v4773
    %5190 = vmatpush2.bf16.msra.mxu0 %v4772
    %5191 = vmatprep.subr.bf16.mxu0 %v4769
    %5192 = vmatpush2.bf16.msra.mxu0 %v4768
    %5193 = vmatprep.subr.bf16.mxu0 %v4765
    %5194 = vmatpush2.bf16.msra.mxu0 %v4764
    %5195 = vmatprep.subr.bf16.mxu0 %v4761
    %5196 = vmatpush2.bf16.msra.mxu0 %v4760
    %5197 = vmatprep.subr.bf16.mxu0 %v4757
    %5198 = vmatpush2.bf16.msra.mxu0 %v4756
    %5199 = vmatprep.mubr.bf16.mxu0 %v3485
    %5200 = vmatmul.mubr.bf16.gmra.mxu0 %v3484
    %v5201 = vpop.f32.mrf.mxu0
    %v5202 = vadd.f32 %v5161, %v5201
    %v5203 = vpop.f32.mrf.mxu0
    %v5204 = vadd.f32 %v5163, %v5203
    %v5205 = vpop.f32.mrf.mxu0
    %v5206 = vpop.f32.mrf.mxu0
    %5207 = vdwg.mxu0
    %5208 = vmatprep.subr.bf16.mxu0 %v4563
    %5209 = vmatpush1.bf16.msra.mxu0 %v4562
    %5210 = vmatprep.subr.bf16.mxu0 %v4559
    %5211 = vmatpush1.bf16.msra.mxu0 %v4558
    %5212 = vmatprep.subr.bf16.mxu0 %v4555
    %5213 = vmatpush1.bf16.msra.mxu0 %v4554
    %5214 = vmatprep.subr.bf16.mxu0 %v4551
    %5215 = vmatpush1.bf16.msra.mxu0 %v4550
    %5216 = vmatprep.subr.bf16.mxu0 %v4547
    %5217 = vmatpush1.bf16.msra.mxu0 %v4546
    %5218 = vmatprep.subr.bf16.mxu0 %v4543
    %5219 = vmatpush1.bf16.msra.mxu0 %v4542
    %5220 = vmatprep.subr.bf16.mxu0 %v4539
    %5221 = vmatpush1.bf16.msra.mxu0 %v4538
    %5222 = vmatprep.subr.bf16.mxu0 %v4535
    %5223 = vmatpush1.bf16.msra.mxu0 %v4534
    %5224 = vmatprep.subr.bf16.mxu0 %v4595
    %5225 = vmatpush2.bf16.msra.mxu0 %v4594
    %5226 = vmatprep.subr.bf16.mxu0 %v4591
    %5227 = vmatpush2.bf16.msra.mxu0 %v4590
    %5228 = vmatprep.subr.bf16.mxu0 %v4587
    %5229 = vmatpush2.bf16.msra.mxu0 %v4586
    %5230 = vmatprep.subr.bf16.mxu0 %v4583
    %5231 = vmatpush2.bf16.msra.mxu0 %v4582
    %5232 = vmatprep.subr.bf16.mxu0 %v4579
    %5233 = vmatpush2.bf16.msra.mxu0 %v4578
    %5234 = vmatprep.subr.bf16.mxu0 %v4575
    %5235 = vmatpush2.bf16.msra.mxu0 %v4574
    %5236 = vmatprep.subr.bf16.mxu0 %v4571
    %5237 = vmatpush2.bf16.msra.mxu0 %v4570
    %5238 = vmatprep.subr.bf16.mxu0 %v4567
    %5239 = vmatpush2.bf16.msra.mxu0 %v4566
    %5240 = vmatprep.mubr.bf16.mxu0 %v3479
    %5241 = vmatmul.mubr.bf16.gmra.mxu0 %v3478
    %v5242 = vpop.f32.mrf.mxu0
    %v5243 = vadd.f32 %v3755, %v5242
    %v5244 = vpop.f32.mrf.mxu0
    %v5245 = vadd.f32 %v3759, %v5244
    %v5246 = vpop.f32.mrf.mxu0
    %v5247 = vpop.f32.mrf.mxu0
    %5248 = vdwg.mxu0
    %5249 = vmatprep.subr.bf16.mxu0 %v4627
    %5250 = vmatpush1.bf16.msra.mxu0 %v4626
    %5251 = vmatprep.subr.bf16.mxu0 %v4623
    %5252 = vmatpush1.bf16.msra.mxu0 %v4622
    %5253 = vmatprep.subr.bf16.mxu0 %v4619
    %5254 = vmatpush1.bf16.msra.mxu0 %v4618
    %5255 = vmatprep.subr.bf16.mxu0 %v4615
    %5256 = vmatpush1.bf16.msra.mxu0 %v4614
    %5257 = vmatprep.subr.bf16.mxu0 %v4611
    %5258 = vmatpush1.bf16.msra.mxu0 %v4610
    %5259 = vmatprep.subr.bf16.mxu0 %v4607
    %5260 = vmatpush1.bf16.msra.mxu0 %v4606
    %5261 = vmatprep.subr.bf16.mxu0 %v4603
    %5262 = vmatpush1.bf16.msra.mxu0 %v4602
    %5263 = vmatprep.subr.bf16.mxu0 %v4599
    %5264 = vmatpush1.bf16.msra.mxu0 %v4598
    %5265 = vmatprep.subr.bf16.mxu0 %v4659
    %5266 = vmatpush2.bf16.msra.mxu0 %v4658
    %5267 = vmatprep.subr.bf16.mxu0 %v4655
    %5268 = vmatpush2.bf16.msra.mxu0 %v4654
    %5269 = vmatprep.subr.bf16.mxu0 %v4651
    %5270 = vmatpush2.bf16.msra.mxu0 %v4650
    %5271 = vmatprep.subr.bf16.mxu0 %v4647
    %5272 = vmatpush2.bf16.msra.mxu0 %v4646
    %5273 = vmatprep.subr.bf16.mxu0 %v4643
    %5274 = vmatpush2.bf16.msra.mxu0 %v4642
    %5275 = vmatprep.subr.bf16.mxu0 %v4639
    %5276 = vmatpush2.bf16.msra.mxu0 %v4638
    %5277 = vmatprep.subr.bf16.mxu0 %v4635
    %5278 = vmatpush2.bf16.msra.mxu0 %v4634
    %5279 = vmatprep.subr.bf16.mxu0 %v4631
    %5280 = vmatpush2.bf16.msra.mxu0 %v4630
    %5281 = vmatprep.mubr.bf16.mxu0 %v3481
    %5282 = vmatmul.mubr.bf16.gmra.mxu0 %v3480
    %v5283 = vpop.f32.mrf.mxu0
    %v5284 = vadd.f32 %v5243, %v5283
    %v5285 = vpop.f32.mrf.mxu0
    %v5286 = vadd.f32 %v5245, %v5285
    %v5287 = vpop.f32.mrf.mxu0
    %v5288 = vpop.f32.mrf.mxu0
    %5289 = vdwg.mxu0
    %5290 = vmatprep.subr.bf16.mxu0 %v4691
    %5291 = vmatpush1.bf16.msra.mxu0 %v4690
    %5292 = vmatprep.subr.bf16.mxu0 %v4687
    %5293 = vmatpush1.bf16.msra.mxu0 %v4686
    %5294 = vmatprep.subr.bf16.mxu0 %v4683
    %5295 = vmatpush1.bf16.msra.mxu0 %v4682
    %5296 = vmatprep.subr.bf16.mxu0 %v4679
    %5297 = vmatpush1.bf16.msra.mxu0 %v4678
    %5298 = vmatprep.subr.bf16.mxu0 %v4675
    %5299 = vmatpush1.bf16.msra.mxu0 %v4674
    %5300 = vmatprep.subr.bf16.mxu0 %v4671
    %5301 = vmatpush1.bf16.msra.mxu0 %v4670
    %5302 = vmatprep.subr.bf16.mxu0 %v4667
    %5303 = vmatpush1.bf16.msra.mxu0 %v4666
    %5304 = vmatprep.subr.bf16.mxu0 %v4663
    %5305 = vmatpush1.bf16.msra.mxu0 %v4662
    %5306 = vmatprep.subr.bf16.mxu0 %v4723
    %5307 = vmatpush2.bf16.msra.mxu0 %v4722
    %5308 = vmatprep.subr.bf16.mxu0 %v4719
    %5309 = vmatpush2.bf16.msra.mxu0 %v4718
    %5310 = vmatprep.subr.bf16.mxu0 %v4715
    %5311 = vmatpush2.bf16.msra.mxu0 %v4714
    %5312 = vmatprep.subr.bf16.mxu0 %v4711
    %5313 = vmatpush2.bf16.msra.mxu0 %v4710
    %5314 = vmatprep.subr.bf16.mxu0 %v4707
    %5315 = vmatpush2.bf16.msra.mxu0 %v4706
    %5316 = vmatprep.subr.bf16.mxu0 %v4703
    %5317 = vmatpush2.bf16.msra.mxu0 %v4702
    %5318 = vmatprep.subr.bf16.mxu0 %v4699
    %5319 = vmatpush2.bf16.msra.mxu0 %v4698
    %5320 = vmatprep.subr.bf16.mxu0 %v4695
    %5321 = vmatpush2.bf16.msra.mxu0 %v4694
    %5322 = vmatprep.mubr.bf16.mxu0 %v3483
    %5323 = vmatmul.mubr.bf16.gmra.mxu0 %v3482
    %v5324 = vpop.f32.mrf.mxu0
    %v5325 = vadd.f32 %v5284, %v5324
    %v5326 = vpop.f32.mrf.mxu0
    %v5327 = vadd.f32 %v5286, %v5326
    %v5328 = vpop.f32.mrf.mxu0
    %v5329 = vpop.f32.mrf.mxu0
    %5330 = vdwg.mxu0
    %5331 = vmatprep.subr.bf16.mxu0 %v4755
    %5332 = vmatpush1.bf16.msra.mxu0 %v4754
    %5333 = vmatprep.subr.bf16.mxu0 %v4751
    %5334 = vmatpush1.bf16.msra.mxu0 %v4750
    %5335 = vmatprep.subr.bf16.mxu0 %v4747
    %5336 = vmatpush1.bf16.msra.mxu0 %v4746
    %5337 = vmatprep.subr.bf16.mxu0 %v4743
    %5338 = vmatpush1.bf16.msra.mxu0 %v4742
    %5339 = vmatprep.subr.bf16.mxu0 %v4739
    %5340 = vmatpush1.bf16.msra.mxu0 %v4738
    %5341 = vmatprep.subr.bf16.mxu0 %v4735
    %5342 = vmatpush1.bf16.msra.mxu0 %v4734
    %5343 = vmatprep.subr.bf16.mxu0 %v4731
    %5344 = vmatpush1.bf16.msra.mxu0 %v4730
    %5345 = vmatprep.subr.bf16.mxu0 %v4727
    %5346 = vmatpush1.bf16.msra.mxu0 %v4726
    %5347 = vmatprep.subr.bf16.mxu0 %v4787
    %5348 = vmatpush2.bf16.msra.mxu0 %v4786
    %5349 = vmatprep.subr.bf16.mxu0 %v4783
    %5350 = vmatpush2.bf16.msra.mxu0 %v4782
    %5351 = vmatprep.subr.bf16.mxu0 %v4779
    %5352 = vmatpush2.bf16.msra.mxu0 %v4778
    %5353 = vmatprep.subr.bf16.mxu0 %v4775
    %5354 = vmatpush2.bf16.msra.mxu0 %v4774
    %5355 = vmatprep.subr.bf16.mxu0 %v4771
    %5356 = vmatpush2.bf16.msra.mxu0 %v4770
    %5357 = vmatprep.subr.bf16.mxu0 %v4767
    %5358 = vmatpush2.bf16.msra.mxu0 %v4766
    %5359 = vmatprep.subr.bf16.mxu0 %v4763
    %5360 = vmatpush2.bf16.msra.mxu0 %v4762
    %5361 = vmatprep.subr.bf16.mxu0 %v4759
    %5362 = vmatpush2.bf16.msra.mxu0 %v4758
    %5363 = vmatprep.mubr.bf16.mxu0 %v3485
    %5364 = vmatmul.mubr.bf16.gmra.mxu0 %v3484
    %v5365 = vpop.f32.mrf.mxu0
    %v5366 = vadd.f32 %v5325, %v5365
    %v5367 = vpop.f32.mrf.mxu0
    %v5368 = vadd.f32 %v5327, %v5367
    %v5369 = vpop.f32.mrf.mxu0
    %v5370 = vpop.f32.mrf.mxu0
    %5371 = vdwg.mxu0
    %vm5372 = vcmp.gt.f32.partialorder %v5202, 0.0
    %vm5373 = vcmp.gt.f32.partialorder %v5204, 0.0
    %vm5374 = vcmp.gt.f32.partialorder %v5366, 0.0
    %vm5375 = vcmp.gt.f32.partialorder %v5368, 0.0
    %v5376 = vmul.f32 %v5202, 0.2
    %v5377 = vmul.f32 %v5204, 0.2
    %v5378 = vmul.f32 %v5366, 0.2
    %v5379 = vmul.f32 %v5368, 0.2
    %v5380 = vsel %vm5372, %v5202, %v5376
    %v5381 = vsel %vm5373, %v5204, %v5377
    %v5382 = vsel %vm5374, %v5366, %v5378
    %v5383 = vsel %vm5375, %v5368, %v5379
    %v5384 = vpack.c.bf16 %v5380, %v5380
    %v5385 = vpack.c.bf16 %v5381, %v5381
    %v5386 = vpack.c.bf16 %v5382, %v5382
    %v5387 = vpack.c.bf16 %v5383, %v5383
    %v5388 = vld [vmem:[#allocation13] sm:$0xff]
    %v5389 = vld [vmem:[#allocation13 + $0x8] sm:$0xff]
    %v5390 = vld [vmem:[#allocation13 + $0x10] sm:$0xff]
    %v5391 = vld [vmem:[#allocation13 + $0x18] sm:$0xff]
    %v5392 = vld [vmem:[#allocation13 + $0x20] sm:$0xff]
    %v5393 = vld [vmem:[#allocation13 + $0x28] sm:$0xff]
    %v5394 = vld [vmem:[#allocation13 + $0x30] sm:$0xff]
    %v5395 = vld [vmem:[#allocation13 + $0x38] sm:$0xff]
    %v5396 = vld [vmem:[#allocation13 + $0x40] sm:$0xff]
    %v5397 = vld [vmem:[#allocation13 + $0x48] sm:$0xff]
    %v5398 = vld [vmem:[#allocation13 + $0x50] sm:$0xff]
    %v5399 = vld [vmem:[#allocation13 + $0x58] sm:$0xff]
    %v5400 = vld [vmem:[#allocation13 + $0x60] sm:$0xff]
    %v5401 = vld [vmem:[#allocation13 + $0x68] sm:$0xff]
    %v5402 = vld [vmem:[#allocation13 + $0x70] sm:$0xff]
    %v5403 = vld [vmem:[#allocation13 + $0x78] sm:$0xff]
    %v5404 = vld [vmem:[#allocation13 + $0x80] sm:$0xff]
    %v5405 = vld [vmem:[#allocation13 + $0x88] sm:$0xff]
    %v5406 = vld [vmem:[#allocation13 + $0x90] sm:$0xff]
    %v5407 = vld [vmem:[#allocation13 + $0x98] sm:$0xff]
    %v5408 = vld [vmem:[#allocation13 + $0xa0] sm:$0xff]
    %v5409 = vld [vmem:[#allocation13 + $0xa8] sm:$0xff]
    %v5410 = vld [vmem:[#allocation13 + $0xb0] sm:$0xff]
    %v5411 = vld [vmem:[#allocation13 + $0xb8] sm:$0xff]
    %v5412 = vld [vmem:[#allocation13 + $0xc0] sm:$0xff]
    %v5413 = vld [vmem:[#allocation13 + $0xc8] sm:$0xff]
    %v5414 = vld [vmem:[#allocation13 + $0xd0] sm:$0xff]
    %v5415 = vld [vmem:[#allocation13 + $0xd8] sm:$0xff]
    %v5416 = vld [vmem:[#allocation13 + $0xe0] sm:$0xff]
    %v5417 = vld [vmem:[#allocation13 + $0xe8] sm:$0xff]
    %v5418 = vld [vmem:[#allocation13 + $0xf0] sm:$0xff]
    %v5419 = vld [vmem:[#allocation13 + $0xf8] sm:$0xff]
    %v5420 = vld [vmem:[#allocation13 + $0x100] sm:$0xff]
    %v5421 = vld [vmem:[#allocation13 + $0x108] sm:$0xff]
    %v5422 = vld [vmem:[#allocation13 + $0x110] sm:$0xff]
    %v5423 = vld [vmem:[#allocation13 + $0x118] sm:$0xff]
    %v5424 = vld [vmem:[#allocation13 + $0x120] sm:$0xff]
    %v5425 = vld [vmem:[#allocation13 + $0x128] sm:$0xff]
    %v5426 = vld [vmem:[#allocation13 + $0x130] sm:$0xff]
    %v5427 = vld [vmem:[#allocation13 + $0x138] sm:$0xff]
    %v5428 = vld [vmem:[#allocation13 + $0x140] sm:$0xff]
    %v5429 = vld [vmem:[#allocation13 + $0x148] sm:$0xff]
    %v5430 = vld [vmem:[#allocation13 + $0x150] sm:$0xff]
    %v5431 = vld [vmem:[#allocation13 + $0x158] sm:$0xff]
    %v5432 = vld [vmem:[#allocation13 + $0x160] sm:$0xff]
    %v5433 = vld [vmem:[#allocation13 + $0x168] sm:$0xff]
    %v5434 = vld [vmem:[#allocation13 + $0x170] sm:$0xff]
    %v5435 = vld [vmem:[#allocation13 + $0x178] sm:$0xff]
    %v5436 = vld [vmem:[#allocation13 + $0x180] sm:$0xff]
    %v5437 = vld [vmem:[#allocation13 + $0x188] sm:$0xff]
    %v5438 = vld [vmem:[#allocation13 + $0x190] sm:$0xff]
    %v5439 = vld [vmem:[#allocation13 + $0x198] sm:$0xff]
    %v5440 = vld [vmem:[#allocation13 + $0x1a0] sm:$0xff]
    %v5441 = vld [vmem:[#allocation13 + $0x1a8] sm:$0xff]
    %v5442 = vld [vmem:[#allocation13 + $0x1b0] sm:$0xff]
    %v5443 = vld [vmem:[#allocation13 + $0x1b8] sm:$0xff]
    %v5444 = vld [vmem:[#allocation13 + $0x1c0] sm:$0xff]
    %v5445 = vld [vmem:[#allocation13 + $0x1c8] sm:$0xff]
    %v5446 = vld [vmem:[#allocation13 + $0x1d0] sm:$0xff]
    %v5447 = vld [vmem:[#allocation13 + $0x1d8] sm:$0xff]
    %v5448 = vld [vmem:[#allocation13 + $0x1e0] sm:$0xff]
    %v5449 = vld [vmem:[#allocation13 + $0x1e8] sm:$0xff]
    %v5450 = vld [vmem:[#allocation13 + $0x1f0] sm:$0xff]
    %v5451 = vld [vmem:[#allocation13 + $0x1f8] sm:$0xff]
    %v5452 = vld [vmem:[#allocation14] sm:$0x3]
    %v5454 = vlaneseq
    %v5455 = vshrl.u32 %v5454, 7
    %v5456 = vsub.s32 0, %v5455
    %v5457 = vrot.slane %v5452, %v5456
    %v5458 = vlaneseq
    %v5459 = vshrl.u32 %v5458, 7
    %v5460 = vsub.s32 1, %v5459
    %v5461 = vrot.slane %v5452, %v5460
    %v5528 = vunpack.c.l.b16 %v5388
    %v5529 = vunpack.c.h.b16 %v5388
    %v5530 = vunpack.c.l.b16 %v5389
    %v5531 = vunpack.c.h.b16 %v5389
    %v5532 = vunpack.c.l.b16 %v5390
    %v5533 = vunpack.c.h.b16 %v5390
    %v5534 = vunpack.c.l.b16 %v5391
    %v5535 = vunpack.c.h.b16 %v5391
    %v5536 = vunpack.c.l.b16 %v5392
    %v5537 = vunpack.c.h.b16 %v5392
    %v5538 = vunpack.c.l.b16 %v5393
    %v5539 = vunpack.c.h.b16 %v5393
    %v5540 = vunpack.c.l.b16 %v5394
    %v5541 = vunpack.c.h.b16 %v5394
    %v5542 = vunpack.c.l.b16 %v5395
    %v5543 = vunpack.c.h.b16 %v5395
    %v5544 = vunpack.c.l.b16 %v5396
    %v5545 = vunpack.c.h.b16 %v5396
    %v5546 = vunpack.c.l.b16 %v5397
    %v5547 = vunpack.c.h.b16 %v5397
    %v5548 = vunpack.c.l.b16 %v5398
    %v5549 = vunpack.c.h.b16 %v5398
    %v5550 = vunpack.c.l.b16 %v5399
    %v5551 = vunpack.c.h.b16 %v5399
    %v5552 = vunpack.c.l.b16 %v5400
    %v5553 = vunpack.c.h.b16 %v5400
    %v5554 = vunpack.c.l.b16 %v5401
    %v5555 = vunpack.c.h.b16 %v5401
    %v5556 = vunpack.c.l.b16 %v5402
    %v5557 = vunpack.c.h.b16 %v5402
    %v5558 = vunpack.c.l.b16 %v5403
    %v5559 = vunpack.c.h.b16 %v5403
    %v5560 = vunpack.c.l.b16 %v5404
    %v5561 = vunpack.c.h.b16 %v5404
    %v5562 = vunpack.c.l.b16 %v5405
    %v5563 = vunpack.c.h.b16 %v5405
    %v5564 = vunpack.c.l.b16 %v5406
    %v5565 = vunpack.c.h.b16 %v5406
    %v5566 = vunpack.c.l.b16 %v5407
    %v5567 = vunpack.c.h.b16 %v5407
    %v5568 = vunpack.c.l.b16 %v5408
    %v5569 = vunpack.c.h.b16 %v5408
    %v5570 = vunpack.c.l.b16 %v5409
    %v5571 = vunpack.c.h.b16 %v5409
    %v5572 = vunpack.c.l.b16 %v5410
    %v5573 = vunpack.c.h.b16 %v5410
    %v5574 = vunpack.c.l.b16 %v5411
    %v5575 = vunpack.c.h.b16 %v5411
    %v5576 = vunpack.c.l.b16 %v5412
    %v5577 = vunpack.c.h.b16 %v5412
    %v5578 = vunpack.c.l.b16 %v5413
    %v5579 = vunpack.c.h.b16 %v5413
    %v5580 = vunpack.c.l.b16 %v5414
    %v5581 = vunpack.c.h.b16 %v5414
    %v5582 = vunpack.c.l.b16 %v5415
    %v5583 = vunpack.c.h.b16 %v5415
    %v5584 = vunpack.c.l.b16 %v5416
    %v5585 = vunpack.c.h.b16 %v5416
    %v5586 = vunpack.c.l.b16 %v5417
    %v5587 = vunpack.c.h.b16 %v5417
    %v5588 = vunpack.c.l.b16 %v5418
    %v5589 = vunpack.c.h.b16 %v5418
    %v5590 = vunpack.c.l.b16 %v5419
    %v5591 = vunpack.c.h.b16 %v5419
    %v5592 = vunpack.c.l.b16 %v5420
    %v5593 = vunpack.c.h.b16 %v5420
    %v5594 = vunpack.c.l.b16 %v5421
    %v5595 = vunpack.c.h.b16 %v5421
    %v5596 = vunpack.c.l.b16 %v5422
    %v5597 = vunpack.c.h.b16 %v5422
    %v5598 = vunpack.c.l.b16 %v5423
    %v5599 = vunpack.c.h.b16 %v5423
    %v5600 = vunpack.c.l.b16 %v5424
    %v5601 = vunpack.c.h.b16 %v5424
    %v5602 = vunpack.c.l.b16 %v5425
    %v5603 = vunpack.c.h.b16 %v5425
    %v5604 = vunpack.c.l.b16 %v5426
    %v5605 = vunpack.c.h.b16 %v5426
    %v5606 = vunpack.c.l.b16 %v5427
    %v5607 = vunpack.c.h.b16 %v5427
    %v5608 = vunpack.c.l.b16 %v5428
    %v5609 = vunpack.c.h.b16 %v5428
    %v5610 = vunpack.c.l.b16 %v5429
    %v5611 = vunpack.c.h.b16 %v5429
    %v5612 = vunpack.c.l.b16 %v5430
    %v5613 = vunpack.c.h.b16 %v5430
    %v5614 = vunpack.c.l.b16 %v5431
    %v5615 = vunpack.c.h.b16 %v5431
    %v5616 = vunpack.c.l.b16 %v5432
    %v5617 = vunpack.c.h.b16 %v5432
    %v5618 = vunpack.c.l.b16 %v5433
    %v5619 = vunpack.c.h.b16 %v5433
    %v5620 = vunpack.c.l.b16 %v5434
    %v5621 = vunpack.c.h.b16 %v5434
    %v5622 = vunpack.c.l.b16 %v5435
    %v5623 = vunpack.c.h.b16 %v5435
    %v5624 = vunpack.c.l.b16 %v5436
    %v5625 = vunpack.c.h.b16 %v5436
    %v5626 = vunpack.c.l.b16 %v5437
    %v5627 = vunpack.c.h.b16 %v5437
    %v5628 = vunpack.c.l.b16 %v5438
    %v5629 = vunpack.c.h.b16 %v5438
    %v5630 = vunpack.c.l.b16 %v5439
    %v5631 = vunpack.c.h.b16 %v5439
    %v5632 = vunpack.c.l.b16 %v5440
    %v5633 = vunpack.c.h.b16 %v5440
    %v5634 = vunpack.c.l.b16 %v5441
    %v5635 = vunpack.c.h.b16 %v5441
    %v5636 = vunpack.c.l.b16 %v5442
    %v5637 = vunpack.c.h.b16 %v5442
    %v5638 = vunpack.c.l.b16 %v5443
    %v5639 = vunpack.c.h.b16 %v5443
    %v5640 = vunpack.c.l.b16 %v5444
    %v5641 = vunpack.c.h.b16 %v5444
    %v5642 = vunpack.c.l.b16 %v5445
    %v5643 = vunpack.c.h.b16 %v5445
    %v5644 = vunpack.c.l.b16 %v5446
    %v5645 = vunpack.c.h.b16 %v5446
    %v5646 = vunpack.c.l.b16 %v5447
    %v5647 = vunpack.c.h.b16 %v5447
    %v5648 = vunpack.c.l.b16 %v5448
    %v5649 = vunpack.c.h.b16 %v5448
    %v5650 = vunpack.c.l.b16 %v5449
    %v5651 = vunpack.c.h.b16 %v5449
    %v5652 = vunpack.c.l.b16 %v5450
    %v5653 = vunpack.c.h.b16 %v5450
    %v5654 = vunpack.c.l.b16 %v5451
    %v5655 = vunpack.c.h.b16 %v5451
    %v5656 = vpack.c.b16 %v5530, %v5528
    %v5657 = vpack.c.b16 %v5531, %v5529
    %v5658 = vpack.c.b16 %v5534, %v5532
    %v5659 = vpack.c.b16 %v5535, %v5533
    %v5660 = vpack.c.b16 %v5538, %v5536
    %v5661 = vpack.c.b16 %v5539, %v5537
    %v5662 = vpack.c.b16 %v5542, %v5540
    %v5663 = vpack.c.b16 %v5543, %v5541
    %v5664 = vpack.c.b16 %v5546, %v5544
    %v5665 = vpack.c.b16 %v5547, %v5545
    %v5666 = vpack.c.b16 %v5550, %v5548
    %v5667 = vpack.c.b16 %v5551, %v5549
    %v5668 = vpack.c.b16 %v5554, %v5552
    %v5669 = vpack.c.b16 %v5555, %v5553
    %v5670 = vpack.c.b16 %v5558, %v5556
    %v5671 = vpack.c.b16 %v5559, %v5557
    %v5672 = vpack.c.b16 %v5562, %v5560
    %v5673 = vpack.c.b16 %v5563, %v5561
    %v5674 = vpack.c.b16 %v5566, %v5564
    %v5675 = vpack.c.b16 %v5567, %v5565
    %v5676 = vpack.c.b16 %v5570, %v5568
    %v5677 = vpack.c.b16 %v5571, %v5569
    %v5678 = vpack.c.b16 %v5574, %v5572
    %v5679 = vpack.c.b16 %v5575, %v5573
    %v5680 = vpack.c.b16 %v5578, %v5576
    %v5681 = vpack.c.b16 %v5579, %v5577
    %v5682 = vpack.c.b16 %v5582, %v5580
    %v5683 = vpack.c.b16 %v5583, %v5581
    %v5684 = vpack.c.b16 %v5586, %v5584
    %v5685 = vpack.c.b16 %v5587, %v5585
    %v5686 = vpack.c.b16 %v5590, %v5588
    %v5687 = vpack.c.b16 %v5591, %v5589
    %v5688 = vpack.c.b16 %v5594, %v5592
    %v5689 = vpack.c.b16 %v5595, %v5593
    %v5690 = vpack.c.b16 %v5598, %v5596
    %v5691 = vpack.c.b16 %v5599, %v5597
    %v5692 = vpack.c.b16 %v5602, %v5600
    %v5693 = vpack.c.b16 %v5603, %v5601
    %v5694 = vpack.c.b16 %v5606, %v5604
    %v5695 = vpack.c.b16 %v5607, %v5605
    %v5696 = vpack.c.b16 %v5610, %v5608
    %v5697 = vpack.c.b16 %v5611, %v5609
    %v5698 = vpack.c.b16 %v5614, %v5612
    %v5699 = vpack.c.b16 %v5615, %v5613
    %v5700 = vpack.c.b16 %v5618, %v5616
    %v5701 = vpack.c.b16 %v5619, %v5617
    %v5702 = vpack.c.b16 %v5622, %v5620
    %v5703 = vpack.c.b16 %v5623, %v5621
    %v5704 = vpack.c.b16 %v5626, %v5624
    %v5705 = vpack.c.b16 %v5627, %v5625
    %v5706 = vpack.c.b16 %v5630, %v5628
    %v5707 = vpack.c.b16 %v5631, %v5629
    %v5708 = vpack.c.b16 %v5634, %v5632
    %v5709 = vpack.c.b16 %v5635, %v5633
    %v5710 = vpack.c.b16 %v5638, %v5636
    %v5711 = vpack.c.b16 %v5639, %v5637
    %v5712 = vpack.c.b16 %v5642, %v5640
    %v5713 = vpack.c.b16 %v5643, %v5641
    %v5714 = vpack.c.b16 %v5646, %v5644
    %v5715 = vpack.c.b16 %v5647, %v5645
    %v5716 = vpack.c.b16 %v5650, %v5648
    %v5717 = vpack.c.b16 %v5651, %v5649
    %v5718 = vpack.c.b16 %v5654, %v5652
    %v5719 = vpack.c.b16 %v5655, %v5653
    %5784 = vmatprep.subr.bf16.mxu0 %v5671
    %5785 = vmatpush1.bf16.msra.mxu0 %v5670
    %5786 = vmatprep.subr.bf16.mxu0 %v5669
    %5787 = vmatpush1.bf16.msra.mxu0 %v5668
    %5788 = vmatprep.subr.bf16.mxu0 %v5667
    %5789 = vmatpush1.bf16.msra.mxu0 %v5666
    %5790 = vmatprep.subr.bf16.mxu0 %v5665
    %5791 = vmatpush1.bf16.msra.mxu0 %v5664
    %5792 = vmatprep.subr.bf16.mxu0 %v5663
    %5793 = vmatpush1.bf16.msra.mxu0 %v5662
    %5794 = vmatprep.subr.bf16.mxu0 %v5661
    %5795 = vmatpush1.bf16.msra.mxu0 %v5660
    %5796 = vmatprep.subr.bf16.mxu0 %v5659
    %5797 = vmatpush1.bf16.msra.mxu0 %v5658
    %5798 = vmatprep.subr.bf16.mxu0 %v5657
    %5799 = vmatpush1.bf16.msra.mxu0 %v5656
    %5800 = vmatprep.subr.bf16.mxu0 %v5687
    %5801 = vmatpush2.bf16.msra.mxu0 %v5686
    %5802 = vmatprep.subr.bf16.mxu0 %v5685
    %5803 = vmatpush2.bf16.msra.mxu0 %v5684
    %5804 = vmatprep.subr.bf16.mxu0 %v5683
    %5805 = vmatpush2.bf16.msra.mxu0 %v5682
    %5806 = vmatprep.subr.bf16.mxu0 %v5681
    %5807 = vmatpush2.bf16.msra.mxu0 %v5680
    %5808 = vmatprep.subr.bf16.mxu0 %v5679
    %5809 = vmatpush2.bf16.msra.mxu0 %v5678
    %5810 = vmatprep.subr.bf16.mxu0 %v5677
    %5811 = vmatpush2.bf16.msra.mxu0 %v5676
    %5812 = vmatprep.subr.bf16.mxu0 %v5675
    %5813 = vmatpush2.bf16.msra.mxu0 %v5674
    %5814 = vmatprep.subr.bf16.mxu0 %v5673
    %5815 = vmatpush2.bf16.msra.mxu0 %v5672
    %5816 = vmatprep.mubr.bf16.mxu0 %v5385
    %5817 = vmatmul.mubr.bf16.gmra.mxu0 %v5384
    %v5818 = vpop.f32.mrf.mxu0
    %v5819 = vadd.f32 %v5457, %v5818
    %v5820 = vpop.f32.mrf.mxu0
    %v5821 = vadd.f32 %v5461, %v5820
    %v5822 = vpop.f32.mrf.mxu0
    %v5823 = vpop.f32.mrf.mxu0
    %5824 = vdwg.mxu0
    %5825 = vmatprep.subr.bf16.mxu0 %v5703
    %5826 = vmatpush1.bf16.msra.mxu0 %v5702
    %5827 = vmatprep.subr.bf16.mxu0 %v5701
    %5828 = vmatpush1.bf16.msra.mxu0 %v5700
    %5829 = vmatprep.subr.bf16.mxu0 %v5699
    %5830 = vmatpush1.bf16.msra.mxu0 %v5698
    %5831 = vmatprep.subr.bf16.mxu0 %v5697
    %5832 = vmatpush1.bf16.msra.mxu0 %v5696
    %5833 = vmatprep.subr.bf16.mxu0 %v5695
    %5834 = vmatpush1.bf16.msra.mxu0 %v5694
    %5835 = vmatprep.subr.bf16.mxu0 %v5693
    %5836 = vmatpush1.bf16.msra.mxu0 %v5692
    %5837 = vmatprep.subr.bf16.mxu0 %v5691
    %5838 = vmatpush1.bf16.msra.mxu0 %v5690
    %5839 = vmatprep.subr.bf16.mxu0 %v5689
    %5840 = vmatpush1.bf16.msra.mxu0 %v5688
    %5841 = vmatprep.subr.bf16.mxu0 %v5719
    %5842 = vmatpush2.bf16.msra.mxu0 %v5718
    %5843 = vmatprep.subr.bf16.mxu0 %v5717
    %5844 = vmatpush2.bf16.msra.mxu0 %v5716
    %5845 = vmatprep.subr.bf16.mxu0 %v5715
    %5846 = vmatpush2.bf16.msra.mxu0 %v5714
    %5847 = vmatprep.subr.bf16.mxu0 %v5713
    %5848 = vmatpush2.bf16.msra.mxu0 %v5712
    %5849 = vmatprep.subr.bf16.mxu0 %v5711
    %5850 = vmatpush2.bf16.msra.mxu0 %v5710
    %5851 = vmatprep.subr.bf16.mxu0 %v5709
    %5852 = vmatpush2.bf16.msra.mxu0 %v5708
    %5853 = vmatprep.subr.bf16.mxu0 %v5707
    %5854 = vmatpush2.bf16.msra.mxu0 %v5706
    %5855 = vmatprep.subr.bf16.mxu0 %v5705
    %5856 = vmatpush2.bf16.msra.mxu0 %v5704
    %5857 = vmatprep.mubr.bf16.mxu0 %v5387
    %5858 = vmatmul.mubr.bf16.gmra.mxu0 %v5386
    %v5859 = vpop.f32.mrf.mxu0
    %v5860 = vadd.f32 %v5819, %v5859
    %v5861 = vpop.f32.mrf.mxu0
    %v5862 = vadd.f32 %v5821, %v5861
    %v5863 = vpop.f32.mrf.mxu0
    %v5864 = vpop.f32.mrf.mxu0
    %5865 = vdwg.mxu0
    %vm5866 = vcmp.gt.f32.partialorder %v5860, 0.0
    %vm5867 = vcmp.gt.f32.partialorder %v5862, 0.0
    %v5868 = vmul.f32 %v5860, 0.2
    %v5869 = vmul.f32 %v5862, 0.2
    %v5870 = vsel %vm5866, %v5860, %v5868
    %v5871 = vsel %vm5867, %v5862, %v5869
    %v5872 = vld [vmem:[#allocation16] sm:$0x3]
    %v5873 = vunpack.c.l.bf16 %v5872
    %v5875 = vlaneseq
    %v5876 = vshrl.u32 %v5875, 7
    %v5877 = vsub.s32 0, %v5876
    %v5878 = vrot.slane %v5873, %v5877
    %v5879 = vlaneseq
    %v5880 = vshrl.u32 %v5879, 7
    %v5881 = vsub.s32 2, %v5880
    %v5882 = vrot.slane %v5873, %v5881
    %v5885 = vlaneseq
    %v5886 = vshrl.u32 %v5885, 7
    %v5887 = vsub.s32 0, %v5886
    %v5888 = vrot.slane %v5878, %v5887
    %v5889 = vlaneseq
    %v5890 = vshrl.u32 %v5889, 7
    %v5891 = vsub.s32 0, %v5890
    %v5892 = vrot.slane %v5882, %v5891
    %v5893 = vmul.f32 %v5870, %v5888
    %v5894 = vmul.f32 %v5871, %v5892
    %v5895 = vadd.f32 %v5893, %v5894
    %5896 = vadd.xlane.f32.xlu0 %v5895
    %v5897 = vpop.xlane.xlu0 %5896
    %v5898 = vld [vmem:[#allocation2] sm:$0x1]
    %v5900 = vlaneseq
    %v5901 = vshrl.u32 %v5900, 7
    %v5902 = vsub.s32 0, %v5901
    %v5903 = vrot.slane %v5898, %v5902
    %v5905 = vadd.f32 %v5897, %v5903
    %v5906 = vxor.u32 %v5905, 2147483648
    %v5907 = vmul.f32 %v5906, 1.442695
    %v5908 = vpow.pop %v5907
    %v5909 = vadd.f32 %v5908, 1.0
    %v5910 = vrcp.pop %v5909
    %v5911 = vmul.f32 1.0, %v5910
    %vm5912 = vcmask 7168
    %5913 = vst.msk [vmem:[%s11] sm:$0xff] %vm5912, %v5911
    // Predicated region
    $region82: #{tpu_custom_call.1} parent=1 // pred_check
      _
    $region83: #{tpu_custom_call.1} parent=1 // pred_check_branch
      %5915 = sbr.rel (0) target = $region85
    $region84: #{tpu_custom_call.1} parent=1 // pred_region
      _
    $region85: #{tpu_custom_call.1} parent=1 // pred_fallthru
      _
    // Predicated region
    $region86: #{tpu_custom_call.1} parent=1 // pred_check
      _
    $region87: #{tpu_custom_call.1} parent=1 // pred_check_branch
      %5917 = sbr.rel (0) target = $region89
    $region88: #{tpu_custom_call.1} parent=1 // pred_region
      _
    $region89: #{tpu_custom_call.1} parent=1 // pred_fallthru
      _
    %5918 = vsyncpa [#allocation4], 1
    %5919 = vsyncpa [#allocation6], 1
    %5920 = vsyncpa [#allocation9], 1
    %5921 = vsyncpa [#allocation12], 1
    %5922 = vsyncpa [#allocation15], 1

</llo_original>
